<compile_context>
chip_gen: v6e
topology: v6e:2x2x1
jax: 0.10.0
libtpu: 0.0.40
codegen_flags: <defaults>
</compile_context>

<pallas_src>
import functools

import jax
import jax.numpy as jnp
from jax.experimental import pallas as pl
from jax.experimental.pallas import tpu as pltpu

LANE = 128
SUBLANE = 8
f32 = jnp.float32
bf16 = jnp.bfloat16


def _rup(x, m):
    return ((x + m - 1) // m) * m


def _vmem_spec():
    return pl.BlockSpec(memory_space=pltpu.MemorySpace.VMEM)


def _smem_spec():
    return pl.BlockSpec(memory_space=pltpu.MemorySpace.SMEM)


# ---------------------------------------------------------------------------
# Fully fused forward kernel (grid=(), whole-array VMEM blocks, ids in SMEM)
# ---------------------------------------------------------------------------
def _make_fused_kernel(num_layers, seq_len, batch_p, hidden_p):
    S, Bp, Hp = seq_len, batch_p, hidden_p
    n_tokens = S * Bp

    def kernel(*refs):
        idx = 0
        ids_ref = refs[idx]; idx += 1        # SMEM (S*Bp,) int32, r = s*Bp + b
        img_ref = refs[idx]; idx += 1        # (Bp, Cp, H*W) f32
        bbw_ref = refs[idx]; idx += 1        # (Cp, Fp) bf16   (frozen stand-in)
        bbb_ref = refs[idx]; idx += 1        # (1, Fp) f32
        ifw_ref = refs[idx]; idx += 1        # (Fp, Ep) bf16
        ifb_ref = refs[idx]; idx += 1        # (1, Ep) f32
        w2v_ref = refs[idx]; idx += 1        # (V, Wp) f32
        lstm_refs = []
        for _ in range(num_layers):
            lstm_refs.append((refs[idx], refs[idx + 1], refs[idx + 2]))
            idx += 3                         # (Ip,4Hp) bf16, (Hp,4Hp) bf16, (1,4Hp) f32
        qfw_ref = refs[idx]; idx += 1        # (2*L*Hp, Ep) bf16
        qfb_ref = refs[idx]; idx += 1        # (1, Ep) f32
        f1w_ref = refs[idx]; idx += 1        # (Ep, Ap) bf16
        f1b_ref = refs[idx]; idx += 1        # (1, Ap) f32
        f2w_ref = refs[idx]; idx += 1        # (Ap, Ap) bf16
        f2b_ref = refs[idx]; idx += 1        # (1, Ap) f32
        out_ref = refs[idx]; idx += 1        # (Bp, Ap) f32
        emb_scr = refs[idx]; idx += 1        # VMEM (S*Bp, Wp) f32
        hseq_scr = refs[idx] if num_layers > 1 else None   # VMEM (S, Bp, Hp) f32

        # ---------------- image path ------------------------------------
        # TODO(synk): torchvision MobileNetV2 pretrained backbone is not
        # reproduced; stand-in = frozen global-average-pool + frozen linear
        # to in_features, followed by the real trainable img_fc.
        pooled = jnp.mean(img_ref[...], axis=-1)                        # (Bp, Cp)
        feat = jnp.dot(pooled.astype(bf16), bbw_ref[...],
                       preferred_element_type=f32) + bbb_ref[...]       # (Bp, Fp)
        img_f = jnp.dot(feat.astype(bf16), ifw_ref[...],
                        preferred_element_type=f32) + ifb_ref[...]      # (Bp, Ep)

        # ---------------- question path: embedding gather ----------------
        # TODO(synk): torch nn.Embedding semantics for out-of-range ids /
        # padding_idx are not reproduced (ids assumed in [0, vocab)).
        for r in range(n_tokens):                     # one-time, off the
            tok = ids_ref[r]                          # recurrent critical path
            emb_scr[pl.ds(r, 1), :] = w2v_ref[pl.ds(tok, 1), :]
        x = jnp.tanh(emb_scr[...])                                      # (S*Bp, Wp)

        # ---------------- LSTM (torch gate order i, f, g, o) -------------
        last_states = []
        for l in range(num_layers):
            wih_ref, whh_ref, b_ref = lstm_refs[l]
            whh = whh_ref[...]                                          # (Hp, 4Hp)

            # Hoisted input projection (bias folded in once, outside the loop),
            # reshaped time-major so per-step access is a free leading index.
            gx = (jnp.dot(x.astype(bf16), wih_ref[...],
                          preferred_element_type=f32)
                  + b_ref[...]).reshape(S, Bp, 4 * Hp)

            h = jnp.zeros((Bp, Hp), f32)
            c = jnp.zeros((Bp, Hp), f32)
            for t in range(S):                       # fully unrolled (S static)
                gates = gx[t] + jnp.dot(h.astype(bf16), whh,
                                        preferred_element_type=f32)     # (Bp, 4Hp)
                i_g = jax.nn.sigmoid(gates[:, 0 * Hp:1 * Hp])
                f_g = jax.nn.sigmoid(gates[:, 1 * Hp:2 * Hp])
                g_g = jnp.tanh(gates[:, 2 * Hp:3 * Hp])
                o_g = jax.nn.sigmoid(gates[:, 3 * Hp:4 * Hp])
                c = f_g * c + i_g * g_g
                h = o_g * jnp.tanh(c)
                if l < num_layers - 1:               # last layer's h_seq unused
                    hseq_scr[t] = h                  # static row store to VMEM

            last_states += [h, c]
            if l < num_layers - 1:
                x = hseq_scr[...].reshape(S * Bp, Hp)

        # cat((hidden, cell), 2).transpose(0,1).reshape(B, -1)
        #   -> per batch: [h_l0, c_l0, h_l1, c_l1, ...] (Hp-padded blocks)
        qf = jnp.tanh(jnp.concatenate(last_states, axis=1))             # (Bp, 2L*Hp)
        qst_f = jnp.dot(qf.astype(bf16), qfw_ref[...],
                        preferred_element_type=f32) + qfb_ref[...]      # (Bp, Ep)

        # ---------------- fusion head (Dropout = identity in eval) -------
        y = jnp.tanh(img_f * qst_f)
        y = jnp.tanh(jnp.dot(y.astype(bf16), f1w_ref[...],
                             preferred_element_type=f32) + f1b_ref[...])
        out_ref[...] = jnp.dot(y.astype(bf16), f2w_ref[...],
                               preferred_element_type=f32) + f2b_ref[...]

    return kernel


# ---------------------------------------------------------------------------
# Wrapper
# ---------------------------------------------------------------------------
def vqa_forward(img, qst, prepared, *, num_layers, ans_vocab):
    B, C, Hh, Ww = img.shape
    S = qst.shape[1]
    Hp = prepared["w_hh_0"].shape[0]
    Ap = prepared["fc2_w"].shape[1]
    Cp = prepared["backbone_w"].shape[0]
    Wp = prepared["word2vec"].shape[1]
    Bp = _rup(B, SUBLANE)

    # image: (B,C,H,W) -> (Bp, Cp, H*W), zero-padded batch / channels
    img_flat = img.reshape(B, C, Hh * Ww).astype(f32)
    img_p = jnp.zeros((Bp, Cp, Hh * Ww), f32).at[:B, :C, :].set(img_flat)

    # token ids, seq-major row order r = s*Bp + b; padded batch rows use id 0
    ids = jnp.zeros((S, Bp), jnp.int32).at[:, :B].set(qst.T.astype(jnp.int32))
    ids = ids.reshape(S * Bp)

    inputs = [ids, img_p,
              prepared["backbone_w"], prepared["backbone_b"],
              prepared["img_fc_w"], prepared["img_fc_b"],
              prepared["word2vec"]]
    for l in range(num_layers):
        inputs += [prepared[f"w_ih_{l}"], prepared[f"w_hh_{l}"],
                   prepared[f"b_{l}"]]
    inputs += [prepared["qst_fc_w"], prepared["qst_fc_b"],
               prepared["fc1_w"], prepared["fc1_b"],
               prepared["fc2_w"], prepared["fc2_b"]]

    in_specs = [_smem_spec()] + [_vmem_spec()] * (len(inputs) - 1)
    scratch = [pltpu.VMEM((S * Bp, Wp), f32)]
    if num_layers > 1:
        scratch.append(pltpu.VMEM((S, Bp, Hp), f32))

    kernel = _make_fused_kernel(num_layers, S, Bp, Hp)
    out_p = pl.pallas_call(
        kernel,
        out_shape=jax.ShapeDtypeStruct((Bp, Ap), f32),
        in_specs=in_specs,
        out_specs=_vmem_spec(),
        scratch_shapes=scratch,
        compiler_params=pltpu.CompilerParams(
            vmem_limit_bytes=32 * 1024 * 1024),
    )(*inputs)
    return out_p[:B, :ans_vocab]


# ---------------------------------------------------------------------------
# One-time parameter preparation (done OUTSIDE jit): transpose, merge biases,
# pad every feature dim to 128 lanes, re-block LSTM gates to 128-lane blocks,
# cast matmul weights to bf16.  Zero padding keeps the real entries exact.
# ---------------------------------------------------------------------------
def prepare_params(p, num_layers):
    def pad_to(a, shape, dtype):
        a = jnp.asarray(a, dtype)
        out = jnp.zeros(shape, dtype)
        return out.at[tuple(slice(0, d) for d in a.shape)].set(a)

    in_features, img_channels = p["backbone_w"].shape
    embed_size = p["img_fc_w"].shape[0]
    hidden = p["w_hh_0"].shape[1]
    word_embed = p["word2vec"].shape[1]
    ans_vocab = p["fc1_w"].shape[0]

    Cp = _rup(img_channels, SUBLANE)
    Fp = _rup(in_features, LANE)
    Ep = _rup(embed_size, LANE)
    Wp = _rup(word_embed, LANE)
    Hp = _rup(hidden, LANE)
    Ap = _rup(ans_vocab, LANE)

    q = {}
    q["backbone_w"] = pad_to(jnp.asarray(p["backbone_w"]).T, (Cp, Fp), bf16)
    q["backbone_b"] = pad_to(jnp.asarray(p["backbone_b"]).reshape(1, -1), (1, Fp), f32)
    q["img_fc_w"] = pad_to(jnp.asarray(p["img_fc_w"]).T, (Fp, Ep), bf16)
    q["img_fc_b"] = pad_to(jnp.asarray(p["img_fc_b"]).reshape(1, -1), (1, Ep), f32)
    q["word2vec"] = pad_to(jnp.asarray(p["word2vec"]),
                           (p["word2vec"].shape[0], Wp), f32)

    for l in range(num_layers):
        in_dim = word_embed if l == 0 else hidden
        Ip = Wp if l == 0 else Hp
        wih_t = jnp.asarray(p[f"w_ih_{l}"]).T          # (I, 4H), gates [i|f|g|o]
        whh_t = jnp.asarray(p[f"w_hh_{l}"]).T          # (H, 4H)
        bias = (jnp.asarray(p[f"b_ih_{l}"]) +
                jnp.asarray(p[f"b_hh_{l}"])).reshape(1, -1)

        wih_p = jnp.zeros((Ip, 4 * Hp), bf16)
        whh_p = jnp.zeros((Hp, 4 * Hp), bf16)
        b_p = jnp.zeros((1, 4 * Hp), f32)
        for k in range(4):                             # per-gate 128-lane blocks
            wih_p = wih_p.at[:in_dim, k * Hp:k * Hp + hidden].set(
                wih_t[:, k * hidden:(k + 1) * hidden].astype(bf16))
            whh_p = whh_p.at[:hidden, k * Hp:k * Hp + hidden].set(
                whh_t[:, k * hidden:(k + 1) * hidden].astype(bf16))
            b_p = b_p.at[:, k * Hp:k * Hp + hidden].set(
                bias[:, k * hidden:(k + 1) * hidden].astype(f32))
        q[f"w_ih_{l}"] = wih_p
        q[f"w_hh_{l}"] = whh_p
        q[f"b_{l}"] = b_p

    # qst_fc: input layout [h_0, c_0, h_1, c_1, ...] in Hp-padded blocks
    qfw_t = jnp.asarray(p["qst_fc_w"]).T               # (2*L*H, E)
    qfw_p = jnp.zeros((2 * num_layers * Hp, Ep), bf16)
    for blk in range(2 * num_layers):
        qfw_p = qfw_p.at[blk * Hp:blk * Hp + hidden, :embed_size].set(
            qfw_t[blk * hidden:(blk + 1) * hidden, :].astype(bf16))
    q["qst_fc_w"] = qfw_p
    q["qst_fc_b"] = pad_to(jnp.asarray(p["qst_fc_b"]).reshape(1, -1), (1, Ep), f32)

    q["fc1_w"] = pad_to(jnp.asarray(p["fc1_w"]).T, (Ep, Ap), bf16)
    q["fc1_b"] = pad_to(jnp.asarray(p["fc1_b"]).reshape(1, -1), (1, Ap), f32)
    q["fc2_w"] = pad_to(jnp.asarray(p["fc2_w"]).T, (Ap, Ap), bf16)
    q["fc2_b"] = pad_to(jnp.asarray(p["fc2_b"]).reshape(1, -1), (1, Ap), f32)
    return jax.tree_util.tree_map(jax.device_put, q)


# ---------------------------------------------------------------------------
# Deterministic parameter construction (torch-convention shapes)
# ---------------------------------------------------------------------------
def make_params(key, *, embed_size, qst_vocab, ans_vocab, word_embed,
                num_layers, hidden_size, in_features, img_channels):
    keys = iter(jax.random.split(key, 64))
    u = lambda k, shape, s: jax.random.uniform(k, shape, jnp.float32, -s, s)
    p = {}
    p["backbone_w"] = u(next(keys), (in_features, img_channels), 0.5)
    p["backbone_b"] = u(next(keys), (in_features,), 0.5)
    p["img_fc_w"] = u(next(keys), (embed_size, in_features), 0.1)
    p["img_fc_b"] = u(next(keys), (embed_size,), 0.1)
    p["word2vec"] = jax.random.normal(next(keys), (qst_vocab, word_embed),
                                      jnp.float32)
    s = 1.0 / float(jnp.sqrt(hidden_size))
    for l in range(num_layers):
        in_dim = word_embed if l == 0 else hidden_size
        p[f"w_ih_{l}"] = u(next(keys), (4 * hidden_size, in_dim), s)
        p[f"w_hh_{l}"] = u(next(keys), (4 * hidden_size, hidden_size), s)
        p[f"b_ih_{l}"] = u(next(keys), (4 * hidden_size,), s)
        p[f"b_hh_{l}"] = u(next(keys), (4 * hidden_size,), s)
    p["qst_fc_w"] = u(next(keys), (embed_size, 2 * num_layers * hidden_size), 0.1)
    p["qst_fc_b"] = u(next(keys), (embed_size,), 0.1)
    p["fc1_w"] = u(next(keys), (ans_vocab, embed_size), 0.1)
    p["fc1_b"] = u(next(keys), (ans_vocab,), 0.1)
    p["fc2_w"] = u(next(keys), (ans_vocab, ans_vocab), 0.1)
    p["fc2_b"] = u(next(keys), (ans_vocab,), 0.1)
    return p


if __name__ == "__main__":
    # small synthetic configuration
    embed_size = 32
    qst_vocab = 100
    ans_vocab = 32
    word_embed = 32
    num_layers = 2
    hidden_size = 32
    in_features = 32          # stand-in for MobileNetV2's 1280
    batch, seq = 2, 8
    img_channels, H, W = 3, 16, 16

    key = jax.random.PRNGKey(0)
    kp, ki, kq = jax.random.split(key, 3)

    params = make_params(
        kp, embed_size=embed_size, qst_vocab=qst_vocab, ans_vocab=ans_vocab,
        word_embed=word_embed, num_layers=num_layers, hidden_size=hidden_size,
        in_features=in_features, img_channels=img_channels)
    prepared = prepare_params(params, num_layers)    # one-time, outside jit

    img = jax.random.normal(ki, (batch, img_channels, H, W), jnp.float32)
    qst = jax.random.randint(kq, (batch, seq), 0, qst_vocab, jnp.int32)

    fwd = jax.jit(functools.partial(vqa_forward, num_layers=num_layers,
                                    ans_vocab=ans_vocab))
    out = jax.block_until_ready(fwd(img, qst, prepared))
    assert out.shape == (batch, ans_vocab), out.shape
    assert jnp.all(jnp.isfinite(out))
    print("KERNEL_OK")
</pallas_src>

<mosaic_0001>
module attributes {stable_mosaic.version = 11 : i64} {
  func.func @kernel(%arg0: memref<64xi32, #tpu.memory_space<smem>>, %arg1: memref<8x8x256xf32, #tpu.memory_space<vmem>>, %arg2: memref<8x128xbf16, #tpu.memory_space<vmem>>, %arg3: memref<1x128xf32, #tpu.memory_space<vmem>>, %arg4: memref<128x128xbf16, #tpu.memory_space<vmem>>, %arg5: memref<1x128xf32, #tpu.memory_space<vmem>>, %arg6: memref<100x128xf32, #tpu.memory_space<vmem>>, %arg7: memref<128x512xbf16, #tpu.memory_space<vmem>>, %arg8: memref<128x512xbf16, #tpu.memory_space<vmem>>, %arg9: memref<1x512xf32, #tpu.memory_space<vmem>>, %arg10: memref<128x512xbf16, #tpu.memory_space<vmem>>, %arg11: memref<128x512xbf16, #tpu.memory_space<vmem>>, %arg12: memref<1x512xf32, #tpu.memory_space<vmem>>, %arg13: memref<512x128xbf16, #tpu.memory_space<vmem>>, %arg14: memref<1x128xf32, #tpu.memory_space<vmem>>, %arg15: memref<128x128xbf16, #tpu.memory_space<vmem>>, %arg16: memref<1x128xf32, #tpu.memory_space<vmem>>, %arg17: memref<128x128xbf16, #tpu.memory_space<vmem>>, %arg18: memref<1x128xf32, #tpu.memory_space<vmem>>, %arg19: memref<8x128xf32, #tpu.memory_space<vmem>>, %arg20: memref<64x128xf32, #tpu.memory_space<vmem>>, %arg21: memref<8x8x128xf32, #tpu.memory_space<vmem>>) attributes {dimension_semantics = [], scalar_prefetch = 0 : i64, scratch_operands = 2 : i64, tpu.core_type = #tpu.core_type<tc>} {
    %c0 = arith.constant 0 : index
    %c0_0 = arith.constant 0 : index
    %c0_1 = arith.constant 0 : index
    %0 = vector.load %arg1[%c0, %c0_0, %c0_1] : memref<8x8x256xf32, #tpu.memory_space<vmem>>, vector<8x8x256xf32>
    %cst = arith.constant dense<0.000000e+00> : vector<8x8xf32>
    %1 = vector.multi_reduction <add>, %0, %cst [2] : vector<8x8x256xf32> to vector<8x8xf32>
    %cst_2 = arith.constant 2.560000e+02 : f32
    %2 = vector.broadcast %cst_2 : f32 to vector<8x8xf32>
    %3 = arith.divf %1, %2 : vector<8x8xf32>
    %4 = arith.truncf %3 : vector<8x8xf32> to vector<8x8xbf16>
    %c0_3 = arith.constant 0 : index
    %c0_4 = arith.constant 0 : index
    %5 = vector.load %arg2[%c0_3, %c0_4] : memref<8x128xbf16, #tpu.memory_space<vmem>>, vector<8x128xbf16>
    %cst_5 = arith.constant dense<0.000000e+00> : vector<8x128xf32>
    %6 = tpu.matmul %4, %5, %cst_5 {dimension_numbers = #tpu.dot_dimension_numbers<[1], [0], [0], [1], [0, 0, 1, 1], [], []>} : vector<8x8xbf16>, vector<8x128xbf16>, vector<8x128xf32> -> vector<8x128xf32>
    %c0_6 = arith.constant 0 : index
    %c0_7 = arith.constant 0 : index
    %7 = vector.load %arg3[%c0_6, %c0_7] : memref<1x128xf32, #tpu.memory_space<vmem>>, vector<1x128xf32>
    %8 = vector.broadcast %7 : vector<1x128xf32> to vector<8x128xf32>
    %9 = arith.addf %6, %8 : vector<8x128xf32>
    %10 = arith.truncf %9 : vector<8x128xf32> to vector<8x128xbf16>
    %c0_8 = arith.constant 0 : index
    %c0_9 = arith.constant 0 : index
    %11 = vector.load %arg4[%c0_8, %c0_9] : memref<128x128xbf16, #tpu.memory_space<vmem>>, vector<128x128xbf16>
    %cst_10 = arith.constant dense<0.000000e+00> : vector<8x128xf32>
    %12 = tpu.matmul %10, %11, %cst_10 {dimension_numbers = #tpu.dot_dimension_numbers<[1], [0], [0], [1], [0, 0, 1, 1], [], []>} : vector<8x128xbf16>, vector<128x128xbf16>, vector<8x128xf32> -> vector<8x128xf32>
    %c0_11 = arith.constant 0 : index
    %c0_12 = arith.constant 0 : index
    %13 = vector.load %arg5[%c0_11, %c0_12] : memref<1x128xf32, #tpu.memory_space<vmem>>, vector<1x128xf32>
    %14 = vector.broadcast %13 : vector<1x128xf32> to vector<8x128xf32>
    %15 = arith.addf %12, %14 : vector<8x128xf32>
    %c0_13 = arith.constant 0 : index
    %16 = memref.load %arg0[%c0_13] : memref<64xi32, #tpu.memory_space<smem>>
    %17 = arith.index_cast %16 : i32 to index
    %c0_14 = arith.constant 0 : index
    %18 = vector.load %arg6[%17, %c0_14] : memref<100x128xf32, #tpu.memory_space<vmem>>, vector<1x128xf32>
    %c0_15 = arith.constant 0 : index
    %c0_16 = arith.constant 0 : index
    %19 = vector.load %arg20[%c0_15, %c0_16] : memref<64x128xf32, #tpu.memory_space<vmem>>, vector<1x128xf32>
    tpu.vector_store %arg20[%c0_15, %c0_16], %18 {strides = array<i32>} : memref<64x128xf32, #tpu.memory_space<vmem>>, vector<1x128xf32>,
    %c1 = arith.constant 1 : index
    %20 = memref.load %arg0[%c1] : memref<64xi32, #tpu.memory_space<smem>>
    %21 = arith.index_cast %20 : i32 to index
    %c0_17 = arith.constant 0 : index
    %22 = vector.load %arg6[%21, %c0_17] : memref<100x128xf32, #tpu.memory_space<vmem>>, vector<1x128xf32>
    %c1_18 = arith.constant 1 : index
    %c0_19 = arith.constant 0 : index
    %23 = vector.load %arg20[%c1_18, %c0_19] : memref<64x128xf32, #tpu.memory_space<vmem>>, vector<1x128xf32>
    tpu.vector_store %arg20[%c1_18, %c0_19], %22 {strides = array<i32>} : memref<64x128xf32, #tpu.memory_space<vmem>>, vector<1x128xf32>,
    %c2 = arith.constant 2 : index
    %24 = memref.load %arg0[%c2] : memref<64xi32, #tpu.memory_space<smem>>
    %25 = arith.index_cast %24 : i32 to index
    %c0_20 = arith.constant 0 : index
    %26 = vector.load %arg6[%25, %c0_20] : memref<100x128xf32, #tpu.memory_space<vmem>>, vector<1x128xf32>
    %c2_21 = arith.constant 2 : index
    %c0_22 = arith.constant 0 : index
    %27 = vector.load %arg20[%c2_21, %c0_22] : memref<64x128xf32, #tpu.memory_space<vmem>>, vector<1x128xf32>
    tpu.vector_store %arg20[%c2_21, %c0_22], %26 {strides = array<i32>} : memref<64x128xf32, #tpu.memory_space<vmem>>, vector<1x128xf32>,
    %c3 = arith.constant 3 : index
    %28 = memref.load %arg0[%c3] : memref<64xi32, #tpu.memory_space<smem>>
    %29 = arith.index_cast %28 : i32 to index
    %c0_23 = arith.constant 0 : index
    %30 = vector.load %arg6[%29, %c0_23] : memref<100x128xf32, #tpu.memory_space<vmem>>, vector<1x128xf32>
    %c3_24 = arith.constant 3 : index
    %c0_25 = arith.constant 0 : index
    %31 = vector.load %arg20[%c3_24, %c0_25] : memref<64x128xf32, #tpu.memory_space<vmem>>, vector<1x128xf32>
    tpu.vector_store %arg20[%c3_24, %c0_25], %30 {strides = array<i32>} : memref<64x128xf32, #tpu.memory_space<vmem>>, vector<1x128xf32>,
    %c4 = arith.constant 4 : index
    %32 = memref.load %arg0[%c4] : memref<64xi32, #tpu.memory_space<smem>>
    %33 = arith.index_cast %32 : i32 to index
    %c0_26 = arith.constant 0 : index
    %34 = vector.load %arg6[%33, %c0_26] : memref<100x128xf32, #tpu.memory_space<vmem>>, vector<1x128xf32>
    %c4_27 = arith.constant 4 : index
    %c0_28 = arith.constant 0 : index
    %35 = vector.load %arg20[%c4_27, %c0_28] : memref<64x128xf32, #tpu.memory_space<vmem>>, vector<1x128xf32>
    tpu.vector_store %arg20[%c4_27, %c0_28], %34 {strides = array<i32>} : memref<64x128xf32, #tpu.memory_space<vmem>>, vector<1x128xf32>,
    %c5 = arith.constant 5 : index
    %36 = memref.load %arg0[%c5] : memref<64xi32, #tpu.memory_space<smem>>
    %37 = arith.index_cast %36 : i32 to index
    %c0_29 = arith.constant 0 : index
    %38 = vector.load %arg6[%37, %c0_29] : memref<100x128xf32, #tpu.memory_space<vmem>>, vector<1x128xf32>
    %c5_30 = arith.constant 5 : index
    %c0_31 = arith.constant 0 : index
    %39 = vector.load %arg20[%c5_30, %c0_31] : memref<64x128xf32, #tpu.memory_space<vmem>>, vector<1x128xf32>
    tpu.vector_store %arg20[%c5_30, %c0_31], %38 {strides = array<i32>} : memref<64x128xf32, #tpu.memory_space<vmem>>, vector<1x128xf32>,
    %c6 = arith.constant 6 : index
    %40 = memref.load %arg0[%c6] : memref<64xi32, #tpu.memory_space<smem>>
    %41 = arith.index_cast %40 : i32 to index
    %c0_32 = arith.constant 0 : index
    %42 = vector.load %arg6[%41, %c0_32] : memref<100x128xf32, #tpu.memory_space<vmem>>, vector<1x128xf32>
    %c6_33 = arith.constant 6 : index
    %c0_34 = arith.constant 0 : index
    %43 = vector.load %arg20[%c6_33, %c0_34] : memref<64x128xf32, #tpu.memory_space<vmem>>, vector<1x128xf32>
    tpu.vector_store %arg20[%c6_33, %c0_34], %42 {strides = array<i32>} : memref<64x128xf32, #tpu.memory_space<vmem>>, vector<1x128xf32>,
    %c7 = arith.constant 7 : index
    %44 = memref.load %arg0[%c7] : memref<64xi32, #tpu.memory_space<smem>>
    %45 = arith.index_cast %44 : i32 to index
    %c0_35 = arith.constant 0 : index
    %46 = vector.load %arg6[%45, %c0_35] : memref<100x128xf32, #tpu.memory_space<vmem>>, vector<1x128xf32>
    %c7_36 = arith.constant 7 : index
    %c0_37 = arith.constant 0 : index
    %47 = vector.load %arg20[%c7_36, %c0_37] : memref<64x128xf32, #tpu.memory_space<vmem>>, vector<1x128xf32>
    tpu.vector_store %arg20[%c7_36, %c0_37], %46 {strides = array<i32>} : memref<64x128xf32, #tpu.memory_space<vmem>>, vector<1x128xf32>,
    %c8 = arith.constant 8 : index
    %48 = memref.load %arg0[%c8] : memref<64xi32, #tpu.memory_space<smem>>
    %49 = arith.index_cast %48 : i32 to index
    %c0_38 = arith.constant 0 : index
    %50 = vector.load %arg6[%49, %c0_38] : memref<100x128xf32, #tpu.memory_space<vmem>>, vector<1x128xf32>
    %c8_39 = arith.constant 8 : index
    %c0_40 = arith.constant 0 : index
    %51 = vector.load %arg20[%c8_39, %c0_40] : memref<64x128xf32, #tpu.memory_space<vmem>>, vector<1x128xf32>
    tpu.vector_store %arg20[%c8_39, %c0_40], %50 {strides = array<i32>} : memref<64x128xf32, #tpu.memory_space<vmem>>, vector<1x128xf32>,
    %c9 = arith.constant 9 : index
    %52 = memref.load %arg0[%c9] : memref<64xi32, #tpu.memory_space<smem>>
    %53 = arith.index_cast %52 : i32 to index
    %c0_41 = arith.constant 0 : index
    %54 = vector.load %arg6[%53, %c0_41] : memref<100x128xf32, #tpu.memory_space<vmem>>, vector<1x128xf32>
    %c9_42 = arith.constant 9 : index
    %c0_43 = arith.constant 0 : index
    %55 = vector.load %arg20[%c9_42, %c0_43] : memref<64x128xf32, #tpu.memory_space<vmem>>, vector<1x128xf32>
    tpu.vector_store %arg20[%c9_42, %c0_43], %54 {strides = array<i32>} : memref<64x128xf32, #tpu.memory_space<vmem>>, vector<1x128xf32>,
    %c10 = arith.constant 10 : index
    %56 = memref.load %arg0[%c10] : memref<64xi32, #tpu.memory_space<smem>>
    %57 = arith.index_cast %56 : i32 to index
    %c0_44 = arith.constant 0 : index
    %58 = vector.load %arg6[%57, %c0_44] : memref<100x128xf32, #tpu.memory_space<vmem>>, vector<1x128xf32>
    %c10_45 = arith.constant 10 : index
    %c0_46 = arith.constant 0 : index
    %59 = vector.load %arg20[%c10_45, %c0_46] : memref<64x128xf32, #tpu.memory_space<vmem>>, vector<1x128xf32>
    tpu.vector_store %arg20[%c10_45, %c0_46], %58 {strides = array<i32>} : memref<64x128xf32, #tpu.memory_space<vmem>>, vector<1x128xf32>,
    %c11 = arith.constant 11 : index
    %60 = memref.load %arg0[%c11] : memref<64xi32, #tpu.memory_space<smem>>
    %61 = arith.index_cast %60 : i32 to index
    %c0_47 = arith.constant 0 : index
    %62 = vector.load %arg6[%61, %c0_47] : memref<100x128xf32, #tpu.memory_space<vmem>>, vector<1x128xf32>
    %c11_48 = arith.constant 11 : index
    %c0_49 = arith.constant 0 : index
    %63 = vector.load %arg20[%c11_48, %c0_49] : memref<64x128xf32, #tpu.memory_space<vmem>>, vector<1x128xf32>
    tpu.vector_store %arg20[%c11_48, %c0_49], %62 {strides = array<i32>} : memref<64x128xf32, #tpu.memory_space<vmem>>, vector<1x128xf32>,
    %c12 = arith.constant 12 : index
    %64 = memref.load %arg0[%c12] : memref<64xi32, #tpu.memory_space<smem>>
    %65 = arith.index_cast %64 : i32 to index
    %c0_50 = arith.constant 0 : index
    %66 = vector.load %arg6[%65, %c0_50] : memref<100x128xf32, #tpu.memory_space<vmem>>, vector<1x128xf32>
    %c12_51 = arith.constant 12 : index
    %c0_52 = arith.constant 0 : index
    %67 = vector.load %arg20[%c12_51, %c0_52] : memref<64x128xf32, #tpu.memory_space<vmem>>, vector<1x128xf32>
    tpu.vector_store %arg20[%c12_51, %c0_52], %66 {strides = array<i32>} : memref<64x128xf32, #tpu.memory_space<vmem>>, vector<1x128xf32>,
    %c13 = arith.constant 13 : index
    %68 = memref.load %arg0[%c13] : memref<64xi32, #tpu.memory_space<smem>>
    %69 = arith.index_cast %68 : i32 to index
    %c0_53 = arith.constant 0 : index
    %70 = vector.load %arg6[%69, %c0_53] : memref<100x128xf32, #tpu.memory_space<vmem>>, vector<1x128xf32>
    %c13_54 = arith.constant 13 : index
    %c0_55 = arith.constant 0 : index
    %71 = vector.load %arg20[%c13_54, %c0_55] : memref<64x128xf32, #tpu.memory_space<vmem>>, vector<1x128xf32>
    tpu.vector_store %arg20[%c13_54, %c0_55], %70 {strides = array<i32>} : memref<64x128xf32, #tpu.memory_space<vmem>>, vector<1x128xf32>,
    %c14 = arith.constant 14 : index
    %72 = memref.load %arg0[%c14] : memref<64xi32, #tpu.memory_space<smem>>
    %73 = arith.index_cast %72 : i32 to index
    %c0_56 = arith.constant 0 : index
    %74 = vector.load %arg6[%73, %c0_56] : memref<100x128xf32, #tpu.memory_space<vmem>>, vector<1x128xf32>
    %c14_57 = arith.constant 14 : index
    %c0_58 = arith.constant 0 : index
    %75 = vector.load %arg20[%c14_57, %c0_58] : memref<64x128xf32, #tpu.memory_space<vmem>>, vector<1x128xf32>
    tpu.vector_store %arg20[%c14_57, %c0_58], %74 {strides = array<i32>} : memref<64x128xf32, #tpu.memory_space<vmem>>, vector<1x128xf32>,
    %c15 = arith.constant 15 : index
    %76 = memref.load %arg0[%c15] : memref<64xi32, #tpu.memory_space<smem>>
    %77 = arith.index_cast %76 : i32 to index
    %c0_59 = arith.constant 0 : index
    %78 = vector.load %arg6[%77, %c0_59] : memref<100x128xf32, #tpu.memory_space<vmem>>, vector<1x128xf32>
    %c15_60 = arith.constant 15 : index
    %c0_61 = arith.constant 0 : index
    %79 = vector.load %arg20[%c15_60, %c0_61] : memref<64x128xf32, #tpu.memory_space<vmem>>, vector<1x128xf32>
    tpu.vector_store %arg20[%c15_60, %c0_61], %78 {strides = array<i32>} : memref<64x128xf32, #tpu.memory_space<vmem>>, vector<1x128xf32>,
    %c16 = arith.constant 16 : index
    %80 = memref.load %arg0[%c16] : memref<64xi32, #tpu.memory_space<smem>>
    %81 = arith.index_cast %80 : i32 to index
    %c0_62 = arith.constant 0 : index
    %82 = vector.load %arg6[%81, %c0_62] : memref<100x128xf32, #tpu.memory_space<vmem>>, vector<1x128xf32>
    %c16_63 = arith.constant 16 : index
    %c0_64 = arith.constant 0 : index
    %83 = vector.load %arg20[%c16_63, %c0_64] : memref<64x128xf32, #tpu.memory_space<vmem>>, vector<1x128xf32>
    tpu.vector_store %arg20[%c16_63, %c0_64], %82 {strides = array<i32>} : memref<64x128xf32, #tpu.memory_space<vmem>>, vector<1x128xf32>,
    %c17 = arith.constant 17 : index
    %84 = memref.load %arg0[%c17] : memref<64xi32, #tpu.memory_space<smem>>
    %85 = arith.index_cast %84 : i32 to index
    %c0_65 = arith.constant 0 : index
    %86 = vector.load %arg6[%85, %c0_65] : memref<100x128xf32, #tpu.memory_space<vmem>>, vector<1x128xf32>
    %c17_66 = arith.constant 17 : index
    %c0_67 = arith.constant 0 : index
    %87 = vector.load %arg20[%c17_66, %c0_67] : memref<64x128xf32, #tpu.memory_space<vmem>>, vector<1x128xf32>
    tpu.vector_store %arg20[%c17_66, %c0_67], %86 {strides = array<i32>} : memref<64x128xf32, #tpu.memory_space<vmem>>, vector<1x128xf32>,
    %c18 = arith.constant 18 : index
    %88 = memref.load %arg0[%c18] : memref<64xi32, #tpu.memory_space<smem>>
    %89 = arith.index_cast %88 : i32 to index
    %c0_68 = arith.constant 0 : index
    %90 = vector.load %arg6[%89, %c0_68] : memref<100x128xf32, #tpu.memory_space<vmem>>, vector<1x128xf32>
    %c18_69 = arith.constant 18 : index
    %c0_70 = arith.constant 0 : index
    %91 = vector.load %arg20[%c18_69, %c0_70] : memref<64x128xf32, #tpu.memory_space<vmem>>, vector<1x128xf32>
    tpu.vector_store %arg20[%c18_69, %c0_70], %90 {strides = array<i32>} : memref<64x128xf32, #tpu.memory_space<vmem>>, vector<1x128xf32>,
    %c19 = arith.constant 19 : index
    %92 = memref.load %arg0[%c19] : memref<64xi32, #tpu.memory_space<smem>>
    %93 = arith.index_cast %92 : i32 to index
    %c0_71 = arith.constant 0 : index
    %94 = vector.load %arg6[%93, %c0_71] : memref<100x128xf32, #tpu.memory_space<vmem>>, vector<1x128xf32>
    %c19_72 = arith.constant 19 : index
    %c0_73 = arith.constant 0 : index
    %95 = vector.load %arg20[%c19_72, %c0_73] : memref<64x128xf32, #tpu.memory_space<vmem>>, vector<1x128xf32>
    tpu.vector_store %arg20[%c19_72, %c0_73], %94 {strides = array<i32>} : memref<64x128xf32, #tpu.memory_space<vmem>>, vector<1x128xf32>,
    %c20 = arith.constant 20 : index
    %96 = memref.load %arg0[%c20] : memref<64xi32, #tpu.memory_space<smem>>
    %97 = arith.index_cast %96 : i32 to index
    %c0_74 = arith.constant 0 : index
    %98 = vector.load %arg6[%97, %c0_74] : memref<100x128xf32, #tpu.memory_space<vmem>>, vector<1x128xf32>
    %c20_75 = arith.constant 20 : index
    %c0_76 = arith.constant 0 : index
    %99 = vector.load %arg20[%c20_75, %c0_76] : memref<64x128xf32, #tpu.memory_space<vmem>>, vector<1x128xf32>
    tpu.vector_store %arg20[%c20_75, %c0_76], %98 {strides = array<i32>} : memref<64x128xf32, #tpu.memory_space<vmem>>, vector<1x128xf32>,
    %c21 = arith.constant 21 : index
    %100 = memref.load %arg0[%c21] : memref<64xi32, #tpu.memory_space<smem>>
    %101 = arith.index_cast %100 : i32 to index
    %c0_77 = arith.constant 0 : index
    %102 = vector.load %arg6[%101, %c0_77] : memref<100x128xf32, #tpu.memory_space<vmem>>, vector<1x128xf32>
    %c21_78 = arith.constant 21 : index
    %c0_79 = arith.constant 0 : index
    %103 = vector.load %arg20[%c21_78, %c0_79] : memref<64x128xf32, #tpu.memory_space<vmem>>, vector<1x128xf32>
    tpu.vector_store %arg20[%c21_78, %c0_79], %102 {strides = array<i32>} : memref<64x128xf32, #tpu.memory_space<vmem>>, vector<1x128xf32>,
    %c22 = arith.constant 22 : index
    %104 = memref.load %arg0[%c22] : memref<64xi32, #tpu.memory_space<smem>>
    %105 = arith.index_cast %104 : i32 to index
    %c0_80 = arith.constant 0 : index
    %106 = vector.load %arg6[%105, %c0_80] : memref<100x128xf32, #tpu.memory_space<vmem>>, vector<1x128xf32>
    %c22_81 = arith.constant 22 : index
    %c0_82 = arith.constant 0 : index
    %107 = vector.load %arg20[%c22_81, %c0_82] : memref<64x128xf32, #tpu.memory_space<vmem>>, vector<1x128xf32>
    tpu.vector_store %arg20[%c22_81, %c0_82], %106 {strides = array<i32>} : memref<64x128xf32, #tpu.memory_space<vmem>>, vector<1x128xf32>,
    %c23 = arith.constant 23 : index
    %108 = memref.load %arg0[%c23] : memref<64xi32, #tpu.memory_space<smem>>
    %109 = arith.index_cast %108 : i32 to index
    %c0_83 = arith.constant 0 : index
    %110 = vector.load %arg6[%109, %c0_83] : memref<100x128xf32, #tpu.memory_space<vmem>>, vector<1x128xf32>
    %c23_84 = arith.constant 23 : index
    %c0_85 = arith.constant 0 : index
    %111 = vector.load %arg20[%c23_84, %c0_85] : memref<64x128xf32, #tpu.memory_space<vmem>>, vector<1x128xf32>
    tpu.vector_store %arg20[%c23_84, %c0_85], %110 {strides = array<i32>} : memref<64x128xf32, #tpu.memory_space<vmem>>, vector<1x128xf32>,
    %c24 = arith.constant 24 : index
    %112 = memref.load %arg0[%c24] : memref<64xi32, #tpu.memory_space<smem>>
    %113 = arith.index_cast %112 : i32 to index
    %c0_86 = arith.constant 0 : index
    %114 = vector.load %arg6[%113, %c0_86] : memref<100x128xf32, #tpu.memory_space<vmem>>, vector<1x128xf32>
    %c24_87 = arith.constant 24 : index
    %c0_88 = arith.constant 0 : index
    %115 = vector.load %arg20[%c24_87, %c0_88] : memref<64x128xf32, #tpu.memory_space<vmem>>, vector<1x128xf32>
    tpu.vector_store %arg20[%c24_87, %c0_88], %114 {strides = array<i32>} : memref<64x128xf32, #tpu.memory_space<vmem>>, vector<1x128xf32>,
    %c25 = arith.constant 25 : index
    %116 = memref.load %arg0[%c25] : memref<64xi32, #tpu.memory_space<smem>>
    %117 = arith.index_cast %116 : i32 to index
    %c0_89 = arith.constant 0 : index
    %118 = vector.load %arg6[%117, %c0_89] : memref<100x128xf32, #tpu.memory_space<vmem>>, vector<1x128xf32>
    %c25_90 = arith.constant 25 : index
    %c0_91 = arith.constant 0 : index
    %119 = vector.load %arg20[%c25_90, %c0_91] : memref<64x128xf32, #tpu.memory_space<vmem>>, vector<1x128xf32>
    tpu.vector_store %arg20[%c25_90, %c0_91], %118 {strides = array<i32>} : memref<64x128xf32, #tpu.memory_space<vmem>>, vector<1x128xf32>,
    %c26 = arith.constant 26 : index
    %120 = memref.load %arg0[%c26] : memref<64xi32, #tpu.memory_space<smem>>
    %121 = arith.index_cast %120 : i32 to index
    %c0_92 = arith.constant 0 : index
    %122 = vector.load %arg6[%121, %c0_92] : memref<100x128xf32, #tpu.memory_space<vmem>>, vector<1x128xf32>
    %c26_93 = arith.constant 26 : index
    %c0_94 = arith.constant 0 : index
    %123 = vector.load %arg20[%c26_93, %c0_94] : memref<64x128xf32, #tpu.memory_space<vmem>>, vector<1x128xf32>
    tpu.vector_store %arg20[%c26_93, %c0_94], %122 {strides = array<i32>} : memref<64x128xf32, #tpu.memory_space<vmem>>, vector<1x128xf32>,
    %c27 = arith.constant 27 : index
    %124 = memref.load %arg0[%c27] : memref<64xi32, #tpu.memory_space<smem>>
    %125 = arith.index_cast %124 : i32 to index
    %c0_95 = arith.constant 0 : index
    %126 = vector.load %arg6[%125, %c0_95] : memref<100x128xf32, #tpu.memory_space<vmem>>, vector<1x128xf32>
    %c27_96 = arith.constant 27 : index
    %c0_97 = arith.constant 0 : index
    %127 = vector.load %arg20[%c27_96, %c0_97] : memref<64x128xf32, #tpu.memory_space<vmem>>, vector<1x128xf32>
    tpu.vector_store %arg20[%c27_96, %c0_97], %126 {strides = array<i32>} : memref<64x128xf32, #tpu.memory_space<vmem>>, vector<1x128xf32>,
    %c28 = arith.constant 28 : index
    %128 = memref.load %arg0[%c28] : memref<64xi32, #tpu.memory_space<smem>>
    %129 = arith.index_cast %128 : i32 to index
    %c0_98 = arith.constant 0 : index
    %130 = vector.load %arg6[%129, %c0_98] : memref<100x128xf32, #tpu.memory_space<vmem>>, vector<1x128xf32>
    %c28_99 = arith.constant 28 : index
    %c0_100 = arith.constant 0 : index
    %131 = vector.load %arg20[%c28_99, %c0_100] : memref<64x128xf32, #tpu.memory_space<vmem>>, vector<1x128xf32>
    tpu.vector_store %arg20[%c28_99, %c0_100], %130 {strides = array<i32>} : memref<64x128xf32, #tpu.memory_space<vmem>>, vector<1x128xf32>,
    %c29 = arith.constant 29 : index
    %132 = memref.load %arg0[%c29] : memref<64xi32, #tpu.memory_space<smem>>
    %133 = arith.index_cast %132 : i32 to index
    %c0_101 = arith.constant 0 : index
    %134 = vector.load %arg6[%133, %c0_101] : memref<100x128xf32, #tpu.memory_space<vmem>>, vector<1x128xf32>
    %c29_102 = arith.constant 29 : index
    %c0_103 = arith.constant 0 : index
    %135 = vector.load %arg20[%c29_102, %c0_103] : memref<64x128xf32, #tpu.memory_space<vmem>>, vector<1x128xf32>
    tpu.vector_store %arg20[%c29_102, %c0_103], %134 {strides = array<i32>} : memref<64x128xf32, #tpu.memory_space<vmem>>, vector<1x128xf32>,
    %c30 = arith.constant 30 : index
    %136 = memref.load %arg0[%c30] : memref<64xi32, #tpu.memory_space<smem>>
    %137 = arith.index_cast %136 : i32 to index
    %c0_104 = arith.constant 0 : index
    %138 = vector.load %arg6[%137, %c0_104] : memref<100x128xf32, #tpu.memory_space<vmem>>, vector<1x128xf32>
    %c30_105 = arith.constant 30 : index
    %c0_106 = arith.constant 0 : index
    %139 = vector.load %arg20[%c30_105, %c0_106] : memref<64x128xf32, #tpu.memory_space<vmem>>, vector<1x128xf32>
    tpu.vector_store %arg20[%c30_105, %c0_106], %138 {strides = array<i32>} : memref<64x128xf32, #tpu.memory_space<vmem>>, vector<1x128xf32>,
    %c31 = arith.constant 31 : index
    %140 = memref.load %arg0[%c31] : memref<64xi32, #tpu.memory_space<smem>>
    %141 = arith.index_cast %140 : i32 to index
    %c0_107 = arith.constant 0 : index
    %142 = vector.load %arg6[%141, %c0_107] : memref<100x128xf32, #tpu.memory_space<vmem>>, vector<1x128xf32>
    %c31_108 = arith.constant 31 : index
    %c0_109 = arith.constant 0 : index
    %143 = vector.load %arg20[%c31_108, %c0_109] : memref<64x128xf32, #tpu.memory_space<vmem>>, vector<1x128xf32>
    tpu.vector_store %arg20[%c31_108, %c0_109], %142 {strides = array<i32>} : memref<64x128xf32, #tpu.memory_space<vmem>>, vector<1x128xf32>,
    %c32 = arith.constant 32 : index
    %144 = memref.load %arg0[%c32] : memref<64xi32, #tpu.memory_space<smem>>
    %145 = arith.index_cast %144 : i32 to index
    %c0_110 = arith.constant 0 : index
    %146 = vector.load %arg6[%145, %c0_110] : memref<100x128xf32, #tpu.memory_space<vmem>>, vector<1x128xf32>
    %c32_111 = arith.constant 32 : index
    %c0_112 = arith.constant 0 : index
    %147 = vector.load %arg20[%c32_111, %c0_112] : memref<64x128xf32, #tpu.memory_space<vmem>>, vector<1x128xf32>
    tpu.vector_store %arg20[%c32_111, %c0_112], %146 {strides = array<i32>} : memref<64x128xf32, #tpu.memory_space<vmem>>, vector<1x128xf32>,
    %c33 = arith.constant 33 : index
    %148 = memref.load %arg0[%c33] : memref<64xi32, #tpu.memory_space<smem>>
    %149 = arith.index_cast %148 : i32 to index
    %c0_113 = arith.constant 0 : index
    %150 = vector.load %arg6[%149, %c0_113] : memref<100x128xf32, #tpu.memory_space<vmem>>, vector<1x128xf32>
    %c33_114 = arith.constant 33 : index
    %c0_115 = arith.constant 0 : index
    %151 = vector.load %arg20[%c33_114, %c0_115] : memref<64x128xf32, #tpu.memory_space<vmem>>, vector<1x128xf32>
    tpu.vector_store %arg20[%c33_114, %c0_115], %150 {strides = array<i32>} : memref<64x128xf32, #tpu.memory_space<vmem>>, vector<1x128xf32>,
    %c34 = arith.constant 34 : index
    %152 = memref.load %arg0[%c34] : memref<64xi32, #tpu.memory_space<smem>>
    %153 = arith.index_cast %152 : i32 to index
    %c0_116 = arith.constant 0 : index
    %154 = vector.load %arg6[%153, %c0_116] : memref<100x128xf32, #tpu.memory_space<vmem>>, vector<1x128xf32>
    %c34_117 = arith.constant 34 : index
    %c0_118 = arith.constant 0 : index
    %155 = vector.load %arg20[%c34_117, %c0_118] : memref<64x128xf32, #tpu.memory_space<vmem>>, vector<1x128xf32>
    tpu.vector_store %arg20[%c34_117, %c0_118], %154 {strides = array<i32>} : memref<64x128xf32, #tpu.memory_space<vmem>>, vector<1x128xf32>,
    %c35 = arith.constant 35 : index
    %156 = memref.load %arg0[%c35] : memref<64xi32, #tpu.memory_space<smem>>
    %157 = arith.index_cast %156 : i32 to index
    %c0_119 = arith.constant 0 : index
    %158 = vector.load %arg6[%157, %c0_119] : memref<100x128xf32, #tpu.memory_space<vmem>>, vector<1x128xf32>
    %c35_120 = arith.constant 35 : index
    %c0_121 = arith.constant 0 : index
    %159 = vector.load %arg20[%c35_120, %c0_121] : memref<64x128xf32, #tpu.memory_space<vmem>>, vector<1x128xf32>
    tpu.vector_store %arg20[%c35_120, %c0_121], %158 {strides = array<i32>} : memref<64x128xf32, #tpu.memory_space<vmem>>, vector<1x128xf32>,
    %c36 = arith.constant 36 : index
    %160 = memref.load %arg0[%c36] : memref<64xi32, #tpu.memory_space<smem>>
    %161 = arith.index_cast %160 : i32 to index
    %c0_122 = arith.constant 0 : index
    %162 = vector.load %arg6[%161, %c0_122] : memref<100x128xf32, #tpu.memory_space<vmem>>, vector<1x128xf32>
    %c36_123 = arith.constant 36 : index
    %c0_124 = arith.constant 0 : index
    %163 = vector.load %arg20[%c36_123, %c0_124] : memref<64x128xf32, #tpu.memory_space<vmem>>, vector<1x128xf32>
    tpu.vector_store %arg20[%c36_123, %c0_124], %162 {strides = array<i32>} : memref<64x128xf32, #tpu.memory_space<vmem>>, vector<1x128xf32>,
    %c37 = arith.constant 37 : index
    %164 = memref.load %arg0[%c37] : memref<64xi32, #tpu.memory_space<smem>>
    %165 = arith.index_cast %164 : i32 to index
    %c0_125 = arith.constant 0 : index
    %166 = vector.load %arg6[%165, %c0_125] : memref<100x128xf32, #tpu.memory_space<vmem>>, vector<1x128xf32>
    %c37_126 = arith.constant 37 : index
    %c0_127 = arith.constant 0 : index
    %167 = vector.load %arg20[%c37_126, %c0_127] : memref<64x128xf32, #tpu.memory_space<vmem>>, vector<1x128xf32>
    tpu.vector_store %arg20[%c37_126, %c0_127], %166 {strides = array<i32>} : memref<64x128xf32, #tpu.memory_space<vmem>>, vector<1x128xf32>,
    %c38 = arith.constant 38 : index
    %168 = memref.load %arg0[%c38] : memref<64xi32, #tpu.memory_space<smem>>
    %169 = arith.index_cast %168 : i32 to index
    %c0_128 = arith.constant 0 : index
    %170 = vector.load %arg6[%169, %c0_128] : memref<100x128xf32, #tpu.memory_space<vmem>>, vector<1x128xf32>
    %c38_129 = arith.constant 38 : index
    %c0_130 = arith.constant 0 : index
    %171 = vector.load %arg20[%c38_129, %c0_130] : memref<64x128xf32, #tpu.memory_space<vmem>>, vector<1x128xf32>
    tpu.vector_store %arg20[%c38_129, %c0_130], %170 {strides = array<i32>} : memref<64x128xf32, #tpu.memory_space<vmem>>, vector<1x128xf32>,
    %c39 = arith.constant 39 : index
    %172 = memref.load %arg0[%c39] : memref<64xi32, #tpu.memory_space<smem>>
    %173 = arith.index_cast %172 : i32 to index
    %c0_131 = arith.constant 0 : index
    %174 = vector.load %arg6[%173, %c0_131] : memref<100x128xf32, #tpu.memory_space<vmem>>, vector<1x128xf32>
    %c39_132 = arith.constant 39 : index
    %c0_133 = arith.constant 0 : index
    %175 = vector.load %arg20[%c39_132, %c0_133] : memref<64x128xf32, #tpu.memory_space<vmem>>, vector<1x128xf32>
    tpu.vector_store %arg20[%c39_132, %c0_133], %174 {strides = array<i32>} : memref<64x128xf32, #tpu.memory_space<vmem>>, vector<1x128xf32>,
    %c40 = arith.constant 40 : index
    %176 = memref.load %arg0[%c40] : memref<64xi32, #tpu.memory_space<smem>>
    %177 = arith.index_cast %176 : i32 to index
    %c0_134 = arith.constant 0 : index
    %178 = vector.load %arg6[%177, %c0_134] : memref<100x128xf32, #tpu.memory_space<vmem>>, vector<1x128xf32>
    %c40_135 = arith.constant 40 : index
    %c0_136 = arith.constant 0 : index
    %179 = vector.load %arg20[%c40_135, %c0_136] : memref<64x128xf32, #tpu.memory_space<vmem>>, vector<1x128xf32>
    tpu.vector_store %arg20[%c40_135, %c0_136], %178 {strides = array<i32>} : memref<64x128xf32, #tpu.memory_space<vmem>>, vector<1x128xf32>,
    %c41 = arith.constant 41 : index
    %180 = memref.load %arg0[%c41] : memref<64xi32, #tpu.memory_space<smem>>
    %181 = arith.index_cast %180 : i32 to index
    %c0_137 = arith.constant 0 : index
    %182 = vector.load %arg6[%181, %c0_137] : memref<100x128xf32, #tpu.memory_space<vmem>>, vector<1x128xf32>
    %c41_138 = arith.constant 41 : index
    %c0_139 = arith.constant 0 : index
    %183 = vector.load %arg20[%c41_138, %c0_139] : memref<64x128xf32, #tpu.memory_space<vmem>>, vector<1x128xf32>
    tpu.vector_store %arg20[%c41_138, %c0_139], %182 {strides = array<i32>} : memref<64x128xf32, #tpu.memory_space<vmem>>, vector<1x128xf32>,
    %c42 = arith.constant 42 : index
    %184 = memref.load %arg0[%c42] : memref<64xi32, #tpu.memory_space<smem>>
    %185 = arith.index_cast %184 : i32 to index
    %c0_140 = arith.constant 0 : index
    %186 = vector.load %arg6[%185, %c0_140] : memref<100x128xf32, #tpu.memory_space<vmem>>, vector<1x128xf32>
    %c42_141 = arith.constant 42 : index
    %c0_142 = arith.constant 0 : index
    %187 = vector.load %arg20[%c42_141, %c0_142] : memref<64x128xf32, #tpu.memory_space<vmem>>, vector<1x128xf32>
    tpu.vector_store %arg20[%c42_141, %c0_142], %186 {strides = array<i32>} : memref<64x128xf32, #tpu.memory_space<vmem>>, vector<1x128xf32>,
    %c43 = arith.constant 43 : index
    %188 = memref.load %arg0[%c43] : memref<64xi32, #tpu.memory_space<smem>>
    %189 = arith.index_cast %188 : i32 to index
    %c0_143 = arith.constant 0 : index
    %190 = vector.load %arg6[%189, %c0_143] : memref<100x128xf32, #tpu.memory_space<vmem>>, vector<1x128xf32>
    %c43_144 = arith.constant 43 : index
    %c0_145 = arith.constant 0 : index
    %191 = vector.load %arg20[%c43_144, %c0_145] : memref<64x128xf32, #tpu.memory_space<vmem>>, vector<1x128xf32>
    tpu.vector_store %arg20[%c43_144, %c0_145], %190 {strides = array<i32>} : memref<64x128xf32, #tpu.memory_space<vmem>>, vector<1x128xf32>,
    %c44 = arith.constant 44 : index
    %192 = memref.load %arg0[%c44] : memref<64xi32, #tpu.memory_space<smem>>
    %193 = arith.index_cast %192 : i32 to index
    %c0_146 = arith.constant 0 : index
    %194 = vector.load %arg6[%193, %c0_146] : memref<100x128xf32, #tpu.memory_space<vmem>>, vector<1x128xf32>
    %c44_147 = arith.constant 44 : index
    %c0_148 = arith.constant 0 : index
    %195 = vector.load %arg20[%c44_147, %c0_148] : memref<64x128xf32, #tpu.memory_space<vmem>>, vector<1x128xf32>
    tpu.vector_store %arg20[%c44_147, %c0_148], %194 {strides = array<i32>} : memref<64x128xf32, #tpu.memory_space<vmem>>, vector<1x128xf32>,
    %c45 = arith.constant 45 : index
    %196 = memref.load %arg0[%c45] : memref<64xi32, #tpu.memory_space<smem>>
    %197 = arith.index_cast %196 : i32 to index
    %c0_149 = arith.constant 0 : index
    %198 = vector.load %arg6[%197, %c0_149] : memref<100x128xf32, #tpu.memory_space<vmem>>, vector<1x128xf32>
    %c45_150 = arith.constant 45 : index
    %c0_151 = arith.constant 0 : index
    %199 = vector.load %arg20[%c45_150, %c0_151] : memref<64x128xf32, #tpu.memory_space<vmem>>, vector<1x128xf32>
    tpu.vector_store %arg20[%c45_150, %c0_151], %198 {strides = array<i32>} : memref<64x128xf32, #tpu.memory_space<vmem>>, vector<1x128xf32>,
    %c46 = arith.constant 46 : index
    %200 = memref.load %arg0[%c46] : memref<64xi32, #tpu.memory_space<smem>>
    %201 = arith.index_cast %200 : i32 to index
    %c0_152 = arith.constant 0 : index
    %202 = vector.load %arg6[%201, %c0_152] : memref<100x128xf32, #tpu.memory_space<vmem>>, vector<1x128xf32>
    %c46_153 = arith.constant 46 : index
    %c0_154 = arith.constant 0 : index
    %203 = vector.load %arg20[%c46_153, %c0_154] : memref<64x128xf32, #tpu.memory_space<vmem>>, vector<1x128xf32>
    tpu.vector_store %arg20[%c46_153, %c0_154], %202 {strides = array<i32>} : memref<64x128xf32, #tpu.memory_space<vmem>>, vector<1x128xf32>,
    %c47 = arith.constant 47 : index
    %204 = memref.load %arg0[%c47] : memref<64xi32, #tpu.memory_space<smem>>
    %205 = arith.index_cast %204 : i32 to index
    %c0_155 = arith.constant 0 : index
    %206 = vector.load %arg6[%205, %c0_155] : memref<100x128xf32, #tpu.memory_space<vmem>>, vector<1x128xf32>
    %c47_156 = arith.constant 47 : index
    %c0_157 = arith.constant 0 : index
    %207 = vector.load %arg20[%c47_156, %c0_157] : memref<64x128xf32, #tpu.memory_space<vmem>>, vector<1x128xf32>
    tpu.vector_store %arg20[%c47_156, %c0_157], %206 {strides = array<i32>} : memref<64x128xf32, #tpu.memory_space<vmem>>, vector<1x128xf32>,
    %c48 = arith.constant 48 : index
    %208 = memref.load %arg0[%c48] : memref<64xi32, #tpu.memory_space<smem>>
    %209 = arith.index_cast %208 : i32 to index
    %c0_158 = arith.constant 0 : index
    %210 = vector.load %arg6[%209, %c0_158] : memref<100x128xf32, #tpu.memory_space<vmem>>, vector<1x128xf32>
    %c48_159 = arith.constant 48 : index
    %c0_160 = arith.constant 0 : index
    %211 = vector.load %arg20[%c48_159, %c0_160] : memref<64x128xf32, #tpu.memory_space<vmem>>, vector<1x128xf32>
    tpu.vector_store %arg20[%c48_159, %c0_160], %210 {strides = array<i32>} : memref<64x128xf32, #tpu.memory_space<vmem>>, vector<1x128xf32>,
    %c49 = arith.constant 49 : index
    %212 = memref.load %arg0[%c49] : memref<64xi32, #tpu.memory_space<smem>>
    %213 = arith.index_cast %212 : i32 to index
    %c0_161 = arith.constant 0 : index
    %214 = vector.load %arg6[%213, %c0_161] : memref<100x128xf32, #tpu.memory_space<vmem>>, vector<1x128xf32>
    %c49_162 = arith.constant 49 : index
    %c0_163 = arith.constant 0 : index
    %215 = vector.load %arg20[%c49_162, %c0_163] : memref<64x128xf32, #tpu.memory_space<vmem>>, vector<1x128xf32>
    tpu.vector_store %arg20[%c49_162, %c0_163], %214 {strides = array<i32>} : memref<64x128xf32, #tpu.memory_space<vmem>>, vector<1x128xf32>,
    %c50 = arith.constant 50 : index
    %216 = memref.load %arg0[%c50] : memref<64xi32, #tpu.memory_space<smem>>
    %217 = arith.index_cast %216 : i32 to index
    %c0_164 = arith.constant 0 : index
    %218 = vector.load %arg6[%217, %c0_164] : memref<100x128xf32, #tpu.memory_space<vmem>>, vector<1x128xf32>
    %c50_165 = arith.constant 50 : index
    %c0_166 = arith.constant 0 : index
    %219 = vector.load %arg20[%c50_165, %c0_166] : memref<64x128xf32, #tpu.memory_space<vmem>>, vector<1x128xf32>
    tpu.vector_store %arg20[%c50_165, %c0_166], %218 {strides = array<i32>} : memref<64x128xf32, #tpu.memory_space<vmem>>, vector<1x128xf32>,
    %c51 = arith.constant 51 : index
    %220 = memref.load %arg0[%c51] : memref<64xi32, #tpu.memory_space<smem>>
    %221 = arith.index_cast %220 : i32 to index
    %c0_167 = arith.constant 0 : index
    %222 = vector.load %arg6[%221, %c0_167] : memref<100x128xf32, #tpu.memory_space<vmem>>, vector<1x128xf32>
    %c51_168 = arith.constant 51 : index
    %c0_169 = arith.constant 0 : index
    %223 = vector.load %arg20[%c51_168, %c0_169] : memref<64x128xf32, #tpu.memory_space<vmem>>, vector<1x128xf32>
    tpu.vector_store %arg20[%c51_168, %c0_169], %222 {strides = array<i32>} : memref<64x128xf32, #tpu.memory_space<vmem>>, vector<1x128xf32>,
    %c52 = arith.constant 52 : index
    %224 = memref.load %arg0[%c52] : memref<64xi32, #tpu.memory_space<smem>>
    %225 = arith.index_cast %224 : i32 to index
    %c0_170 = arith.constant 0 : index
    %226 = vector.load %arg6[%225, %c0_170] : memref<100x128xf32, #tpu.memory_space<vmem>>, vector<1x128xf32>
    %c52_171 = arith.constant 52 : index
    %c0_172 = arith.constant 0 : index
    %227 = vector.load %arg20[%c52_171, %c0_172] : memref<64x128xf32, #tpu.memory_space<vmem>>, vector<1x128xf32>
    tpu.vector_store %arg20[%c52_171, %c0_172], %226 {strides = array<i32>} : memref<64x128xf32, #tpu.memory_space<vmem>>, vector<1x128xf32>,
    %c53 = arith.constant 53 : index
    %228 = memref.load %arg0[%c53] : memref<64xi32, #tpu.memory_space<smem>>
    %229 = arith.index_cast %228 : i32 to index
    %c0_173 = arith.constant 0 : index
    %230 = vector.load %arg6[%229, %c0_173] : memref<100x128xf32, #tpu.memory_space<vmem>>, vector<1x128xf32>
    %c53_174 = arith.constant 53 : index
    %c0_175 = arith.constant 0 : index
    %231 = vector.load %arg20[%c53_174, %c0_175] : memref<64x128xf32, #tpu.memory_space<vmem>>, vector<1x128xf32>
    tpu.vector_store %arg20[%c53_174, %c0_175], %230 {strides = array<i32>} : memref<64x128xf32, #tpu.memory_space<vmem>>, vector<1x128xf32>,
    %c54 = arith.constant 54 : index
    %232 = memref.load %arg0[%c54] : memref<64xi32, #tpu.memory_space<smem>>
    %233 = arith.index_cast %232 : i32 to index
    %c0_176 = arith.constant 0 : index
    %234 = vector.load %arg6[%233, %c0_176] : memref<100x128xf32, #tpu.memory_space<vmem>>, vector<1x128xf32>
    %c54_177 = arith.constant 54 : index
    %c0_178 = arith.constant 0 : index
    %235 = vector.load %arg20[%c54_177, %c0_178] : memref<64x128xf32, #tpu.memory_space<vmem>>, vector<1x128xf32>
    tpu.vector_store %arg20[%c54_177, %c0_178], %234 {strides = array<i32>} : memref<64x128xf32, #tpu.memory_space<vmem>>, vector<1x128xf32>,
    %c55 = arith.constant 55 : index
    %236 = memref.load %arg0[%c55] : memref<64xi32, #tpu.memory_space<smem>>
    %237 = arith.index_cast %236 : i32 to index
    %c0_179 = arith.constant 0 : index
    %238 = vector.load %arg6[%237, %c0_179] : memref<100x128xf32, #tpu.memory_space<vmem>>, vector<1x128xf32>
    %c55_180 = arith.constant 55 : index
    %c0_181 = arith.constant 0 : index
    %239 = vector.load %arg20[%c55_180, %c0_181] : memref<64x128xf32, #tpu.memory_space<vmem>>, vector<1x128xf32>
    tpu.vector_store %arg20[%c55_180, %c0_181], %238 {strides = array<i32>} : memref<64x128xf32, #tpu.memory_space<vmem>>, vector<1x128xf32>,
    %c56 = arith.constant 56 : index
    %240 = memref.load %arg0[%c56] : memref<64xi32, #tpu.memory_space<smem>>
    %241 = arith.index_cast %240 : i32 to index
    %c0_182 = arith.constant 0 : index
    %242 = vector.load %arg6[%241, %c0_182] : memref<100x128xf32, #tpu.memory_space<vmem>>, vector<1x128xf32>
    %c56_183 = arith.constant 56 : index
    %c0_184 = arith.constant 0 : index
    %243 = vector.load %arg20[%c56_183, %c0_184] : memref<64x128xf32, #tpu.memory_space<vmem>>, vector<1x128xf32>
    tpu.vector_store %arg20[%c56_183, %c0_184], %242 {strides = array<i32>} : memref<64x128xf32, #tpu.memory_space<vmem>>, vector<1x128xf32>,
    %c57 = arith.constant 57 : index
    %244 = memref.load %arg0[%c57] : memref<64xi32, #tpu.memory_space<smem>>
    %245 = arith.index_cast %244 : i32 to index
    %c0_185 = arith.constant 0 : index
    %246 = vector.load %arg6[%245, %c0_185] : memref<100x128xf32, #tpu.memory_space<vmem>>, vector<1x128xf32>
    %c57_186 = arith.constant 57 : index
    %c0_187 = arith.constant 0 : index
    %247 = vector.load %arg20[%c57_186, %c0_187] : memref<64x128xf32, #tpu.memory_space<vmem>>, vector<1x128xf32>
    tpu.vector_store %arg20[%c57_186, %c0_187], %246 {strides = array<i32>} : memref<64x128xf32, #tpu.memory_space<vmem>>, vector<1x128xf32>,
    %c58 = arith.constant 58 : index
    %248 = memref.load %arg0[%c58] : memref<64xi32, #tpu.memory_space<smem>>
    %249 = arith.index_cast %248 : i32 to index
    %c0_188 = arith.constant 0 : index
    %250 = vector.load %arg6[%249, %c0_188] : memref<100x128xf32, #tpu.memory_space<vmem>>, vector<1x128xf32>
    %c58_189 = arith.constant 58 : index
    %c0_190 = arith.constant 0 : index
    %251 = vector.load %arg20[%c58_189, %c0_190] : memref<64x128xf32, #tpu.memory_space<vmem>>, vector<1x128xf32>
    tpu.vector_store %arg20[%c58_189, %c0_190], %250 {strides = array<i32>} : memref<64x128xf32, #tpu.memory_space<vmem>>, vector<1x128xf32>,
    %c59 = arith.constant 59 : index
    %252 = memref.load %arg0[%c59] : memref<64xi32, #tpu.memory_space<smem>>
    %253 = arith.index_cast %252 : i32 to index
    %c0_191 = arith.constant 0 : index
    %254 = vector.load %arg6[%253, %c0_191] : memref<100x128xf32, #tpu.memory_space<vmem>>, vector<1x128xf32>
    %c59_192 = arith.constant 59 : index
    %c0_193 = arith.constant 0 : index
    %255 = vector.load %arg20[%c59_192, %c0_193] : memref<64x128xf32, #tpu.memory_space<vmem>>, vector<1x128xf32>
    tpu.vector_store %arg20[%c59_192, %c0_193], %254 {strides = array<i32>} : memref<64x128xf32, #tpu.memory_space<vmem>>, vector<1x128xf32>,
    %c60 = arith.constant 60 : index
    %256 = memref.load %arg0[%c60] : memref<64xi32, #tpu.memory_space<smem>>
    %257 = arith.index_cast %256 : i32 to index
    %c0_194 = arith.constant 0 : index
    %258 = vector.load %arg6[%257, %c0_194] : memref<100x128xf32, #tpu.memory_space<vmem>>, vector<1x128xf32>
    %c60_195 = arith.constant 60 : index
    %c0_196 = arith.constant 0 : index
    %259 = vector.load %arg20[%c60_195, %c0_196] : memref<64x128xf32, #tpu.memory_space<vmem>>, vector<1x128xf32>
    tpu.vector_store %arg20[%c60_195, %c0_196], %258 {strides = array<i32>} : memref<64x128xf32, #tpu.memory_space<vmem>>, vector<1x128xf32>,
    %c61 = arith.constant 61 : index
    %260 = memref.load %arg0[%c61] : memref<64xi32, #tpu.memory_space<smem>>
    %261 = arith.index_cast %260 : i32 to index
    %c0_197 = arith.constant 0 : index
    %262 = vector.load %arg6[%261, %c0_197] : memref<100x128xf32, #tpu.memory_space<vmem>>, vector<1x128xf32>
    %c61_198 = arith.constant 61 : index
    %c0_199 = arith.constant 0 : index
    %263 = vector.load %arg20[%c61_198, %c0_199] : memref<64x128xf32, #tpu.memory_space<vmem>>, vector<1x128xf32>
    tpu.vector_store %arg20[%c61_198, %c0_199], %262 {strides = array<i32>} : memref<64x128xf32, #tpu.memory_space<vmem>>, vector<1x128xf32>,
    %c62 = arith.constant 62 : index
    %264 = memref.load %arg0[%c62] : memref<64xi32, #tpu.memory_space<smem>>
    %265 = arith.index_cast %264 : i32 to index
    %c0_200 = arith.constant 0 : index
    %266 = vector.load %arg6[%265, %c0_200] : memref<100x128xf32, #tpu.memory_space<vmem>>, vector<1x128xf32>
    %c62_201 = arith.constant 62 : index
    %c0_202 = arith.constant 0 : index
    %267 = vector.load %arg20[%c62_201, %c0_202] : memref<64x128xf32, #tpu.memory_space<vmem>>, vector<1x128xf32>
    tpu.vector_store %arg20[%c62_201, %c0_202], %266 {strides = array<i32>} : memref<64x128xf32, #tpu.memory_space<vmem>>, vector<1x128xf32>,
    %c63 = arith.constant 63 : index
    %268 = memref.load %arg0[%c63] : memref<64xi32, #tpu.memory_space<smem>>
    %269 = arith.index_cast %268 : i32 to index
    %c0_203 = arith.constant 0 : index
    %270 = vector.load %arg6[%269, %c0_203] : memref<100x128xf32, #tpu.memory_space<vmem>>, vector<1x128xf32>
    %c63_204 = arith.constant 63 : index
    %c0_205 = arith.constant 0 : index
    %271 = vector.load %arg20[%c63_204, %c0_205] : memref<64x128xf32, #tpu.memory_space<vmem>>, vector<1x128xf32>
    tpu.vector_store %arg20[%c63_204, %c0_205], %270 {strides = array<i32>} : memref<64x128xf32, #tpu.memory_space<vmem>>, vector<1x128xf32>,
    %c0_206 = arith.constant 0 : index
    %c0_207 = arith.constant 0 : index
    %272 = vector.load %arg20[%c0_206, %c0_207] : memref<64x128xf32, #tpu.memory_space<vmem>>, vector<64x128xf32>
    %273 = math.tanh %272 : vector<64x128xf32>
    %c0_208 = arith.constant 0 : index
    %c0_209 = arith.constant 0 : index
    %274 = vector.load %arg8[%c0_208, %c0_209] : memref<128x512xbf16, #tpu.memory_space<vmem>>, vector<128x512xbf16>
    %275 = arith.truncf %273 : vector<64x128xf32> to vector<64x128xbf16>
    %c0_210 = arith.constant 0 : index
    %c0_211 = arith.constant 0 : index
    %276 = vector.load %arg7[%c0_210, %c0_211] : memref<128x512xbf16, #tpu.memory_space<vmem>>, vector<128x512xbf16>
    %cst_212 = arith.constant dense<0.000000e+00> : vector<64x512xf32>
    %277 = tpu.matmul %275, %276, %cst_212 {dimension_numbers = #tpu.dot_dimension_numbers<[1], [0], [0], [1], [0, 0, 1, 1], [], []>} : vector<64x128xbf16>, vector<128x512xbf16>, vector<64x512xf32> -> vector<64x512xf32>
    %c0_213 = arith.constant 0 : index
    %c0_214 = arith.constant 0 : index
    %278 = vector.load %arg9[%c0_213, %c0_214] : memref<1x512xf32, #tpu.memory_space<vmem>>, vector<1x512xf32>
    %279 = vector.broadcast %278 : vector<1x512xf32> to vector<64x512xf32>
    %280 = arith.addf %277, %279 : vector<64x512xf32>
    %281 = vector.shape_cast %280 : vector<64x512xf32> to vector<8x8x512xf32>
    %cst_215 = arith.constant 0.000000e+00 : f32
    %282 = vector.broadcast %cst_215 : f32 to vector<8x128xf32>
    %cst_216 = arith.constant 0.000000e+00 : f32
    %283 = vector.broadcast %cst_216 : f32 to vector<8x128xf32>
    %284 = vector.extract_strided_slice %281 {offsets = [0, 0, 0], sizes = [1, 8, 512], strides = [1, 1, 1]} : vector<8x8x512xf32> to vector<1x8x512xf32>
    %285 = vector.shape_cast %284 : vector<1x8x512xf32> to vector<8x512xf32>
    %286 = arith.truncf %282 : vector<8x128xf32> to vector<8x128xbf16>
    %cst_217 = arith.constant dense<0.000000e+00> : vector<8x512xf32>
    %287 = tpu.matmul %286, %274, %cst_217 {dimension_numbers = #tpu.dot_dimension_numbers<[1], [0], [0], [1], [0, 0, 1, 1], [], []>} : vector<8x128xbf16>, vector<128x512xbf16>, vector<8x512xf32> -> vector<8x512xf32>
    %288 = arith.addf %285, %287 : vector<8x512xf32>
    %289 = vector.extract_strided_slice %288 {offsets = [0, 0], sizes = [8, 128], strides = [1, 1]} : vector<8x512xf32> to vector<8x128xf32>
    %290 = arith.negf %289 : vector<8x128xf32>
    %291 = math.exp %290 : vector<8x128xf32>
    %cst_218 = arith.constant 1.000000e+00 : f32
    %292 = vector.broadcast %cst_218 : f32 to vector<8x128xf32>
    %293 = arith.addf %292, %291 : vector<8x128xf32>
    %294 = arith.divf %292, %293 : vector<8x128xf32>
    %295 = vector.extract_strided_slice %288 {offsets = [0, 128], sizes = [8, 128], strides = [1, 1]} : vector<8x512xf32> to vector<8x128xf32>
    %296 = arith.negf %295 : vector<8x128xf32>
    %297 = math.exp %296 : vector<8x128xf32>
    %cst_219 = arith.constant 1.000000e+00 : f32
    %298 = vector.broadcast %cst_219 : f32 to vector<8x128xf32>
    %299 = arith.addf %298, %297 : vector<8x128xf32>
    %300 = arith.divf %298, %299 : vector<8x128xf32>
    %301 = vector.extract_strided_slice %288 {offsets = [0, 256], sizes = [8, 128], strides = [1, 1]} : vector<8x512xf32> to vector<8x128xf32>
    %302 = math.tanh %301 : vector<8x128xf32>
    %303 = vector.extract_strided_slice %288 {offsets = [0, 384], sizes = [8, 128], strides = [1, 1]} : vector<8x512xf32> to vector<8x128xf32>
    %304 = arith.negf %303 : vector<8x128xf32>
    %305 = math.exp %304 : vector<8x128xf32>
    %cst_220 = arith.constant 1.000000e+00 : f32
    %306 = vector.broadcast %cst_220 : f32 to vector<8x128xf32>
    %307 = arith.addf %306, %305 : vector<8x128xf32>
    %308 = arith.divf %306, %307 : vector<8x128xf32>
    %309 = arith.mulf %300, %283 : vector<8x128xf32>
    %310 = arith.mulf %294, %302 : vector<8x128xf32>
    %311 = arith.addf %309, %310 : vector<8x128xf32>
    %312 = math.tanh %311 : vector<8x128xf32>
    %313 = arith.mulf %308, %312 : vector<8x128xf32>
    %c0_221 = arith.constant 0 : index
    %c0_222 = arith.constant 0 : index
    %c0_223 = arith.constant 0 : index
    %314 = vector.load %arg21[%c0_221, %c0_222, %c0_223] : memref<8x8x128xf32, #tpu.memory_space<vmem>>, vector<1x8x128xf32>
    %315 = vector.shape_cast %314 : vector<1x8x128xf32> to vector<8x128xf32>
    %316 = vector.shape_cast %313 : vector<8x128xf32> to vector<1x8x128xf32>
    tpu.vector_store %arg21[%c0_221, %c0_222, %c0_223], %316 {strides = array<i32>} : memref<8x8x128xf32, #tpu.memory_space<vmem>>, vector<1x8x128xf32>,
    %317 = vector.extract_strided_slice %281 {offsets = [1, 0, 0], sizes = [1, 8, 512], strides = [1, 1, 1]} : vector<8x8x512xf32> to vector<1x8x512xf32>
    %318 = vector.shape_cast %317 : vector<1x8x512xf32> to vector<8x512xf32>
    %319 = arith.truncf %313 : vector<8x128xf32> to vector<8x128xbf16>
    %cst_224 = arith.constant dense<0.000000e+00> : vector<8x512xf32>
    %320 = tpu.matmul %319, %274, %cst_224 {dimension_numbers = #tpu.dot_dimension_numbers<[1], [0], [0], [1], [0, 0, 1, 1], [], []>} : vector<8x128xbf16>, vector<128x512xbf16>, vector<8x512xf32> -> vector<8x512xf32>
    %321 = arith.addf %318, %320 : vector<8x512xf32>
    %322 = vector.extract_strided_slice %321 {offsets = [0, 0], sizes = [8, 128], strides = [1, 1]} : vector<8x512xf32> to vector<8x128xf32>
    %323 = arith.negf %322 : vector<8x128xf32>
    %324 = math.exp %323 : vector<8x128xf32>
    %cst_225 = arith.constant 1.000000e+00 : f32
    %325 = vector.broadcast %cst_225 : f32 to vector<8x128xf32>
    %326 = arith.addf %325, %324 : vector<8x128xf32>
    %327 = arith.divf %325, %326 : vector<8x128xf32>
    %328 = vector.extract_strided_slice %321 {offsets = [0, 128], sizes = [8, 128], strides = [1, 1]} : vector<8x512xf32> to vector<8x128xf32>
    %329 = arith.negf %328 : vector<8x128xf32>
    %330 = math.exp %329 : vector<8x128xf32>
    %cst_226 = arith.constant 1.000000e+00 : f32
    %331 = vector.broadcast %cst_226 : f32 to vector<8x128xf32>
    %332 = arith.addf %331, %330 : vector<8x128xf32>
    %333 = arith.divf %331, %332 : vector<8x128xf32>
    %334 = vector.extract_strided_slice %321 {offsets = [0, 256], sizes = [8, 128], strides = [1, 1]} : vector<8x512xf32> to vector<8x128xf32>
    %335 = math.tanh %334 : vector<8x128xf32>
    %336 = vector.extract_strided_slice %321 {offsets = [0, 384], sizes = [8, 128], strides = [1, 1]} : vector<8x512xf32> to vector<8x128xf32>
    %337 = arith.negf %336 : vector<8x128xf32>
    %338 = math.exp %337 : vector<8x128xf32>
    %cst_227 = arith.constant 1.000000e+00 : f32
    %339 = vector.broadcast %cst_227 : f32 to vector<8x128xf32>
    %340 = arith.addf %339, %338 : vector<8x128xf32>
    %341 = arith.divf %339, %340 : vector<8x128xf32>
    %342 = arith.mulf %333, %311 : vector<8x128xf32>
    %343 = arith.mulf %327, %335 : vector<8x128xf32>
    %344 = arith.addf %342, %343 : vector<8x128xf32>
    %345 = math.tanh %344 : vector<8x128xf32>
    %346 = arith.mulf %341, %345 : vector<8x128xf32>
    %c1_228 = arith.constant 1 : index
    %c0_229 = arith.constant 0 : index
    %c0_230 = arith.constant 0 : index
    %347 = vector.load %arg21[%c1_228, %c0_229, %c0_230] : memref<8x8x128xf32, #tpu.memory_space<vmem>>, vector<1x8x128xf32>
    %348 = vector.shape_cast %347 : vector<1x8x128xf32> to vector<8x128xf32>
    %349 = vector.shape_cast %346 : vector<8x128xf32> to vector<1x8x128xf32>
    tpu.vector_store %arg21[%c1_228, %c0_229, %c0_230], %349 {strides = array<i32>} : memref<8x8x128xf32, #tpu.memory_space<vmem>>, vector<1x8x128xf32>,
    %350 = vector.extract_strided_slice %281 {offsets = [2, 0, 0], sizes = [1, 8, 512], strides = [1, 1, 1]} : vector<8x8x512xf32> to vector<1x8x512xf32>
    %351 = vector.shape_cast %350 : vector<1x8x512xf32> to vector<8x512xf32>
    %352 = arith.truncf %346 : vector<8x128xf32> to vector<8x128xbf16>
    %cst_231 = arith.constant dense<0.000000e+00> : vector<8x512xf32>
    %353 = tpu.matmul %352, %274, %cst_231 {dimension_numbers = #tpu.dot_dimension_numbers<[1], [0], [0], [1], [0, 0, 1, 1], [], []>} : vector<8x128xbf16>, vector<128x512xbf16>, vector<8x512xf32> -> vector<8x512xf32>
    %354 = arith.addf %351, %353 : vector<8x512xf32>
    %355 = vector.extract_strided_slice %354 {offsets = [0, 0], sizes = [8, 128], strides = [1, 1]} : vector<8x512xf32> to vector<8x128xf32>
    %356 = arith.negf %355 : vector<8x128xf32>
    %357 = math.exp %356 : vector<8x128xf32>
    %cst_232 = arith.constant 1.000000e+00 : f32
    %358 = vector.broadcast %cst_232 : f32 to vector<8x128xf32>
    %359 = arith.addf %358, %357 : vector<8x128xf32>
    %360 = arith.divf %358, %359 : vector<8x128xf32>
    %361 = vector.extract_strided_slice %354 {offsets = [0, 128], sizes = [8, 128], strides = [1, 1]} : vector<8x512xf32> to vector<8x128xf32>
    %362 = arith.negf %361 : vector<8x128xf32>
    %363 = math.exp %362 : vector<8x128xf32>
    %cst_233 = arith.constant 1.000000e+00 : f32
    %364 = vector.broadcast %cst_233 : f32 to vector<8x128xf32>
    %365 = arith.addf %364, %363 : vector<8x128xf32>
    %366 = arith.divf %364, %365 : vector<8x128xf32>
    %367 = vector.extract_strided_slice %354 {offsets = [0, 256], sizes = [8, 128], strides = [1, 1]} : vector<8x512xf32> to vector<8x128xf32>
    %368 = math.tanh %367 : vector<8x128xf32>
    %369 = vector.extract_strided_slice %354 {offsets = [0, 384], sizes = [8, 128], strides = [1, 1]} : vector<8x512xf32> to vector<8x128xf32>
    %370 = arith.negf %369 : vector<8x128xf32>
    %371 = math.exp %370 : vector<8x128xf32>
    %cst_234 = arith.constant 1.000000e+00 : f32
    %372 = vector.broadcast %cst_234 : f32 to vector<8x128xf32>
    %373 = arith.addf %372, %371 : vector<8x128xf32>
    %374 = arith.divf %372, %373 : vector<8x128xf32>
    %375 = arith.mulf %366, %344 : vector<8x128xf32>
    %376 = arith.mulf %360, %368 : vector<8x128xf32>
    %377 = arith.addf %375, %376 : vector<8x128xf32>
    %378 = math.tanh %377 : vector<8x128xf32>
    %379 = arith.mulf %374, %378 : vector<8x128xf32>
    %c2_235 = arith.constant 2 : index
    %c0_236 = arith.constant 0 : index
    %c0_237 = arith.constant 0 : index
    %380 = vector.load %arg21[%c2_235, %c0_236, %c0_237] : memref<8x8x128xf32, #tpu.memory_space<vmem>>, vector<1x8x128xf32>
    %381 = vector.shape_cast %380 : vector<1x8x128xf32> to vector<8x128xf32>
    %382 = vector.shape_cast %379 : vector<8x128xf32> to vector<1x8x128xf32>
    tpu.vector_store %arg21[%c2_235, %c0_236, %c0_237], %382 {strides = array<i32>} : memref<8x8x128xf32, #tpu.memory_space<vmem>>, vector<1x8x128xf32>,
    %383 = vector.extract_strided_slice %281 {offsets = [3, 0, 0], sizes = [1, 8, 512], strides = [1, 1, 1]} : vector<8x8x512xf32> to vector<1x8x512xf32>
    %384 = vector.shape_cast %383 : vector<1x8x512xf32> to vector<8x512xf32>
    %385 = arith.truncf %379 : vector<8x128xf32> to vector<8x128xbf16>
    %cst_238 = arith.constant dense<0.000000e+00> : vector<8x512xf32>
    %386 = tpu.matmul %385, %274, %cst_238 {dimension_numbers = #tpu.dot_dimension_numbers<[1], [0], [0], [1], [0, 0, 1, 1], [], []>} : vector<8x128xbf16>, vector<128x512xbf16>, vector<8x512xf32> -> vector<8x512xf32>
    %387 = arith.addf %384, %386 : vector<8x512xf32>
    %388 = vector.extract_strided_slice %387 {offsets = [0, 0], sizes = [8, 128], strides = [1, 1]} : vector<8x512xf32> to vector<8x128xf32>
    %389 = arith.negf %388 : vector<8x128xf32>
    %390 = math.exp %389 : vector<8x128xf32>
    %cst_239 = arith.constant 1.000000e+00 : f32
    %391 = vector.broadcast %cst_239 : f32 to vector<8x128xf32>
    %392 = arith.addf %391, %390 : vector<8x128xf32>
    %393 = arith.divf %391, %392 : vector<8x128xf32>
    %394 = vector.extract_strided_slice %387 {offsets = [0, 128], sizes = [8, 128], strides = [1, 1]} : vector<8x512xf32> to vector<8x128xf32>
    %395 = arith.negf %394 : vector<8x128xf32>
    %396 = math.exp %395 : vector<8x128xf32>
    %cst_240 = arith.constant 1.000000e+00 : f32
    %397 = vector.broadcast %cst_240 : f32 to vector<8x128xf32>
    %398 = arith.addf %397, %396 : vector<8x128xf32>
    %399 = arith.divf %397, %398 : vector<8x128xf32>
    %400 = vector.extract_strided_slice %387 {offsets = [0, 256], sizes = [8, 128], strides = [1, 1]} : vector<8x512xf32> to vector<8x128xf32>
    %401 = math.tanh %400 : vector<8x128xf32>
    %402 = vector.extract_strided_slice %387 {offsets = [0, 384], sizes = [8, 128], strides = [1, 1]} : vector<8x512xf32> to vector<8x128xf32>
    %403 = arith.negf %402 : vector<8x128xf32>
    %404 = math.exp %403 : vector<8x128xf32>
    %cst_241 = arith.constant 1.000000e+00 : f32
    %405 = vector.broadcast %cst_241 : f32 to vector<8x128xf32>
    %406 = arith.addf %405, %404 : vector<8x128xf32>
    %407 = arith.divf %405, %406 : vector<8x128xf32>
    %408 = arith.mulf %399, %377 : vector<8x128xf32>
    %409 = arith.mulf %393, %401 : vector<8x128xf32>
    %410 = arith.addf %408, %409 : vector<8x128xf32>
    %411 = math.tanh %410 : vector<8x128xf32>
    %412 = arith.mulf %407, %411 : vector<8x128xf32>
    %c3_242 = arith.constant 3 : index
    %c0_243 = arith.constant 0 : index
    %c0_244 = arith.constant 0 : index
    %413 = vector.load %arg21[%c3_242, %c0_243, %c0_244] : memref<8x8x128xf32, #tpu.memory_space<vmem>>, vector<1x8x128xf32>
    %414 = vector.shape_cast %413 : vector<1x8x128xf32> to vector<8x128xf32>
    %415 = vector.shape_cast %412 : vector<8x128xf32> to vector<1x8x128xf32>
    tpu.vector_store %arg21[%c3_242, %c0_243, %c0_244], %415 {strides = array<i32>} : memref<8x8x128xf32, #tpu.memory_space<vmem>>, vector<1x8x128xf32>,
    %416 = vector.extract_strided_slice %281 {offsets = [4, 0, 0], sizes = [1, 8, 512], strides = [1, 1, 1]} : vector<8x8x512xf32> to vector<1x8x512xf32>
    %417 = vector.shape_cast %416 : vector<1x8x512xf32> to vector<8x512xf32>
    %418 = arith.truncf %412 : vector<8x128xf32> to vector<8x128xbf16>
    %cst_245 = arith.constant dense<0.000000e+00> : vector<8x512xf32>
    %419 = tpu.matmul %418, %274, %cst_245 {dimension_numbers = #tpu.dot_dimension_numbers<[1], [0], [0], [1], [0, 0, 1, 1], [], []>} : vector<8x128xbf16>, vector<128x512xbf16>, vector<8x512xf32> -> vector<8x512xf32>
    %420 = arith.addf %417, %419 : vector<8x512xf32>
    %421 = vector.extract_strided_slice %420 {offsets = [0, 0], sizes = [8, 128], strides = [1, 1]} : vector<8x512xf32> to vector<8x128xf32>
    %422 = arith.negf %421 : vector<8x128xf32>
    %423 = math.exp %422 : vector<8x128xf32>
    %cst_246 = arith.constant 1.000000e+00 : f32
    %424 = vector.broadcast %cst_246 : f32 to vector<8x128xf32>
    %425 = arith.addf %424, %423 : vector<8x128xf32>
    %426 = arith.divf %424, %425 : vector<8x128xf32>
    %427 = vector.extract_strided_slice %420 {offsets = [0, 128], sizes = [8, 128], strides = [1, 1]} : vector<8x512xf32> to vector<8x128xf32>
    %428 = arith.negf %427 : vector<8x128xf32>
    %429 = math.exp %428 : vector<8x128xf32>
    %cst_247 = arith.constant 1.000000e+00 : f32
    %430 = vector.broadcast %cst_247 : f32 to vector<8x128xf32>
    %431 = arith.addf %430, %429 : vector<8x128xf32>
    %432 = arith.divf %430, %431 : vector<8x128xf32>
    %433 = vector.extract_strided_slice %420 {offsets = [0, 256], sizes = [8, 128], strides = [1, 1]} : vector<8x512xf32> to vector<8x128xf32>
    %434 = math.tanh %433 : vector<8x128xf32>
    %435 = vector.extract_strided_slice %420 {offsets = [0, 384], sizes = [8, 128], strides = [1, 1]} : vector<8x512xf32> to vector<8x128xf32>
    %436 = arith.negf %435 : vector<8x128xf32>
    %437 = math.exp %436 : vector<8x128xf32>
    %cst_248 = arith.constant 1.000000e+00 : f32
    %438 = vector.broadcast %cst_248 : f32 to vector<8x128xf32>
    %439 = arith.addf %438, %437 : vector<8x128xf32>
    %440 = arith.divf %438, %439 : vector<8x128xf32>
    %441 = arith.mulf %432, %410 : vector<8x128xf32>
    %442 = arith.mulf %426, %434 : vector<8x128xf32>
    %443 = arith.addf %441, %442 : vector<8x128xf32>
    %444 = math.tanh %443 : vector<8x128xf32>
    %445 = arith.mulf %440, %444 : vector<8x128xf32>
    %c4_249 = arith.constant 4 : index
    %c0_250 = arith.constant 0 : index
    %c0_251 = arith.constant 0 : index
    %446 = vector.load %arg21[%c4_249, %c0_250, %c0_251] : memref<8x8x128xf32, #tpu.memory_space<vmem>>, vector<1x8x128xf32>
    %447 = vector.shape_cast %446 : vector<1x8x128xf32> to vector<8x128xf32>
    %448 = vector.shape_cast %445 : vector<8x128xf32> to vector<1x8x128xf32>
    tpu.vector_store %arg21[%c4_249, %c0_250, %c0_251], %448 {strides = array<i32>} : memref<8x8x128xf32, #tpu.memory_space<vmem>>, vector<1x8x128xf32>,
    %449 = vector.extract_strided_slice %281 {offsets = [5, 0, 0], sizes = [1, 8, 512], strides = [1, 1, 1]} : vector<8x8x512xf32> to vector<1x8x512xf32>
    %450 = vector.shape_cast %449 : vector<1x8x512xf32> to vector<8x512xf32>
    %451 = arith.truncf %445 : vector<8x128xf32> to vector<8x128xbf16>
    %cst_252 = arith.constant dense<0.000000e+00> : vector<8x512xf32>
    %452 = tpu.matmul %451, %274, %cst_252 {dimension_numbers = #tpu.dot_dimension_numbers<[1], [0], [0], [1], [0, 0, 1, 1], [], []>} : vector<8x128xbf16>, vector<128x512xbf16>, vector<8x512xf32> -> vector<8x512xf32>
    %453 = arith.addf %450, %452 : vector<8x512xf32>
    %454 = vector.extract_strided_slice %453 {offsets = [0, 0], sizes = [8, 128], strides = [1, 1]} : vector<8x512xf32> to vector<8x128xf32>
    %455 = arith.negf %454 : vector<8x128xf32>
    %456 = math.exp %455 : vector<8x128xf32>
    %cst_253 = arith.constant 1.000000e+00 : f32
    %457 = vector.broadcast %cst_253 : f32 to vector<8x128xf32>
    %458 = arith.addf %457, %456 : vector<8x128xf32>
    %459 = arith.divf %457, %458 : vector<8x128xf32>
    %460 = vector.extract_strided_slice %453 {offsets = [0, 128], sizes = [8, 128], strides = [1, 1]} : vector<8x512xf32> to vector<8x128xf32>
    %461 = arith.negf %460 : vector<8x128xf32>
    %462 = math.exp %461 : vector<8x128xf32>
    %cst_254 = arith.constant 1.000000e+00 : f32
    %463 = vector.broadcast %cst_254 : f32 to vector<8x128xf32>
    %464 = arith.addf %463, %462 : vector<8x128xf32>
    %465 = arith.divf %463, %464 : vector<8x128xf32>
    %466 = vector.extract_strided_slice %453 {offsets = [0, 256], sizes = [8, 128], strides = [1, 1]} : vector<8x512xf32> to vector<8x128xf32>
    %467 = math.tanh %466 : vector<8x128xf32>
    %468 = vector.extract_strided_slice %453 {offsets = [0, 384], sizes = [8, 128], strides = [1, 1]} : vector<8x512xf32> to vector<8x128xf32>
    %469 = arith.negf %468 : vector<8x128xf32>
    %470 = math.exp %469 : vector<8x128xf32>
    %cst_255 = arith.constant 1.000000e+00 : f32
    %471 = vector.broadcast %cst_255 : f32 to vector<8x128xf32>
    %472 = arith.addf %471, %470 : vector<8x128xf32>
    %473 = arith.divf %471, %472 : vector<8x128xf32>
    %474 = arith.mulf %465, %443 : vector<8x128xf32>
    %475 = arith.mulf %459, %467 : vector<8x128xf32>
    %476 = arith.addf %474, %475 : vector<8x128xf32>
    %477 = math.tanh %476 : vector<8x128xf32>
    %478 = arith.mulf %473, %477 : vector<8x128xf32>
    %c5_256 = arith.constant 5 : index
    %c0_257 = arith.constant 0 : index
    %c0_258 = arith.constant 0 : index
    %479 = vector.load %arg21[%c5_256, %c0_257, %c0_258] : memref<8x8x128xf32, #tpu.memory_space<vmem>>, vector<1x8x128xf32>
    %480 = vector.shape_cast %479 : vector<1x8x128xf32> to vector<8x128xf32>
    %481 = vector.shape_cast %478 : vector<8x128xf32> to vector<1x8x128xf32>
    tpu.vector_store %arg21[%c5_256, %c0_257, %c0_258], %481 {strides = array<i32>} : memref<8x8x128xf32, #tpu.memory_space<vmem>>, vector<1x8x128xf32>,
    %482 = vector.extract_strided_slice %281 {offsets = [6, 0, 0], sizes = [1, 8, 512], strides = [1, 1, 1]} : vector<8x8x512xf32> to vector<1x8x512xf32>
    %483 = vector.shape_cast %482 : vector<1x8x512xf32> to vector<8x512xf32>
    %484 = arith.truncf %478 : vector<8x128xf32> to vector<8x128xbf16>
    %cst_259 = arith.constant dense<0.000000e+00> : vector<8x512xf32>
    %485 = tpu.matmul %484, %274, %cst_259 {dimension_numbers = #tpu.dot_dimension_numbers<[1], [0], [0], [1], [0, 0, 1, 1], [], []>} : vector<8x128xbf16>, vector<128x512xbf16>, vector<8x512xf32> -> vector<8x512xf32>
    %486 = arith.addf %483, %485 : vector<8x512xf32>
    %487 = vector.extract_strided_slice %486 {offsets = [0, 0], sizes = [8, 128], strides = [1, 1]} : vector<8x512xf32> to vector<8x128xf32>
    %488 = arith.negf %487 : vector<8x128xf32>
    %489 = math.exp %488 : vector<8x128xf32>
    %cst_260 = arith.constant 1.000000e+00 : f32
    %490 = vector.broadcast %cst_260 : f32 to vector<8x128xf32>
    %491 = arith.addf %490, %489 : vector<8x128xf32>
    %492 = arith.divf %490, %491 : vector<8x128xf32>
    %493 = vector.extract_strided_slice %486 {offsets = [0, 128], sizes = [8, 128], strides = [1, 1]} : vector<8x512xf32> to vector<8x128xf32>
    %494 = arith.negf %493 : vector<8x128xf32>
    %495 = math.exp %494 : vector<8x128xf32>
    %cst_261 = arith.constant 1.000000e+00 : f32
    %496 = vector.broadcast %cst_261 : f32 to vector<8x128xf32>
    %497 = arith.addf %496, %495 : vector<8x128xf32>
    %498 = arith.divf %496, %497 : vector<8x128xf32>
    %499 = vector.extract_strided_slice %486 {offsets = [0, 256], sizes = [8, 128], strides = [1, 1]} : vector<8x512xf32> to vector<8x128xf32>
    %500 = math.tanh %499 : vector<8x128xf32>
    %501 = vector.extract_strided_slice %486 {offsets = [0, 384], sizes = [8, 128], strides = [1, 1]} : vector<8x512xf32> to vector<8x128xf32>
    %502 = arith.negf %501 : vector<8x128xf32>
    %503 = math.exp %502 : vector<8x128xf32>
    %cst_262 = arith.constant 1.000000e+00 : f32
    %504 = vector.broadcast %cst_262 : f32 to vector<8x128xf32>
    %505 = arith.addf %504, %503 : vector<8x128xf32>
    %506 = arith.divf %504, %505 : vector<8x128xf32>
    %507 = arith.mulf %498, %476 : vector<8x128xf32>
    %508 = arith.mulf %492, %500 : vector<8x128xf32>
    %509 = arith.addf %507, %508 : vector<8x128xf32>
    %510 = math.tanh %509 : vector<8x128xf32>
    %511 = arith.mulf %506, %510 : vector<8x128xf32>
    %c6_263 = arith.constant 6 : index
    %c0_264 = arith.constant 0 : index
    %c0_265 = arith.constant 0 : index
    %512 = vector.load %arg21[%c6_263, %c0_264, %c0_265] : memref<8x8x128xf32, #tpu.memory_space<vmem>>, vector<1x8x128xf32>
    %513 = vector.shape_cast %512 : vector<1x8x128xf32> to vector<8x128xf32>
    %514 = vector.shape_cast %511 : vector<8x128xf32> to vector<1x8x128xf32>
    tpu.vector_store %arg21[%c6_263, %c0_264, %c0_265], %514 {strides = array<i32>} : memref<8x8x128xf32, #tpu.memory_space<vmem>>, vector<1x8x128xf32>,
    %515 = vector.extract_strided_slice %281 {offsets = [7, 0, 0], sizes = [1, 8, 512], strides = [1, 1, 1]} : vector<8x8x512xf32> to vector<1x8x512xf32>
    %516 = vector.shape_cast %515 : vector<1x8x512xf32> to vector<8x512xf32>
    %517 = arith.truncf %511 : vector<8x128xf32> to vector<8x128xbf16>
    %cst_266 = arith.constant dense<0.000000e+00> : vector<8x512xf32>
    %518 = tpu.matmul %517, %274, %cst_266 {dimension_numbers = #tpu.dot_dimension_numbers<[1], [0], [0], [1], [0, 0, 1, 1], [], []>} : vector<8x128xbf16>, vector<128x512xbf16>, vector<8x512xf32> -> vector<8x512xf32>
    %519 = arith.addf %516, %518 : vector<8x512xf32>
    %520 = vector.extract_strided_slice %519 {offsets = [0, 0], sizes = [8, 128], strides = [1, 1]} : vector<8x512xf32> to vector<8x128xf32>
    %521 = arith.negf %520 : vector<8x128xf32>
    %522 = math.exp %521 : vector<8x128xf32>
    %cst_267 = arith.constant 1.000000e+00 : f32
    %523 = vector.broadcast %cst_267 : f32 to vector<8x128xf32>
    %524 = arith.addf %523, %522 : vector<8x128xf32>
    %525 = arith.divf %523, %524 : vector<8x128xf32>
    %526 = vector.extract_strided_slice %519 {offsets = [0, 128], sizes = [8, 128], strides = [1, 1]} : vector<8x512xf32> to vector<8x128xf32>
    %527 = arith.negf %526 : vector<8x128xf32>
    %528 = math.exp %527 : vector<8x128xf32>
    %cst_268 = arith.constant 1.000000e+00 : f32
    %529 = vector.broadcast %cst_268 : f32 to vector<8x128xf32>
    %530 = arith.addf %529, %528 : vector<8x128xf32>
    %531 = arith.divf %529, %530 : vector<8x128xf32>
    %532 = vector.extract_strided_slice %519 {offsets = [0, 256], sizes = [8, 128], strides = [1, 1]} : vector<8x512xf32> to vector<8x128xf32>
    %533 = math.tanh %532 : vector<8x128xf32>
    %534 = vector.extract_strided_slice %519 {offsets = [0, 384], sizes = [8, 128], strides = [1, 1]} : vector<8x512xf32> to vector<8x128xf32>
    %535 = arith.negf %534 : vector<8x128xf32>
    %536 = math.exp %535 : vector<8x128xf32>
    %cst_269 = arith.constant 1.000000e+00 : f32
    %537 = vector.broadcast %cst_269 : f32 to vector<8x128xf32>
    %538 = arith.addf %537, %536 : vector<8x128xf32>
    %539 = arith.divf %537, %538 : vector<8x128xf32>
    %540 = arith.mulf %531, %509 : vector<8x128xf32>
    %541 = arith.mulf %525, %533 : vector<8x128xf32>
    %542 = arith.addf %540, %541 : vector<8x128xf32>
    %543 = math.tanh %542 : vector<8x128xf32>
    %544 = arith.mulf %539, %543 : vector<8x128xf32>
    %c7_270 = arith.constant 7 : index
    %c0_271 = arith.constant 0 : index
    %c0_272 = arith.constant 0 : index
    %545 = vector.load %arg21[%c7_270, %c0_271, %c0_272] : memref<8x8x128xf32, #tpu.memory_space<vmem>>, vector<1x8x128xf32>
    %546 = vector.shape_cast %545 : vector<1x8x128xf32> to vector<8x128xf32>
    %547 = vector.shape_cast %544 : vector<8x128xf32> to vector<1x8x128xf32>
    tpu.vector_store %arg21[%c7_270, %c0_271, %c0_272], %547 {strides = array<i32>} : memref<8x8x128xf32, #tpu.memory_space<vmem>>, vector<1x8x128xf32>,
    %c0_273 = arith.constant 0 : index
    %c0_274 = arith.constant 0 : index
    %c0_275 = arith.constant 0 : index
    %548 = vector.load %arg21[%c0_273, %c0_274, %c0_275] : memref<8x8x128xf32, #tpu.memory_space<vmem>>, vector<8x8x128xf32>
    %549 = vector.shape_cast %548 : vector<8x8x128xf32> to vector<64x128xf32>
    %c0_276 = arith.constant 0 : index
    %c0_277 = arith.constant 0 : index
    %550 = vector.load %arg11[%c0_276, %c0_277] : memref<128x512xbf16, #tpu.memory_space<vmem>>, vector<128x512xbf16>
    %551 = arith.truncf %549 : vector<64x128xf32> to vector<64x128xbf16>
    %c0_278 = arith.constant 0 : index
    %c0_279 = arith.constant 0 : index
    %552 = vector.load %arg10[%c0_278, %c0_279] : memref<128x512xbf16, #tpu.memory_space<vmem>>, vector<128x512xbf16>
    %cst_280 = arith.constant dense<0.000000e+00> : vector<64x512xf32>
    %553 = tpu.matmul %551, %552, %cst_280 {dimension_numbers = #tpu.dot_dimension_numbers<[1], [0], [0], [1], [0, 0, 1, 1], [], []>} : vector<64x128xbf16>, vector<128x512xbf16>, vector<64x512xf32> -> vector<64x512xf32>
    %c0_281 = arith.constant 0 : index
    %c0_282 = arith.constant 0 : index
    %554 = vector.load %arg12[%c0_281, %c0_282] : memref<1x512xf32, #tpu.memory_space<vmem>>, vector<1x512xf32>
    %555 = vector.broadcast %554 : vector<1x512xf32> to vector<64x512xf32>
    %556 = arith.addf %553, %555 : vector<64x512xf32>
    %557 = vector.shape_cast %556 : vector<64x512xf32> to vector<8x8x512xf32>
    %cst_283 = arith.constant 0.000000e+00 : f32
    %558 = vector.broadcast %cst_283 : f32 to vector<8x128xf32>
    %cst_284 = arith.constant 0.000000e+00 : f32
    %559 = vector.broadcast %cst_284 : f32 to vector<8x128xf32>
    %560 = vector.extract_strided_slice %557 {offsets = [0, 0, 0], sizes = [1, 8, 512], strides = [1, 1, 1]} : vector<8x8x512xf32> to vector<1x8x512xf32>
    %561 = vector.shape_cast %560 : vector<1x8x512xf32> to vector<8x512xf32>
    %562 = arith.truncf %558 : vector<8x128xf32> to vector<8x128xbf16>
    %cst_285 = arith.constant dense<0.000000e+00> : vector<8x512xf32>
    %563 = tpu.matmul %562, %550, %cst_285 {dimension_numbers = #tpu.dot_dimension_numbers<[1], [0], [0], [1], [0, 0, 1, 1], [], []>} : vector<8x128xbf16>, vector<128x512xbf16>, vector<8x512xf32> -> vector<8x512xf32>
    %564 = arith.addf %561, %563 : vector<8x512xf32>
    %565 = vector.extract_strided_slice %564 {offsets = [0, 0], sizes = [8, 128], strides = [1, 1]} : vector<8x512xf32> to vector<8x128xf32>
    %566 = arith.negf %565 : vector<8x128xf32>
    %567 = math.exp %566 : vector<8x128xf32>
    %cst_286 = arith.constant 1.000000e+00 : f32
    %568 = vector.broadcast %cst_286 : f32 to vector<8x128xf32>
    %569 = arith.addf %568, %567 : vector<8x128xf32>
    %570 = arith.divf %568, %569 : vector<8x128xf32>
    %571 = vector.extract_strided_slice %564 {offsets = [0, 128], sizes = [8, 128], strides = [1, 1]} : vector<8x512xf32> to vector<8x128xf32>
    %572 = arith.negf %571 : vector<8x128xf32>
    %573 = math.exp %572 : vector<8x128xf32>
    %cst_287 = arith.constant 1.000000e+00 : f32
    %574 = vector.broadcast %cst_287 : f32 to vector<8x128xf32>
    %575 = arith.addf %574, %573 : vector<8x128xf32>
    %576 = arith.divf %574, %575 : vector<8x128xf32>
    %577 = vector.extract_strided_slice %564 {offsets = [0, 256], sizes = [8, 128], strides = [1, 1]} : vector<8x512xf32> to vector<8x128xf32>
    %578 = math.tanh %577 : vector<8x128xf32>
    %579 = vector.extract_strided_slice %564 {offsets = [0, 384], sizes = [8, 128], strides = [1, 1]} : vector<8x512xf32> to vector<8x128xf32>
    %580 = arith.negf %579 : vector<8x128xf32>
    %581 = math.exp %580 : vector<8x128xf32>
    %cst_288 = arith.constant 1.000000e+00 : f32
    %582 = vector.broadcast %cst_288 : f32 to vector<8x128xf32>
    %583 = arith.addf %582, %581 : vector<8x128xf32>
    %584 = arith.divf %582, %583 : vector<8x128xf32>
    %585 = arith.mulf %576, %559 : vector<8x128xf32>
    %586 = arith.mulf %570, %578 : vector<8x128xf32>
    %587 = arith.addf %585, %586 : vector<8x128xf32>
    %588 = math.tanh %587 : vector<8x128xf32>
    %589 = arith.mulf %584, %588 : vector<8x128xf32>
    %590 = vector.extract_strided_slice %557 {offsets = [1, 0, 0], sizes = [1, 8, 512], strides = [1, 1, 1]} : vector<8x8x512xf32> to vector<1x8x512xf32>
    %591 = vector.shape_cast %590 : vector<1x8x512xf32> to vector<8x512xf32>
    %592 = arith.truncf %589 : vector<8x128xf32> to vector<8x128xbf16>
    %cst_289 = arith.constant dense<0.000000e+00> : vector<8x512xf32>
    %593 = tpu.matmul %592, %550, %cst_289 {dimension_numbers = #tpu.dot_dimension_numbers<[1], [0], [0], [1], [0, 0, 1, 1], [], []>} : vector<8x128xbf16>, vector<128x512xbf16>, vector<8x512xf32> -> vector<8x512xf32>
    %594 = arith.addf %591, %593 : vector<8x512xf32>
    %595 = vector.extract_strided_slice %594 {offsets = [0, 0], sizes = [8, 128], strides = [1, 1]} : vector<8x512xf32> to vector<8x128xf32>
    %596 = arith.negf %595 : vector<8x128xf32>
    %597 = math.exp %596 : vector<8x128xf32>
    %cst_290 = arith.constant 1.000000e+00 : f32
    %598 = vector.broadcast %cst_290 : f32 to vector<8x128xf32>
    %599 = arith.addf %598, %597 : vector<8x128xf32>
    %600 = arith.divf %598, %599 : vector<8x128xf32>
    %601 = vector.extract_strided_slice %594 {offsets = [0, 128], sizes = [8, 128], strides = [1, 1]} : vector<8x512xf32> to vector<8x128xf32>
    %602 = arith.negf %601 : vector<8x128xf32>
    %603 = math.exp %602 : vector<8x128xf32>
    %cst_291 = arith.constant 1.000000e+00 : f32
    %604 = vector.broadcast %cst_291 : f32 to vector<8x128xf32>
    %605 = arith.addf %604, %603 : vector<8x128xf32>
    %606 = arith.divf %604, %605 : vector<8x128xf32>
    %607 = vector.extract_strided_slice %594 {offsets = [0, 256], sizes = [8, 128], strides = [1, 1]} : vector<8x512xf32> to vector<8x128xf32>
    %608 = math.tanh %607 : vector<8x128xf32>
    %609 = vector.extract_strided_slice %594 {offsets = [0, 384], sizes = [8, 128], strides = [1, 1]} : vector<8x512xf32> to vector<8x128xf32>
    %610 = arith.negf %609 : vector<8x128xf32>
    %611 = math.exp %610 : vector<8x128xf32>
    %cst_292 = arith.constant 1.000000e+00 : f32
    %612 = vector.broadcast %cst_292 : f32 to vector<8x128xf32>
    %613 = arith.addf %612, %611 : vector<8x128xf32>
    %614 = arith.divf %612, %613 : vector<8x128xf32>
    %615 = arith.mulf %606, %587 : vector<8x128xf32>
    %616 = arith.mulf %600, %608 : vector<8x128xf32>
    %617 = arith.addf %615, %616 : vector<8x128xf32>
    %618 = math.tanh %617 : vector<8x128xf32>
    %619 = arith.mulf %614, %618 : vector<8x128xf32>
    %620 = vector.extract_strided_slice %557 {offsets = [2, 0, 0], sizes = [1, 8, 512], strides = [1, 1, 1]} : vector<8x8x512xf32> to vector<1x8x512xf32>
    %621 = vector.shape_cast %620 : vector<1x8x512xf32> to vector<8x512xf32>
    %622 = arith.truncf %619 : vector<8x128xf32> to vector<8x128xbf16>
    %cst_293 = arith.constant dense<0.000000e+00> : vector<8x512xf32>
    %623 = tpu.matmul %622, %550, %cst_293 {dimension_numbers = #tpu.dot_dimension_numbers<[1], [0], [0], [1], [0, 0, 1, 1], [], []>} : vector<8x128xbf16>, vector<128x512xbf16>, vector<8x512xf32> -> vector<8x512xf32>
    %624 = arith.addf %621, %623 : vector<8x512xf32>
    %625 = vector.extract_strided_slice %624 {offsets = [0, 0], sizes = [8, 128], strides = [1, 1]} : vector<8x512xf32> to vector<8x128xf32>
    %626 = arith.negf %625 : vector<8x128xf32>
    %627 = math.exp %626 : vector<8x128xf32>
    %cst_294 = arith.constant 1.000000e+00 : f32
    %628 = vector.broadcast %cst_294 : f32 to vector<8x128xf32>
    %629 = arith.addf %628, %627 : vector<8x128xf32>
    %630 = arith.divf %628, %629 : vector<8x128xf32>
    %631 = vector.extract_strided_slice %624 {offsets = [0, 128], sizes = [8, 128], strides = [1, 1]} : vector<8x512xf32> to vector<8x128xf32>
    %632 = arith.negf %631 : vector<8x128xf32>
    %633 = math.exp %632 : vector<8x128xf32>
    %cst_295 = arith.constant 1.000000e+00 : f32
    %634 = vector.broadcast %cst_295 : f32 to vector<8x128xf32>
    %635 = arith.addf %634, %633 : vector<8x128xf32>
    %636 = arith.divf %634, %635 : vector<8x128xf32>
    %637 = vector.extract_strided_slice %624 {offsets = [0, 256], sizes = [8, 128], strides = [1, 1]} : vector<8x512xf32> to vector<8x128xf32>
    %638 = math.tanh %637 : vector<8x128xf32>
    %639 = vector.extract_strided_slice %624 {offsets = [0, 384], sizes = [8, 128], strides = [1, 1]} : vector<8x512xf32> to vector<8x128xf32>
    %640 = arith.negf %639 : vector<8x128xf32>
    %641 = math.exp %640 : vector<8x128xf32>
    %cst_296 = arith.constant 1.000000e+00 : f32
    %642 = vector.broadcast %cst_296 : f32 to vector<8x128xf32>
    %643 = arith.addf %642, %641 : vector<8x128xf32>
    %644 = arith.divf %642, %643 : vector<8x128xf32>
    %645 = arith.mulf %636, %617 : vector<8x128xf32>
    %646 = arith.mulf %630, %638 : vector<8x128xf32>
    %647 = arith.addf %645, %646 : vector<8x128xf32>
    %648 = math.tanh %647 : vector<8x128xf32>
    %649 = arith.mulf %644, %648 : vector<8x128xf32>
    %650 = vector.extract_strided_slice %557 {offsets = [3, 0, 0], sizes = [1, 8, 512], strides = [1, 1, 1]} : vector<8x8x512xf32> to vector<1x8x512xf32>
    %651 = vector.shape_cast %650 : vector<1x8x512xf32> to vector<8x512xf32>
    %652 = arith.truncf %649 : vector<8x128xf32> to vector<8x128xbf16>
    %cst_297 = arith.constant dense<0.000000e+00> : vector<8x512xf32>
    %653 = tpu.matmul %652, %550, %cst_297 {dimension_numbers = #tpu.dot_dimension_numbers<[1], [0], [0], [1], [0, 0, 1, 1], [], []>} : vector<8x128xbf16>, vector<128x512xbf16>, vector<8x512xf32> -> vector<8x512xf32>
    %654 = arith.addf %651, %653 : vector<8x512xf32>
    %655 = vector.extract_strided_slice %654 {offsets = [0, 0], sizes = [8, 128], strides = [1, 1]} : vector<8x512xf32> to vector<8x128xf32>
    %656 = arith.negf %655 : vector<8x128xf32>
    %657 = math.exp %656 : vector<8x128xf32>
    %cst_298 = arith.constant 1.000000e+00 : f32
    %658 = vector.broadcast %cst_298 : f32 to vector<8x128xf32>
    %659 = arith.addf %658, %657 : vector<8x128xf32>
    %660 = arith.divf %658, %659 : vector<8x128xf32>
    %661 = vector.extract_strided_slice %654 {offsets = [0, 128], sizes = [8, 128], strides = [1, 1]} : vector<8x512xf32> to vector<8x128xf32>
    %662 = arith.negf %661 : vector<8x128xf32>
    %663 = math.exp %662 : vector<8x128xf32>
    %cst_299 = arith.constant 1.000000e+00 : f32
    %664 = vector.broadcast %cst_299 : f32 to vector<8x128xf32>
    %665 = arith.addf %664, %663 : vector<8x128xf32>
    %666 = arith.divf %664, %665 : vector<8x128xf32>
    %667 = vector.extract_strided_slice %654 {offsets = [0, 256], sizes = [8, 128], strides = [1, 1]} : vector<8x512xf32> to vector<8x128xf32>
    %668 = math.tanh %667 : vector<8x128xf32>
    %669 = vector.extract_strided_slice %654 {offsets = [0, 384], sizes = [8, 128], strides = [1, 1]} : vector<8x512xf32> to vector<8x128xf32>
    %670 = arith.negf %669 : vector<8x128xf32>
    %671 = math.exp %670 : vector<8x128xf32>
    %cst_300 = arith.constant 1.000000e+00 : f32
    %672 = vector.broadcast %cst_300 : f32 to vector<8x128xf32>
    %673 = arith.addf %672, %671 : vector<8x128xf32>
    %674 = arith.divf %672, %673 : vector<8x128xf32>
    %675 = arith.mulf %666, %647 : vector<8x128xf32>
    %676 = arith.mulf %660, %668 : vector<8x128xf32>
    %677 = arith.addf %675, %676 : vector<8x128xf32>
    %678 = math.tanh %677 : vector<8x128xf32>
    %679 = arith.mulf %674, %678 : vector<8x128xf32>
    %680 = vector.extract_strided_slice %557 {offsets = [4, 0, 0], sizes = [1, 8, 512], strides = [1, 1, 1]} : vector<8x8x512xf32> to vector<1x8x512xf32>
    %681 = vector.shape_cast %680 : vector<1x8x512xf32> to vector<8x512xf32>
    %682 = arith.truncf %679 : vector<8x128xf32> to vector<8x128xbf16>
    %cst_301 = arith.constant dense<0.000000e+00> : vector<8x512xf32>
    %683 = tpu.matmul %682, %550, %cst_301 {dimension_numbers = #tpu.dot_dimension_numbers<[1], [0], [0], [1], [0, 0, 1, 1], [], []>} : vector<8x128xbf16>, vector<128x512xbf16>, vector<8x512xf32> -> vector<8x512xf32>
    %684 = arith.addf %681, %683 : vector<8x512xf32>
    %685 = vector.extract_strided_slice %684 {offsets = [0, 0], sizes = [8, 128], strides = [1, 1]} : vector<8x512xf32> to vector<8x128xf32>
    %686 = arith.negf %685 : vector<8x128xf32>
    %687 = math.exp %686 : vector<8x128xf32>
    %cst_302 = arith.constant 1.000000e+00 : f32
    %688 = vector.broadcast %cst_302 : f32 to vector<8x128xf32>
    %689 = arith.addf %688, %687 : vector<8x128xf32>
    %690 = arith.divf %688, %689 : vector<8x128xf32>
    %691 = vector.extract_strided_slice %684 {offsets = [0, 128], sizes = [8, 128], strides = [1, 1]} : vector<8x512xf32> to vector<8x128xf32>
    %692 = arith.negf %691 : vector<8x128xf32>
    %693 = math.exp %692 : vector<8x128xf32>
    %cst_303 = arith.constant 1.000000e+00 : f32
    %694 = vector.broadcast %cst_303 : f32 to vector<8x128xf32>
    %695 = arith.addf %694, %693 : vector<8x128xf32>
    %696 = arith.divf %694, %695 : vector<8x128xf32>
    %697 = vector.extract_strided_slice %684 {offsets = [0, 256], sizes = [8, 128], strides = [1, 1]} : vector<8x512xf32> to vector<8x128xf32>
    %698 = math.tanh %697 : vector<8x128xf32>
    %699 = vector.extract_strided_slice %684 {offsets = [0, 384], sizes = [8, 128], strides = [1, 1]} : vector<8x512xf32> to vector<8x128xf32>
    %700 = arith.negf %699 : vector<8x128xf32>
    %701 = math.exp %700 : vector<8x128xf32>
    %cst_304 = arith.constant 1.000000e+00 : f32
    %702 = vector.broadcast %cst_304 : f32 to vector<8x128xf32>
    %703 = arith.addf %702, %701 : vector<8x128xf32>
    %704 = arith.divf %702, %703 : vector<8x128xf32>
    %705 = arith.mulf %696, %677 : vector<8x128xf32>
    %706 = arith.mulf %690, %698 : vector<8x128xf32>
    %707 = arith.addf %705, %706 : vector<8x128xf32>
    %708 = math.tanh %707 : vector<8x128xf32>
    %709 = arith.mulf %704, %708 : vector<8x128xf32>
    %710 = vector.extract_strided_slice %557 {offsets = [5, 0, 0], sizes = [1, 8, 512], strides = [1, 1, 1]} : vector<8x8x512xf32> to vector<1x8x512xf32>
    %711 = vector.shape_cast %710 : vector<1x8x512xf32> to vector<8x512xf32>
    %712 = arith.truncf %709 : vector<8x128xf32> to vector<8x128xbf16>
    %cst_305 = arith.constant dense<0.000000e+00> : vector<8x512xf32>
    %713 = tpu.matmul %712, %550, %cst_305 {dimension_numbers = #tpu.dot_dimension_numbers<[1], [0], [0], [1], [0, 0, 1, 1], [], []>} : vector<8x128xbf16>, vector<128x512xbf16>, vector<8x512xf32> -> vector<8x512xf32>
    %714 = arith.addf %711, %713 : vector<8x512xf32>
    %715 = vector.extract_strided_slice %714 {offsets = [0, 0], sizes = [8, 128], strides = [1, 1]} : vector<8x512xf32> to vector<8x128xf32>
    %716 = arith.negf %715 : vector<8x128xf32>
    %717 = math.exp %716 : vector<8x128xf32>
    %cst_306 = arith.constant 1.000000e+00 : f32
    %718 = vector.broadcast %cst_306 : f32 to vector<8x128xf32>
    %719 = arith.addf %718, %717 : vector<8x128xf32>
    %720 = arith.divf %718, %719 : vector<8x128xf32>
    %721 = vector.extract_strided_slice %714 {offsets = [0, 128], sizes = [8, 128], strides = [1, 1]} : vector<8x512xf32> to vector<8x128xf32>
    %722 = arith.negf %721 : vector<8x128xf32>
    %723 = math.exp %722 : vector<8x128xf32>
    %cst_307 = arith.constant 1.000000e+00 : f32
    %724 = vector.broadcast %cst_307 : f32 to vector<8x128xf32>
    %725 = arith.addf %724, %723 : vector<8x128xf32>
    %726 = arith.divf %724, %725 : vector<8x128xf32>
    %727 = vector.extract_strided_slice %714 {offsets = [0, 256], sizes = [8, 128], strides = [1, 1]} : vector<8x512xf32> to vector<8x128xf32>
    %728 = math.tanh %727 : vector<8x128xf32>
    %729 = vector.extract_strided_slice %714 {offsets = [0, 384], sizes = [8, 128], strides = [1, 1]} : vector<8x512xf32> to vector<8x128xf32>
    %730 = arith.negf %729 : vector<8x128xf32>
    %731 = math.exp %730 : vector<8x128xf32>
    %cst_308 = arith.constant 1.000000e+00 : f32
    %732 = vector.broadcast %cst_308 : f32 to vector<8x128xf32>
    %733 = arith.addf %732, %731 : vector<8x128xf32>
    %734 = arith.divf %732, %733 : vector<8x128xf32>
    %735 = arith.mulf %726, %707 : vector<8x128xf32>
    %736 = arith.mulf %720, %728 : vector<8x128xf32>
    %737 = arith.addf %735, %736 : vector<8x128xf32>
    %738 = math.tanh %737 : vector<8x128xf32>
    %739 = arith.mulf %734, %738 : vector<8x128xf32>
    %740 = vector.extract_strided_slice %557 {offsets = [6, 0, 0], sizes = [1, 8, 512], strides = [1, 1, 1]} : vector<8x8x512xf32> to vector<1x8x512xf32>
    %741 = vector.shape_cast %740 : vector<1x8x512xf32> to vector<8x512xf32>
    %742 = arith.truncf %739 : vector<8x128xf32> to vector<8x128xbf16>
    %cst_309 = arith.constant dense<0.000000e+00> : vector<8x512xf32>
    %743 = tpu.matmul %742, %550, %cst_309 {dimension_numbers = #tpu.dot_dimension_numbers<[1], [0], [0], [1], [0, 0, 1, 1], [], []>} : vector<8x128xbf16>, vector<128x512xbf16>, vector<8x512xf32> -> vector<8x512xf32>
    %744 = arith.addf %741, %743 : vector<8x512xf32>
    %745 = vector.extract_strided_slice %744 {offsets = [0, 0], sizes = [8, 128], strides = [1, 1]} : vector<8x512xf32> to vector<8x128xf32>
    %746 = arith.negf %745 : vector<8x128xf32>
    %747 = math.exp %746 : vector<8x128xf32>
    %cst_310 = arith.constant 1.000000e+00 : f32
    %748 = vector.broadcast %cst_310 : f32 to vector<8x128xf32>
    %749 = arith.addf %748, %747 : vector<8x128xf32>
    %750 = arith.divf %748, %749 : vector<8x128xf32>
    %751 = vector.extract_strided_slice %744 {offsets = [0, 128], sizes = [8, 128], strides = [1, 1]} : vector<8x512xf32> to vector<8x128xf32>
    %752 = arith.negf %751 : vector<8x128xf32>
    %753 = math.exp %752 : vector<8x128xf32>
    %cst_311 = arith.constant 1.000000e+00 : f32
    %754 = vector.broadcast %cst_311 : f32 to vector<8x128xf32>
    %755 = arith.addf %754, %753 : vector<8x128xf32>
    %756 = arith.divf %754, %755 : vector<8x128xf32>
    %757 = vector.extract_strided_slice %744 {offsets = [0, 256], sizes = [8, 128], strides = [1, 1]} : vector<8x512xf32> to vector<8x128xf32>
    %758 = math.tanh %757 : vector<8x128xf32>
    %759 = vector.extract_strided_slice %744 {offsets = [0, 384], sizes = [8, 128], strides = [1, 1]} : vector<8x512xf32> to vector<8x128xf32>
    %760 = arith.negf %759 : vector<8x128xf32>
    %761 = math.exp %760 : vector<8x128xf32>
    %cst_312 = arith.constant 1.000000e+00 : f32
    %762 = vector.broadcast %cst_312 : f32 to vector<8x128xf32>
    %763 = arith.addf %762, %761 : vector<8x128xf32>
    %764 = arith.divf %762, %763 : vector<8x128xf32>
    %765 = arith.mulf %756, %737 : vector<8x128xf32>
    %766 = arith.mulf %750, %758 : vector<8x128xf32>
    %767 = arith.addf %765, %766 : vector<8x128xf32>
    %768 = math.tanh %767 : vector<8x128xf32>
    %769 = arith.mulf %764, %768 : vector<8x128xf32>
    %770 = vector.extract_strided_slice %557 {offsets = [7, 0, 0], sizes = [1, 8, 512], strides = [1, 1, 1]} : vector<8x8x512xf32> to vector<1x8x512xf32>
    %771 = vector.shape_cast %770 : vector<1x8x512xf32> to vector<8x512xf32>
    %772 = arith.truncf %769 : vector<8x128xf32> to vector<8x128xbf16>
    %cst_313 = arith.constant dense<0.000000e+00> : vector<8x512xf32>
    %773 = tpu.matmul %772, %550, %cst_313 {dimension_numbers = #tpu.dot_dimension_numbers<[1], [0], [0], [1], [0, 0, 1, 1], [], []>} : vector<8x128xbf16>, vector<128x512xbf16>, vector<8x512xf32> -> vector<8x512xf32>
    %774 = arith.addf %771, %773 : vector<8x512xf32>
    %775 = vector.extract_strided_slice %774 {offsets = [0, 0], sizes = [8, 128], strides = [1, 1]} : vector<8x512xf32> to vector<8x128xf32>
    %776 = arith.negf %775 : vector<8x128xf32>
    %777 = math.exp %776 : vector<8x128xf32>
    %cst_314 = arith.constant 1.000000e+00 : f32
    %778 = vector.broadcast %cst_314 : f32 to vector<8x128xf32>
    %779 = arith.addf %778, %777 : vector<8x128xf32>
    %780 = arith.divf %778, %779 : vector<8x128xf32>
    %781 = vector.extract_strided_slice %774 {offsets = [0, 128], sizes = [8, 128], strides = [1, 1]} : vector<8x512xf32> to vector<8x128xf32>
    %782 = arith.negf %781 : vector<8x128xf32>
    %783 = math.exp %782 : vector<8x128xf32>
    %cst_315 = arith.constant 1.000000e+00 : f32
    %784 = vector.broadcast %cst_315 : f32 to vector<8x128xf32>
    %785 = arith.addf %784, %783 : vector<8x128xf32>
    %786 = arith.divf %784, %785 : vector<8x128xf32>
    %787 = vector.extract_strided_slice %774 {offsets = [0, 256], sizes = [8, 128], strides = [1, 1]} : vector<8x512xf32> to vector<8x128xf32>
    %788 = math.tanh %787 : vector<8x128xf32>
    %789 = vector.extract_strided_slice %774 {offsets = [0, 384], sizes = [8, 128], strides = [1, 1]} : vector<8x512xf32> to vector<8x128xf32>
    %790 = arith.negf %789 : vector<8x128xf32>
    %791 = math.exp %790 : vector<8x128xf32>
    %cst_316 = arith.constant 1.000000e+00 : f32
    %792 = vector.broadcast %cst_316 : f32 to vector<8x128xf32>
    %793 = arith.addf %792, %791 : vector<8x128xf32>
    %794 = arith.divf %792, %793 : vector<8x128xf32>
    %795 = arith.mulf %786, %767 : vector<8x128xf32>
    %796 = arith.mulf %780, %788 : vector<8x128xf32>
    %797 = arith.addf %795, %796 : vector<8x128xf32>
    %798 = math.tanh %797 : vector<8x128xf32>
    %799 = arith.mulf %794, %798 : vector<8x128xf32>
    %800 = tpu.concatenate %544, %542, %799, %797 in 1 : vector<8x128xf32>, vector<8x128xf32>, vector<8x128xf32>, vector<8x128xf32> -> vector<8x512xf32>
    %801 = math.tanh %800 : vector<8x512xf32>
    %802 = arith.truncf %801 : vector<8x512xf32> to vector<8x512xbf16>
    %c0_317 = arith.constant 0 : index
    %c0_318 = arith.constant 0 : index
    %803 = vector.load %arg13[%c0_317, %c0_318] : memref<512x128xbf16, #tpu.memory_space<vmem>>, vector<512x128xbf16>
    %cst_319 = arith.constant dense<0.000000e+00> : vector<8x128xf32>
    %804 = tpu.matmul %802, %803, %cst_319 {dimension_numbers = #tpu.dot_dimension_numbers<[1], [0], [0], [1], [0, 0, 1, 1], [], []>} : vector<8x512xbf16>, vector<512x128xbf16>, vector<8x128xf32> -> vector<8x128xf32>
    %c0_320 = arith.constant 0 : index
    %c0_321 = arith.constant 0 : index
    %805 = vector.load %arg14[%c0_320, %c0_321] : memref<1x128xf32, #tpu.memory_space<vmem>>, vector<1x128xf32>
    %806 = vector.broadcast %805 : vector<1x128xf32> to vector<8x128xf32>
    %807 = arith.addf %804, %806 : vector<8x128xf32>
    %808 = arith.mulf %15, %807 : vector<8x128xf32>
    %809 = math.tanh %808 : vector<8x128xf32>
    %810 = arith.truncf %809 : vector<8x128xf32> to vector<8x128xbf16>
    %c0_322 = arith.constant 0 : index
    %c0_323 = arith.constant 0 : index
    %811 = vector.load %arg15[%c0_322, %c0_323] : memref<128x128xbf16, #tpu.memory_space<vmem>>, vector<128x128xbf16>
    %cst_324 = arith.constant dense<0.000000e+00> : vector<8x128xf32>
    %812 = tpu.matmul %810, %811, %cst_324 {dimension_numbers = #tpu.dot_dimension_numbers<[1], [0], [0], [1], [0, 0, 1, 1], [], []>} : vector<8x128xbf16>, vector<128x128xbf16>, vector<8x128xf32> -> vector<8x128xf32>
    %c0_325 = arith.constant 0 : index
    %c0_326 = arith.constant 0 : index
    %813 = vector.load %arg16[%c0_325, %c0_326] : memref<1x128xf32, #tpu.memory_space<vmem>>, vector<1x128xf32>
    %814 = vector.broadcast %813 : vector<1x128xf32> to vector<8x128xf32>
    %815 = arith.addf %812, %814 : vector<8x128xf32>
    %816 = math.tanh %815 : vector<8x128xf32>
    %817 = arith.truncf %816 : vector<8x128xf32> to vector<8x128xbf16>
    %c0_327 = arith.constant 0 : index
    %c0_328 = arith.constant 0 : index
    %818 = vector.load %arg17[%c0_327, %c0_328] : memref<128x128xbf16, #tpu.memory_space<vmem>>, vector<128x128xbf16>
    %cst_329 = arith.constant dense<0.000000e+00> : vector<8x128xf32>
    %819 = tpu.matmul %817, %818, %cst_329 {dimension_numbers = #tpu.dot_dimension_numbers<[1], [0], [0], [1], [0, 0, 1, 1], [], []>} : vector<8x128xbf16>, vector<128x128xbf16>, vector<8x128xf32> -> vector<8x128xf32>
    %c0_330 = arith.constant 0 : index
    %c0_331 = arith.constant 0 : index
    %820 = vector.load %arg18[%c0_330, %c0_331] : memref<1x128xf32, #tpu.memory_space<vmem>>, vector<1x128xf32>
    %821 = vector.broadcast %820 : vector<1x128xf32> to vector<8x128xf32>
    %822 = arith.addf %819, %821 : vector<8x128xf32>
    %c0_332 = arith.constant 0 : index
    %c0_333 = arith.constant 0 : index
    %823 = vector.load %arg19[%c0_332, %c0_333] : memref<8x128xf32, #tpu.memory_space<vmem>>, vector<8x128xf32>
    tpu.vector_store %arg19[%c0_332, %c0_333], %822 {strides = array<i32>} : memref<8x128xf32, #tpu.memory_space<vmem>>, vector<8x128xf32>,
    return
  }
}

</mosaic_0001>

<llo_original>
// kernel: vqa_forward.1
$region0: #{vqa_forward.1}
  #allocation0 [shape = 'u32[]', space=smem, size = 0x4, offset = 0x4, fixed_abs, tag = 'smem constant byte address 0x4 - core index']
  #allocation1 [shape = 'u32[144,128]{1,0:T(1,128)}', space=vmem, size = 0x12000, scoped, tag = 'internal scratch']
  #allocation2 [shape = 'f32[64,128]{1,0:T(8,128)}', space=vmem, size = 0x8000, scoped, tag = 'scratch operand']
  #allocation3 [shape = 'f32[8,8,128]{2,1,0:T(8,128)}', space=vmem, size = 0x8000, scoped, tag = 'scratch operand']
  %s0 = inlined_call_operand.vmem [shape: s32[64], index: 0, kind: input, shape index: {}]
  %s1 = inlined_call_operand.vmem [shape: f32[8,8,256], index: 1, kind: input, shape index: {}]
  %s2 = inlined_call_operand.vmem [shape: bf16[8,128], index: 2, kind: input, shape index: {}]
  %s3 = inlined_call_operand.vmem [shape: f32[1,128], index: 3, kind: input, shape index: {}]
  %s4 = inlined_call_operand.hbm [shape: bf16[128,128], index: 4, kind: input, shape index: {}]
  %s5 = inlined_call_operand.vmem [shape: f32[1,128], index: 5, kind: input, shape index: {}]
  %s6 = inlined_call_operand.hbm [shape: f32[100,128], index: 6, kind: input, shape index: {}]
  %s7 = inlined_call_operand.vmem [shape: bf16[128,512], index: 7, kind: input, shape index: {}]
  %s8 = inlined_call_operand.hbm [shape: bf16[128,512], index: 8, kind: input, shape index: {}]
  %s9 = inlined_call_operand.vmem [shape: f32[1,512], index: 9, kind: input, shape index: {}]
  %s10 = inlined_call_operand.hbm [shape: bf16[128,512], index: 10, kind: input, shape index: {}]
  %s11 = inlined_call_operand.hbm [shape: bf16[128,512], index: 11, kind: input, shape index: {}]
  %s12 = inlined_call_operand.vmem [shape: f32[1,512], index: 12, kind: input, shape index: {}]
  %s13 = inlined_call_operand.hbm [shape: bf16[512,128], index: 13, kind: input, shape index: {}]
  %s14 = inlined_call_operand.vmem [shape: f32[1,128], index: 14, kind: input, shape index: {}]
  %s15 = inlined_call_operand.hbm [shape: bf16[128,128], index: 15, kind: input, shape index: {}]
  %s16 = inlined_call_operand.vmem [shape: f32[1,128], index: 16, kind: input, shape index: {}]
  %s17 = inlined_call_operand.hbm [shape: bf16[128,128], index: 17, kind: input, shape index: {}]
  %s18 = inlined_call_operand.vmem [shape: f32[1,128], index: 18, kind: input, shape index: {}]
  %s19 = inlined_call_operand.vmem [shape: f32[8,128], index: 19, kind: output, shape index: {}]
  %s20 = sld [smem:[#allocation0]]
  $region122: #{vqa_forward.1} parent=0
    _
  %s22 = ssub.s32 1, %s20
  %s23 = scalar_select 0, %s22, %s20
  $region1: #{vqa_forward.1} parent=0
    #allocation4 [shape = 'u8[512]{0}', space=smem, size = 0x200, scoped, tag = 'input window, operand 0, single buffered']
    #allocation5 [shape = 's32[1]{0}', space=sflag, size = 0x4, scoped, tag = 'scoped memory for vqa_forward.1']
    #allocation6 [shape = 's32[1]{0}', space=sflag, size = 0x4, scoped, tag = 'scoped memory for vqa_forward.1']
    #allocation7 [shape = 'u8[32768]{0}', space=vmem, size = 0x8000, scoped, tag = 'input window, operand 4, single buffered']
    #allocation8 [shape = 'u8[53248]{0}', space=vmem, size = 0xd000, scoped, tag = 'input window, operand 6, single buffered']
    #allocation9 [shape = 's32[1]{0}', space=sflag, size = 0x4, scoped, tag = 'scoped memory for vqa_forward.1']
    #allocation10 [shape = 'u8[131072]{0}', space=vmem, size = 0x20000, scoped, tag = 'input window, operand 8, single buffered']
    #allocation11 [shape = 'u8[131072]{0}', space=vmem, size = 0x20000, scoped, tag = 'input window, operand 10, single buffered']
    #allocation12 [shape = 's32[1]{0}', space=sflag, size = 0x4, scoped, tag = 'scoped memory for vqa_forward.1']
    #allocation13 [shape = 'u8[131072]{0}', space=vmem, size = 0x20000, scoped, tag = 'input window, operand 11, single buffered']
    #allocation14 [shape = 'u8[131072]{0}', space=vmem, size = 0x20000, scoped, tag = 'input window, operand 13, single buffered']
    #allocation15 [shape = 's32[1]{0}', space=sflag, size = 0x4, scoped, tag = 'scoped memory for vqa_forward.1']
    #allocation16 [shape = 'u8[32768]{0}', space=vmem, size = 0x8000, scoped, tag = 'input window, operand 15, single buffered']
    #allocation17 [shape = 'u8[32768]{0}', space=vmem, size = 0x8000, scoped, tag = 'input window, operand 17, single buffered']
    #allocation18 [shape = 's32[1]{0}', space=sflag, size = 0x4, scoped, tag = 'scoped memory for vqa_forward.1']
    %24 = vsyncpa [#allocation6], 0
    %25 = vsyncpa [#allocation5], 0
    %26 = vsyncpa [#allocation9], 0
    %27 = vsyncpa [#allocation12], 0
    %28 = vsyncpa [#allocation15], 0
    %29 = vsyncpa [#allocation18], 0
    // Predicated region
    $region2: #{vqa_forward.1} parent=1 // pred_check
      _
    $region3: #{vqa_forward.1} parent=1 // pred_check_branch
      %31 = sbr.rel (0) target = $region5
    $region4: #{vqa_forward.1} parent=1 // pred_region
      %s33 = ssub.s32 16, 16
      %34 = vsyncadd [#allocation6], %s33
      %s36 = sshll.u32 %s0, 4
      %s37 = int_to_ptr.vmem [resolvable:$true] %s36
      %39 = dma.vmem_to_smem %s37, 16, [#allocation4], [#allocation6]
    $region5: #{vqa_forward.1} parent=1 // pred_fallthru
      _
    // Predicated region
    $region6: #{vqa_forward.1} parent=1 // pred_check
      _
    $region7: #{vqa_forward.1} parent=1 // pred_check_branch
      %41 = sbr.rel (0) target = $region9
    $region8: #{vqa_forward.1} parent=1 // pred_region
      _
    $region9: #{vqa_forward.1} parent=1 // pred_fallthru
      _
    // Predicated region
    $region10: #{vqa_forward.1} parent=1 // pred_check
      _
    $region11: #{vqa_forward.1} parent=1 // pred_check_branch
      %43 = sbr.rel (0) target = $region13
    $region12: #{vqa_forward.1} parent=1 // pred_region
      _
    $region13: #{vqa_forward.1} parent=1 // pred_fallthru
      _
    // Predicated region
    $region14: #{vqa_forward.1} parent=1 // pred_check
      _
    $region15: #{vqa_forward.1} parent=1 // pred_check_branch
      %45 = sbr.rel (0) target = $region17
    $region16: #{vqa_forward.1} parent=1 // pred_region
      _
    $region17: #{vqa_forward.1} parent=1 // pred_fallthru
      _
    // Predicated region
    $region18: #{vqa_forward.1} parent=1 // pred_check
      _
    $region19: #{vqa_forward.1} parent=1 // pred_check_branch
      %47 = sbr.rel (0) target = $region21
    $region20: #{vqa_forward.1} parent=1 // pred_region
      %s49 = ssub.s32 1024, 1024
      %50 = vsyncadd [#allocation5], %s49
      %s51 = sshll.u32 [#allocation7], 4
      %s52 = int_to_ptr.vmem [resolvable:$true] %s51
      %57 = dma.hbm_to_vmem [thread:$0]  %s4, 1024, %s52, [#allocation5], 64, 64, 4
    $region21: #{vqa_forward.1} parent=1 // pred_fallthru
      _
    // Predicated region
    $region22: #{vqa_forward.1} parent=1 // pred_check
      _
    $region23: #{vqa_forward.1} parent=1 // pred_check_branch
      %59 = sbr.rel (0) target = $region25
    $region24: #{vqa_forward.1} parent=1 // pred_region
      _
    $region25: #{vqa_forward.1} parent=1 // pred_fallthru
      _
    // Predicated region
    $region26: #{vqa_forward.1} parent=1 // pred_check
      _
    $region27: #{vqa_forward.1} parent=1 // pred_check_branch
      %61 = sbr.rel (0) target = $region29
    $region28: #{vqa_forward.1} parent=1 // pred_region
      %s63 = ssub.s32 1664, 1664
      %64 = vsyncadd [#allocation9], %s63
      %s65 = sshll.u32 [#allocation8], 4
      %s66 = int_to_ptr.vmem [resolvable:$true] %s65
      %71 = dma.hbm_to_vmem [thread:$0]  %s6, 1664, %s66, [#allocation9], 128, 128, 8
    $region29: #{vqa_forward.1} parent=1 // pred_fallthru
      _
    // Predicated region
    $region30: #{vqa_forward.1} parent=1 // pred_check
      _
    $region31: #{vqa_forward.1} parent=1 // pred_check_branch
      %73 = sbr.rel (0) target = $region33
    $region32: #{vqa_forward.1} parent=1 // pred_region
      _
    $region33: #{vqa_forward.1} parent=1 // pred_fallthru
      _
    // Predicated region
    $region34: #{vqa_forward.1} parent=1 // pred_check
      _
    $region35: #{vqa_forward.1} parent=1 // pred_check_branch
      %75 = sbr.rel (0) target = $region37
    $region36: #{vqa_forward.1} parent=1 // pred_region
      %s77 = ssub.s32 4096, 4096
      %78 = vsyncadd [#allocation9], %s77
      %s79 = sshll.u32 [#allocation10], 4
      %s80 = int_to_ptr.vmem [resolvable:$true] %s79
      %85 = dma.hbm_to_vmem [thread:$0]  %s8, 4096, %s80, [#allocation9], 256, 256, 16
    $region37: #{vqa_forward.1} parent=1 // pred_fallthru
      _
    // Predicated region
    $region38: #{vqa_forward.1} parent=1 // pred_check
      _
    $region39: #{vqa_forward.1} parent=1 // pred_check_branch
      %87 = sbr.rel (0) target = $region41
    $region40: #{vqa_forward.1} parent=1 // pred_region
      _
    $region41: #{vqa_forward.1} parent=1 // pred_fallthru
      _
    // Predicated region
    $region42: #{vqa_forward.1} parent=1 // pred_check
      _
    $region43: #{vqa_forward.1} parent=1 // pred_check_branch
      %89 = sbr.rel (0) target = $region45
    $region44: #{vqa_forward.1} parent=1 // pred_region
      %s91 = ssub.s32 4096, 4096
      %92 = vsyncadd [#allocation12], %s91
      %s93 = sshll.u32 [#allocation11], 4
      %s94 = int_to_ptr.vmem [resolvable:$true] %s93
      %99 = dma.hbm_to_vmem [thread:$0]  %s10, 4096, %s94, [#allocation12], 256, 256, 16
    $region45: #{vqa_forward.1} parent=1 // pred_fallthru
      _
    // Predicated region
    $region46: #{vqa_forward.1} parent=1 // pred_check
      _
    $region47: #{vqa_forward.1} parent=1 // pred_check_branch
      %101 = sbr.rel (0) target = $region49
    $region48: #{vqa_forward.1} parent=1 // pred_region
      %s103 = ssub.s32 4096, 4096
      %104 = vsyncadd [#allocation12], %s103
      %s105 = sshll.u32 [#allocation13], 4
      %s106 = int_to_ptr.vmem [resolvable:$true] %s105
      %111 = dma.hbm_to_vmem [thread:$0]  %s11, 4096, %s106, [#allocation12], 256, 256, 16
    $region49: #{vqa_forward.1} parent=1 // pred_fallthru
      _
    // Predicated region
    $region50: #{vqa_forward.1} parent=1 // pred_check
      _
    $region51: #{vqa_forward.1} parent=1 // pred_check_branch
      %113 = sbr.rel (0) target = $region53
    $region52: #{vqa_forward.1} parent=1 // pred_region
      _
    $region53: #{vqa_forward.1} parent=1 // pred_fallthru
      _
    // Predicated region
    $region54: #{vqa_forward.1} parent=1 // pred_check
      _
    $region55: #{vqa_forward.1} parent=1 // pred_check_branch
      %115 = sbr.rel (0) target = $region57
    $region56: #{vqa_forward.1} parent=1 // pred_region
      %s117 = ssub.s32 4096, 4096
      %118 = vsyncadd [#allocation15], %s117
      %s119 = sshll.u32 [#allocation14], 4
      %s120 = int_to_ptr.vmem [resolvable:$true] %s119
      %125 = dma.hbm_to_vmem [thread:$0]  %s13, 4096, %s120, [#allocation15], 64, 64, 4
    $region57: #{vqa_forward.1} parent=1 // pred_fallthru
      _
    // Predicated region
    $region58: #{vqa_forward.1} parent=1 // pred_check
      _
    $region59: #{vqa_forward.1} parent=1 // pred_check_branch
      %127 = sbr.rel (0) target = $region61
    $region60: #{vqa_forward.1} parent=1 // pred_region
      _
    $region61: #{vqa_forward.1} parent=1 // pred_fallthru
      _
    // Predicated region
    $region62: #{vqa_forward.1} parent=1 // pred_check
      _
    $region63: #{vqa_forward.1} parent=1 // pred_check_branch
      %129 = sbr.rel (0) target = $region65
    $region64: #{vqa_forward.1} parent=1 // pred_region
      %s131 = ssub.s32 1024, 1024
      %132 = vsyncadd [#allocation15], %s131
      %s133 = sshll.u32 [#allocation16], 4
      %s134 = int_to_ptr.vmem [resolvable:$true] %s133
      %139 = dma.hbm_to_vmem [thread:$0]  %s15, 1024, %s134, [#allocation15], 64, 64, 4
    $region65: #{vqa_forward.1} parent=1 // pred_fallthru
      _
    // Predicated region
    $region66: #{vqa_forward.1} parent=1 // pred_check
      _
    $region67: #{vqa_forward.1} parent=1 // pred_check_branch
      %141 = sbr.rel (0) target = $region69
    $region68: #{vqa_forward.1} parent=1 // pred_region
      _
    $region69: #{vqa_forward.1} parent=1 // pred_fallthru
      _
    // Predicated region
    $region70: #{vqa_forward.1} parent=1 // pred_check
      _
    $region71: #{vqa_forward.1} parent=1 // pred_check_branch
      %143 = sbr.rel (0) target = $region73
    $region72: #{vqa_forward.1} parent=1 // pred_region
      %s145 = ssub.s32 1024, 1024
      %146 = vsyncadd [#allocation18], %s145
      %s147 = sshll.u32 [#allocation17], 4
      %s148 = int_to_ptr.vmem [resolvable:$true] %s147
      %153 = dma.hbm_to_vmem [thread:$0]  %s17, 1024, %s148, [#allocation18], 64, 64, 4
    $region73: #{vqa_forward.1} parent=1 // pred_fallthru
      _
    // Predicated region
    $region74: #{vqa_forward.1} parent=1 // pred_check
      _
    $region75: #{vqa_forward.1} parent=1 // pred_check_branch
      %155 = sbr.rel (0) target = $region77
    $region76: #{vqa_forward.1} parent=1 // pred_region
      _
    $region77: #{vqa_forward.1} parent=1 // pred_fallthru
      _
    // Predicated region
    $region78: #{vqa_forward.1} parent=1 // pred_check
      _
    $region79: #{vqa_forward.1} parent=1 // pred_check_branch
      %157 = sbr.rel (0) target = $region81
    $region80: #{vqa_forward.1} parent=1 // pred_region
      %158 = dma.done [#allocation6], 16
    $region81: #{vqa_forward.1} parent=1 // pred_fallthru
      _
    // Predicated region
    $region82: #{vqa_forward.1} parent=1 // pred_check
      _
    $region83: #{vqa_forward.1} parent=1 // pred_check_branch
      %160 = sbr.rel (0) target = $region85
    $region84: #{vqa_forward.1} parent=1 // pred_region
      %161 = dma.done [#allocation5], 1024
    $region85: #{vqa_forward.1} parent=1 // pred_fallthru
      _
    // Predicated region
    $region86: #{vqa_forward.1} parent=1 // pred_check
      _
    $region87: #{vqa_forward.1} parent=1 // pred_check_branch
      %163 = sbr.rel (0) target = $region89
    $region88: #{vqa_forward.1} parent=1 // pred_region
      %164 = dma.done [#allocation9], 1664
    $region89: #{vqa_forward.1} parent=1 // pred_fallthru
      _
    // Predicated region
    $region90: #{vqa_forward.1} parent=1 // pred_check
      _
    $region91: #{vqa_forward.1} parent=1 // pred_check_branch
      %166 = sbr.rel (0) target = $region93
    $region92: #{vqa_forward.1} parent=1 // pred_region
      %167 = dma.done [#allocation9], 4096
    $region93: #{vqa_forward.1} parent=1 // pred_fallthru
      _
    // Predicated region
    $region94: #{vqa_forward.1} parent=1 // pred_check
      _
    $region95: #{vqa_forward.1} parent=1 // pred_check_branch
      %169 = sbr.rel (0) target = $region97
    $region96: #{vqa_forward.1} parent=1 // pred_region
      %170 = dma.done [#allocation12], 4096
    $region97: #{vqa_forward.1} parent=1 // pred_fallthru
      _
    // Predicated region
    $region98: #{vqa_forward.1} parent=1 // pred_check
      _
    $region99: #{vqa_forward.1} parent=1 // pred_check_branch
      %172 = sbr.rel (0) target = $region101
    $region100: #{vqa_forward.1} parent=1 // pred_region
      %173 = dma.done [#allocation12], 4096
    $region101: #{vqa_forward.1} parent=1 // pred_fallthru
      _
    // Predicated region
    $region102: #{vqa_forward.1} parent=1 // pred_check
      _
    $region103: #{vqa_forward.1} parent=1 // pred_check_branch
      %175 = sbr.rel (0) target = $region105
    $region104: #{vqa_forward.1} parent=1 // pred_region
      %176 = dma.done [#allocation15], 4096
    $region105: #{vqa_forward.1} parent=1 // pred_fallthru
      _
    // Predicated region
    $region106: #{vqa_forward.1} parent=1 // pred_check
      _
    $region107: #{vqa_forward.1} parent=1 // pred_check_branch
      %178 = sbr.rel (0) target = $region109
    $region108: #{vqa_forward.1} parent=1 // pred_region
      %179 = dma.done [#allocation15], 1024
    $region109: #{vqa_forward.1} parent=1 // pred_fallthru
      _
    // Predicated region
    $region110: #{vqa_forward.1} parent=1 // pred_check
      _
    $region111: #{vqa_forward.1} parent=1 // pred_check_branch
      %181 = sbr.rel (0) target = $region113
    $region112: #{vqa_forward.1} parent=1 // pred_region
      %182 = dma.done [#allocation18], 1024
    $region113: #{vqa_forward.1} parent=1 // pred_fallthru
      _
    %183 = sfence
    %v185 = vld [vmem:[%s1] sm:$0xff]
    %v186 = vld [vmem:[%s1 + $0x8] sm:$0xff]
    %v187 = vld [vmem:[%s1 + $0x10] sm:$0xff]
    %v188 = vld [vmem:[%s1 + $0x18] sm:$0xff]
    %v189 = vld [vmem:[%s1 + $0x20] sm:$0xff]
    %v190 = vld [vmem:[%s1 + $0x28] sm:$0xff]
    %v191 = vld [vmem:[%s1 + $0x30] sm:$0xff]
    %v192 = vld [vmem:[%s1 + $0x38] sm:$0xff]
    %v193 = vld [vmem:[%s1 + $0x40] sm:$0xff]
    %v194 = vld [vmem:[%s1 + $0x48] sm:$0xff]
    %v195 = vld [vmem:[%s1 + $0x50] sm:$0xff]
    %v196 = vld [vmem:[%s1 + $0x58] sm:$0xff]
    %v197 = vld [vmem:[%s1 + $0x60] sm:$0xff]
    %v198 = vld [vmem:[%s1 + $0x68] sm:$0xff]
    %v199 = vld [vmem:[%s1 + $0x70] sm:$0xff]
    %v200 = vld [vmem:[%s1 + $0x78] sm:$0xff]
    %v201 = vadd.f32 %v185, %v186
    %202 = vadd.xlane.f32.xlu0 %v201
    %v203 = vpop.xlane.xlu0 %202
    %v204 = vadd.f32 %v187, %v188
    %205 = vadd.xlane.f32.xlu0 %v204
    %v206 = vpop.xlane.xlu0 %205
    %v207 = vadd.f32 %v189, %v190
    %208 = vadd.xlane.f32.xlu0 %v207
    %v209 = vpop.xlane.xlu0 %208
    %v210 = vadd.f32 %v191, %v192
    %211 = vadd.xlane.f32.xlu0 %v210
    %v212 = vpop.xlane.xlu0 %211
    %v213 = vadd.f32 %v193, %v194
    %214 = vadd.xlane.f32.xlu0 %v213
    %v215 = vpop.xlane.xlu0 %214
    %v216 = vadd.f32 %v195, %v196
    %217 = vadd.xlane.f32.xlu0 %v216
    %v218 = vpop.xlane.xlu0 %217
    %v219 = vadd.f32 %v197, %v198
    %220 = vadd.xlane.f32.xlu0 %v219
    %v221 = vpop.xlane.xlu0 %220
    %v222 = vadd.f32 %v199, %v200
    %223 = vadd.xlane.f32.xlu0 %v222
    %v224 = vpop.xlane.xlu0 %223
    %v225 = vrcp.pop 256.0
    %v226 = vmul.f32 %v203, %v225
    %v227 = vmul.f32 %v206, %v225
    %v228 = vmul.f32 %v209, %v225
    %v229 = vmul.f32 %v212, %v225
    %v230 = vmul.f32 %v215, %v225
    %v231 = vmul.f32 %v218, %v225
    %v232 = vmul.f32 %v221, %v225
    %v233 = vmul.f32 %v224, %v225
    %v234 = vpack.c.bf16 %v226, %v226
    %v235 = vpack.c.bf16 %v227, %v227
    %v236 = vpack.c.bf16 %v228, %v228
    %v237 = vpack.c.bf16 %v229, %v229
    %v238 = vpack.c.bf16 %v230, %v230
    %v239 = vpack.c.bf16 %v231, %v231
    %v240 = vpack.c.bf16 %v232, %v232
    %v241 = vpack.c.bf16 %v233, %v233
    %v242 = vld [vmem:[%s2] sm:$0xf]
    %v243 = vld [vmem:[%s3] sm:$0x1]
    %v245 = vlaneseq
    %v246 = vshrl.u32 %v245, 7
    %v247 = vsub.s32 0, %v246
    %v248 = vrot.slane %v243, %v247
    %v258 = vunpack.c.l.b16 %v234
    %v259 = vunpack.c.l.b16 %v235
    %v260 = vunpack.c.l.b16 %v236
    %v261 = vunpack.c.l.b16 %v237
    %v262 = vunpack.c.l.b16 %v238
    %v263 = vunpack.c.l.b16 %v239
    %v264 = vunpack.c.l.b16 %v240
    %v265 = vunpack.c.l.b16 %v241
    %v266 = vlaneseq
    %v267 = vand.u32 %v266, 127
    %v268 = vlaneseq
    %v269 = vshrl.u32 %v268, 7
    %v270 = vsub.s32 %v267, %v269
    %v271 = vrot.slane %v258, %v270
    %v272 = vlaneseq
    %v273 = vshrl.u32 %v272, 7
    %v274 = vsub.s32 %v267, %v273
    %v275 = vrot.slane %v259, %v274
    %v276 = vlaneseq
    %v277 = vshrl.u32 %v276, 7
    %v278 = vsub.s32 %v267, %v277
    %v279 = vrot.slane %v260, %v278
    %v280 = vlaneseq
    %v281 = vshrl.u32 %v280, 7
    %v282 = vsub.s32 %v267, %v281
    %v283 = vrot.slane %v261, %v282
    %v284 = vlaneseq
    %v285 = vshrl.u32 %v284, 7
    %v286 = vsub.s32 %v267, %v285
    %v287 = vrot.slane %v262, %v286
    %v288 = vlaneseq
    %v289 = vshrl.u32 %v288, 7
    %v290 = vsub.s32 %v267, %v289
    %v291 = vrot.slane %v263, %v290
    %v292 = vlaneseq
    %v293 = vshrl.u32 %v292, 7
    %v294 = vsub.s32 %v267, %v293
    %v295 = vrot.slane %v264, %v294
    %v296 = vlaneseq
    %v297 = vshrl.u32 %v296, 7
    %v298 = vsub.s32 %v267, %v297
    %v299 = vrot.slane %v265, %v298
    %vm300 = vcmask 1041409
    %v301 = vsel %vm300, %v275, %v271
    %vm302 = vcmask 1042434
    %v303 = vsel %vm302, %v279, %v301
    %vm304 = vcmask 1043459
    %v305 = vsel %vm304, %v283, %v303
    %vm306 = vcmask 1044484
    %v307 = vsel %vm306, %v287, %v305
    %vm308 = vcmask 1045509
    %v309 = vsel %vm308, %v291, %v307
    %vm310 = vcmask 1046534
    %v311 = vsel %vm310, %v295, %v309
    %vm312 = vcmask 1047559
    %v313 = vsel %vm312, %v299, %v311
    %v314 = vpack.c.b16 %v313, %v313
    %vm315 = vcmask 64512
    %v317 = vsel %vm315, %v314, 0
    %vm319 = vcmask 1043456
    %v321 = vsel %vm319, %v242, 0
    %323 = vmatprep.subr.bf16.mxu0 0
    %324 = vmatpush1.bf16.msra.mxu0 0
    %325 = vmatprep.subr.bf16.mxu0 0
    %326 = vmatpush1.bf16.msra.mxu0 0
    %327 = vmatprep.subr.bf16.mxu0 0
    %328 = vmatpush1.bf16.msra.mxu0 0
    %329 = vmatprep.subr.bf16.mxu0 0
    %330 = vmatpush1.bf16.msra.mxu0 0
    %331 = vmatprep.subr.bf16.mxu0 0
    %332 = vmatpush1.bf16.msra.mxu0 0
    %333 = vmatprep.subr.bf16.mxu0 0
    %334 = vmatpush1.bf16.msra.mxu0 0
    %335 = vmatprep.subr.bf16.mxu0 0
    %336 = vmatpush1.bf16.msra.mxu0 0
    %337 = vmatprep.subr.bf16.mxu0 0
    %338 = vmatpush1.bf16.msra.mxu0 %v321
    %339 = vmatprep.subr.bf16.mxu0 0
    %340 = vmatpush2.bf16.msra.mxu0 0
    %341 = vmatprep.subr.bf16.mxu0 0
    %342 = vmatpush2.bf16.msra.mxu0 0
    %343 = vmatprep.subr.bf16.mxu0 0
    %344 = vmatpush2.bf16.msra.mxu0 0
    %345 = vmatprep.subr.bf16.mxu0 0
    %346 = vmatpush2.bf16.msra.mxu0 0
    %347 = vmatprep.subr.bf16.mxu0 0
    %348 = vmatpush2.bf16.msra.mxu0 0
    %349 = vmatprep.subr.bf16.mxu0 0
    %350 = vmatpush2.bf16.msra.mxu0 0
    %351 = vmatprep.subr.bf16.mxu0 0
    %352 = vmatpush2.bf16.msra.mxu0 0
    %353 = vmatprep.subr.bf16.mxu0 0
    %354 = vmatpush2.bf16.msra.mxu0 0
    %355 = vmatprep.mubr.bf16.mxu0 0
    %356 = vmatmul.mubr.bf16.gmra.mxu0 %v317
    %v357 = vpop.f32.mrf.mxu0
    %v358 = vadd.f32 %v248, %v357
    %v359 = vpop.f32.mrf.mxu0
    %v360 = vpop.f32.mrf.mxu0
    %v361 = vpop.f32.mrf.mxu0
    %362 = vdwg.mxu0
    %v363 = vpack.c.bf16 %v358, %v358
    %v364 = vld [vmem:[#allocation7] sm:$0xf]
    %v365 = vld [vmem:[#allocation7 + $0x4] sm:$0xf]
    %v366 = vld [vmem:[#allocation7 + $0x8] sm:$0xf]
    %v367 = vld [vmem:[#allocation7 + $0xc] sm:$0xf]
    %v368 = vld [vmem:[#allocation7 + $0x10] sm:$0xf]
    %v369 = vld [vmem:[#allocation7 + $0x14] sm:$0xf]
    %v370 = vld [vmem:[#allocation7 + $0x18] sm:$0xf]
    %v371 = vld [vmem:[#allocation7 + $0x1c] sm:$0xf]
    %v372 = vld [vmem:[#allocation7 + $0x20] sm:$0xf]
    %v373 = vld [vmem:[#allocation7 + $0x24] sm:$0xf]
    %v374 = vld [vmem:[#allocation7 + $0x28] sm:$0xf]
    %v375 = vld [vmem:[#allocation7 + $0x2c] sm:$0xf]
    %v376 = vld [vmem:[#allocation7 + $0x30] sm:$0xf]
    %v377 = vld [vmem:[#allocation7 + $0x34] sm:$0xf]
    %v378 = vld [vmem:[#allocation7 + $0x38] sm:$0xf]
    %v379 = vld [vmem:[#allocation7 + $0x3c] sm:$0xf]
    %v380 = vld [vmem:[%s5] sm:$0x1]
    %v382 = vlaneseq
    %v383 = vshrl.u32 %v382, 7
    %v384 = vsub.s32 0, %v383
    %v385 = vrot.slane %v380, %v384
    %v403 = vunpack.c.l.b16 %v364
    %v404 = vunpack.c.l.b16 %v365
    %v405 = vunpack.c.l.b16 %v366
    %v406 = vunpack.c.l.b16 %v367
    %v407 = vunpack.c.l.b16 %v368
    %v408 = vunpack.c.l.b16 %v369
    %v409 = vunpack.c.l.b16 %v370
    %v410 = vunpack.c.l.b16 %v371
    %v411 = vunpack.c.l.b16 %v372
    %v412 = vunpack.c.l.b16 %v373
    %v413 = vunpack.c.l.b16 %v374
    %v414 = vunpack.c.l.b16 %v375
    %v415 = vunpack.c.l.b16 %v376
    %v416 = vunpack.c.l.b16 %v377
    %v417 = vunpack.c.l.b16 %v378
    %v418 = vunpack.c.l.b16 %v379
    %v419 = vpack.c.b16 %v404, %v403
    %v420 = vpack.c.b16 %v406, %v405
    %v421 = vpack.c.b16 %v408, %v407
    %v422 = vpack.c.b16 %v410, %v409
    %v423 = vpack.c.b16 %v412, %v411
    %v424 = vpack.c.b16 %v414, %v413
    %v425 = vpack.c.b16 %v416, %v415
    %v426 = vpack.c.b16 %v418, %v417
    %435 = vmatprep.subr.bf16.mxu0 0
    %436 = vmatpush1.bf16.msra.mxu0 %v426
    %437 = vmatprep.subr.bf16.mxu0 0
    %438 = vmatpush1.bf16.msra.mxu0 %v425
    %439 = vmatprep.subr.bf16.mxu0 0
    %440 = vmatpush1.bf16.msra.mxu0 %v424
    %441 = vmatprep.subr.bf16.mxu0 0
    %442 = vmatpush1.bf16.msra.mxu0 %v423
    %443 = vmatprep.subr.bf16.mxu0 0
    %444 = vmatpush1.bf16.msra.mxu0 %v422
    %445 = vmatprep.subr.bf16.mxu0 0
    %446 = vmatpush1.bf16.msra.mxu0 %v421
    %447 = vmatprep.subr.bf16.mxu0 0
    %448 = vmatpush1.bf16.msra.mxu0 %v420
    %449 = vmatprep.subr.bf16.mxu0 0
    %450 = vmatpush1.bf16.msra.mxu0 %v419
    %451 = vmatprep.subr.bf16.mxu0 0
    %452 = vmatpush2.bf16.msra.mxu0 0
    %453 = vmatprep.subr.bf16.mxu0 0
    %454 = vmatpush2.bf16.msra.mxu0 0
    %455 = vmatprep.subr.bf16.mxu0 0
    %456 = vmatpush2.bf16.msra.mxu0 0
    %457 = vmatprep.subr.bf16.mxu0 0
    %458 = vmatpush2.bf16.msra.mxu0 0
    %459 = vmatprep.subr.bf16.mxu0 0
    %460 = vmatpush2.bf16.msra.mxu0 0
    %461 = vmatprep.subr.bf16.mxu0 0
    %462 = vmatpush2.bf16.msra.mxu0 0
    %463 = vmatprep.subr.bf16.mxu0 0
    %464 = vmatpush2.bf16.msra.mxu0 0
    %465 = vmatprep.subr.bf16.mxu0 0
    %466 = vmatpush2.bf16.msra.mxu0 0
    %467 = vmatprep.mubr.bf16.mxu0 0
    %468 = vmatmul.mubr.bf16.gmra.mxu0 %v363
    %v469 = vpop.f32.mrf.mxu0
    %v470 = vadd.f32 %v385, %v469
    %v471 = vpop.f32.mrf.mxu0
    %v472 = vpop.f32.mrf.mxu0
    %v473 = vpop.f32.mrf.mxu0
    %474 = vdwg.mxu0
    %s475 = sld [smem:[#allocation4]]
    %s476 = scalar_lea.vmem [#allocation8], %s475
    %v477 = vld [vmem:[%s476] sm:$0x1]
    %478 = vst [vmem:[#allocation2] sm:$0x1] %v477
    %s479 = sld [smem:[#allocation4 + $0x1]]
    %s480 = scalar_lea.vmem [#allocation8], %s479
    %v481 = vld [vmem:[%s480] sm:$0x1]
    %482 = vst [vmem:[#allocation2 + $0x1] sm:$0x1] %v481
    %s483 = sld [smem:[#allocation4 + $0x2]]
    %s484 = scalar_lea.vmem [#allocation8], %s483
    %v485 = vld [vmem:[%s484] sm:$0x1]
    %486 = vst [vmem:[#allocation2 + $0x2] sm:$0x1] %v485
    %s487 = sld [smem:[#allocation4 + $0x3]]
    %s488 = scalar_lea.vmem [#allocation8], %s487
    %v489 = vld [vmem:[%s488] sm:$0x1]
    %490 = vst [vmem:[#allocation2 + $0x3] sm:$0x1] %v489
    %s491 = sld [smem:[#allocation4 + $0x4]]
    %s492 = scalar_lea.vmem [#allocation8], %s491
    %v493 = vld [vmem:[%s492] sm:$0x1]
    %494 = vst [vmem:[#allocation2 + $0x4] sm:$0x1] %v493
    %s495 = sld [smem:[#allocation4 + $0x5]]
    %s496 = scalar_lea.vmem [#allocation8], %s495
    %v497 = vld [vmem:[%s496] sm:$0x1]
    %498 = vst [vmem:[#allocation2 + $0x5] sm:$0x1] %v497
    %s499 = sld [smem:[#allocation4 + $0x6]]
    %s500 = scalar_lea.vmem [#allocation8], %s499
    %v501 = vld [vmem:[%s500] sm:$0x1]
    %502 = vst [vmem:[#allocation2 + $0x6] sm:$0x1] %v501
    %s503 = sld [smem:[#allocation4 + $0x7]]
    %s504 = scalar_lea.vmem [#allocation8], %s503
    %v505 = vld [vmem:[%s504] sm:$0x1]
    %506 = vst [vmem:[#allocation2 + $0x7] sm:$0x1] %v505
    %s507 = sld [smem:[#allocation4 + $0x8]]
    %s508 = scalar_lea.vmem [#allocation8], %s507
    %v509 = vld [vmem:[%s508] sm:$0x1]
    %510 = vst [vmem:[#allocation2 + $0x8] sm:$0x1] %v509
    %s511 = sld [smem:[#allocation4 + $0x9]]
    %s512 = scalar_lea.vmem [#allocation8], %s511
    %v513 = vld [vmem:[%s512] sm:$0x1]
    %514 = vst [vmem:[#allocation2 + $0x9] sm:$0x1] %v513
    %s515 = sld [smem:[#allocation4 + $0xa]]
    %s516 = scalar_lea.vmem [#allocation8], %s515
    %v517 = vld [vmem:[%s516] sm:$0x1]
    %518 = vst [vmem:[#allocation2 + $0xa] sm:$0x1] %v517
    %s519 = sld [smem:[#allocation4 + $0xb]]
    %s520 = scalar_lea.vmem [#allocation8], %s519
    %v521 = vld [vmem:[%s520] sm:$0x1]
    %522 = vst [vmem:[#allocation2 + $0xb] sm:$0x1] %v521
    %s523 = sld [smem:[#allocation4 + $0xc]]
    %s524 = scalar_lea.vmem [#allocation8], %s523
    %v525 = vld [vmem:[%s524] sm:$0x1]
    %526 = vst [vmem:[#allocation2 + $0xc] sm:$0x1] %v525
    %s527 = sld [smem:[#allocation4 + $0xd]]
    %s528 = scalar_lea.vmem [#allocation8], %s527
    %v529 = vld [vmem:[%s528] sm:$0x1]
    %530 = vst [vmem:[#allocation2 + $0xd] sm:$0x1] %v529
    %s531 = sld [smem:[#allocation4 + $0xe]]
    %s532 = scalar_lea.vmem [#allocation8], %s531
    %v533 = vld [vmem:[%s532] sm:$0x1]
    %534 = vst [vmem:[#allocation2 + $0xe] sm:$0x1] %v533
    %s535 = sld [smem:[#allocation4 + $0xf]]
    %s536 = scalar_lea.vmem [#allocation8], %s535
    %v537 = vld [vmem:[%s536] sm:$0x1]
    %538 = vst [vmem:[#allocation2 + $0xf] sm:$0x1] %v537
    %s539 = sld [smem:[#allocation4 + $0x10]]
    %s540 = scalar_lea.vmem [#allocation8], %s539
    %v541 = vld [vmem:[%s540] sm:$0x1]
    %542 = vst [vmem:[#allocation2 + $0x10] sm:$0x1] %v541
    %s543 = sld [smem:[#allocation4 + $0x11]]
    %s544 = scalar_lea.vmem [#allocation8], %s543
    %v545 = vld [vmem:[%s544] sm:$0x1]
    %546 = vst [vmem:[#allocation2 + $0x11] sm:$0x1] %v545
    %s547 = sld [smem:[#allocation4 + $0x12]]
    %s548 = scalar_lea.vmem [#allocation8], %s547
    %v549 = vld [vmem:[%s548] sm:$0x1]
    %550 = vst [vmem:[#allocation2 + $0x12] sm:$0x1] %v549
    %s551 = sld [smem:[#allocation4 + $0x13]]
    %s552 = scalar_lea.vmem [#allocation8], %s551
    %v553 = vld [vmem:[%s552] sm:$0x1]
    %554 = vst [vmem:[#allocation2 + $0x13] sm:$0x1] %v553
    %s555 = sld [smem:[#allocation4 + $0x14]]
    %s556 = scalar_lea.vmem [#allocation8], %s555
    %v557 = vld [vmem:[%s556] sm:$0x1]
    %558 = vst [vmem:[#allocation2 + $0x14] sm:$0x1] %v557
    %s559 = sld [smem:[#allocation4 + $0x15]]
    %s560 = scalar_lea.vmem [#allocation8], %s559
    %v561 = vld [vmem:[%s560] sm:$0x1]
    %562 = vst [vmem:[#allocation2 + $0x15] sm:$0x1] %v561
    %s563 = sld [smem:[#allocation4 + $0x16]]
    %s564 = scalar_lea.vmem [#allocation8], %s563
    %v565 = vld [vmem:[%s564] sm:$0x1]
    %566 = vst [vmem:[#allocation2 + $0x16] sm:$0x1] %v565
    %s567 = sld [smem:[#allocation4 + $0x17]]
    %s568 = scalar_lea.vmem [#allocation8], %s567
    %v569 = vld [vmem:[%s568] sm:$0x1]
    %570 = vst [vmem:[#allocation2 + $0x17] sm:$0x1] %v569
    %s571 = sld [smem:[#allocation4 + $0x18]]
    %s572 = scalar_lea.vmem [#allocation8], %s571
    %v573 = vld [vmem:[%s572] sm:$0x1]
    %574 = vst [vmem:[#allocation2 + $0x18] sm:$0x1] %v573
    %s575 = sld [smem:[#allocation4 + $0x19]]
    %s576 = scalar_lea.vmem [#allocation8], %s575
    %v577 = vld [vmem:[%s576] sm:$0x1]
    %578 = vst [vmem:[#allocation2 + $0x19] sm:$0x1] %v577
    %s579 = sld [smem:[#allocation4 + $0x1a]]
    %s580 = scalar_lea.vmem [#allocation8], %s579
    %v581 = vld [vmem:[%s580] sm:$0x1]
    %582 = vst [vmem:[#allocation2 + $0x1a] sm:$0x1] %v581
    %s583 = sld [smem:[#allocation4 + $0x1b]]
    %s584 = scalar_lea.vmem [#allocation8], %s583
    %v585 = vld [vmem:[%s584] sm:$0x1]
    %586 = vst [vmem:[#allocation2 + $0x1b] sm:$0x1] %v585
    %s587 = sld [smem:[#allocation4 + $0x1c]]
    %s588 = scalar_lea.vmem [#allocation8], %s587
    %v589 = vld [vmem:[%s588] sm:$0x1]
    %590 = vst [vmem:[#allocation2 + $0x1c] sm:$0x1] %v589
    %s591 = sld [smem:[#allocation4 + $0x1d]]
    %s592 = scalar_lea.vmem [#allocation8], %s591
    %v593 = vld [vmem:[%s592] sm:$0x1]
    %594 = vst [vmem:[#allocation2 + $0x1d] sm:$0x1] %v593
    %s595 = sld [smem:[#allocation4 + $0x1e]]
    %s596 = scalar_lea.vmem [#allocation8], %s595
    %v597 = vld [vmem:[%s596] sm:$0x1]
    %598 = vst [vmem:[#allocation2 + $0x1e] sm:$0x1] %v597
    %s599 = sld [smem:[#allocation4 + $0x1f]]
    %s600 = scalar_lea.vmem [#allocation8], %s599
    %v601 = vld [vmem:[%s600] sm:$0x1]
    %602 = vst [vmem:[#allocation2 + $0x1f] sm:$0x1] %v601
    %s603 = sld [smem:[#allocation4 + $0x20]]
    %s604 = scalar_lea.vmem [#allocation8], %s603
    %v605 = vld [vmem:[%s604] sm:$0x1]
    %606 = vst [vmem:[#allocation2 + $0x20] sm:$0x1] %v605
    %s607 = sld [smem:[#allocation4 + $0x21]]
    %s608 = scalar_lea.vmem [#allocation8], %s607
    %v609 = vld [vmem:[%s608] sm:$0x1]
    %610 = vst [vmem:[#allocation2 + $0x21] sm:$0x1] %v609
    %s611 = sld [smem:[#allocation4 + $0x22]]
    %s612 = scalar_lea.vmem [#allocation8], %s611
    %v613 = vld [vmem:[%s612] sm:$0x1]
    %614 = vst [vmem:[#allocation2 + $0x22] sm:$0x1] %v613
    %s615 = sld [smem:[#allocation4 + $0x23]]
    %s616 = scalar_lea.vmem [#allocation8], %s615
    %v617 = vld [vmem:[%s616] sm:$0x1]
    %618 = vst [vmem:[#allocation2 + $0x23] sm:$0x1] %v617
    %s619 = sld [smem:[#allocation4 + $0x24]]
    %s620 = scalar_lea.vmem [#allocation8], %s619
    %v621 = vld [vmem:[%s620] sm:$0x1]
    %622 = vst [vmem:[#allocation2 + $0x24] sm:$0x1] %v621
    %s623 = sld [smem:[#allocation4 + $0x25]]
    %s624 = scalar_lea.vmem [#allocation8], %s623
    %v625 = vld [vmem:[%s624] sm:$0x1]
    %626 = vst [vmem:[#allocation2 + $0x25] sm:$0x1] %v625
    %s627 = sld [smem:[#allocation4 + $0x26]]
    %s628 = scalar_lea.vmem [#allocation8], %s627
    %v629 = vld [vmem:[%s628] sm:$0x1]
    %630 = vst [vmem:[#allocation2 + $0x26] sm:$0x1] %v629
    %s631 = sld [smem:[#allocation4 + $0x27]]
    %s632 = scalar_lea.vmem [#allocation8], %s631
    %v633 = vld [vmem:[%s632] sm:$0x1]
    %634 = vst [vmem:[#allocation2 + $0x27] sm:$0x1] %v633
    %s635 = sld [smem:[#allocation4 + $0x28]]
    %s636 = scalar_lea.vmem [#allocation8], %s635
    %v637 = vld [vmem:[%s636] sm:$0x1]
    %638 = vst [vmem:[#allocation2 + $0x28] sm:$0x1] %v637
    %s639 = sld [smem:[#allocation4 + $0x29]]
    %s640 = scalar_lea.vmem [#allocation8], %s639
    %v641 = vld [vmem:[%s640] sm:$0x1]
    %642 = vst [vmem:[#allocation2 + $0x29] sm:$0x1] %v641
    %s643 = sld [smem:[#allocation4 + $0x2a]]
    %s644 = scalar_lea.vmem [#allocation8], %s643
    %v645 = vld [vmem:[%s644] sm:$0x1]
    %646 = vst [vmem:[#allocation2 + $0x2a] sm:$0x1] %v645
    %s647 = sld [smem:[#allocation4 + $0x2b]]
    %s648 = scalar_lea.vmem [#allocation8], %s647
    %v649 = vld [vmem:[%s648] sm:$0x1]
    %650 = vst [vmem:[#allocation2 + $0x2b] sm:$0x1] %v649
    %s651 = sld [smem:[#allocation4 + $0x2c]]
    %s652 = scalar_lea.vmem [#allocation8], %s651
    %v653 = vld [vmem:[%s652] sm:$0x1]
    %654 = vst [vmem:[#allocation2 + $0x2c] sm:$0x1] %v653
    %s655 = sld [smem:[#allocation4 + $0x2d]]
    %s656 = scalar_lea.vmem [#allocation8], %s655
    %v657 = vld [vmem:[%s656] sm:$0x1]
    %658 = vst [vmem:[#allocation2 + $0x2d] sm:$0x1] %v657
    %s659 = sld [smem:[#allocation4 + $0x2e]]
    %s660 = scalar_lea.vmem [#allocation8], %s659
    %v661 = vld [vmem:[%s660] sm:$0x1]
    %662 = vst [vmem:[#allocation2 + $0x2e] sm:$0x1] %v661
    %s663 = sld [smem:[#allocation4 + $0x2f]]
    %s664 = scalar_lea.vmem [#allocation8], %s663
    %v665 = vld [vmem:[%s664] sm:$0x1]
    %666 = vst [vmem:[#allocation2 + $0x2f] sm:$0x1] %v665
    %s667 = sld [smem:[#allocation4 + $0x30]]
    %s668 = scalar_lea.vmem [#allocation8], %s667
    %v669 = vld [vmem:[%s668] sm:$0x1]
    %670 = vst [vmem:[#allocation2 + $0x30] sm:$0x1] %v669
    %s671 = sld [smem:[#allocation4 + $0x31]]
    %s672 = scalar_lea.vmem [#allocation8], %s671
    %v673 = vld [vmem:[%s672] sm:$0x1]
    %674 = vst [vmem:[#allocation2 + $0x31] sm:$0x1] %v673
    %s675 = sld [smem:[#allocation4 + $0x32]]
    %s676 = scalar_lea.vmem [#allocation8], %s675
    %v677 = vld [vmem:[%s676] sm:$0x1]
    %678 = vst [vmem:[#allocation2 + $0x32] sm:$0x1] %v677
    %s679 = sld [smem:[#allocation4 + $0x33]]
    %s680 = scalar_lea.vmem [#allocation8], %s679
    %v681 = vld [vmem:[%s680] sm:$0x1]
    %682 = vst [vmem:[#allocation2 + $0x33] sm:$0x1] %v681
    %s683 = sld [smem:[#allocation4 + $0x34]]
    %s684 = scalar_lea.vmem [#allocation8], %s683
    %v685 = vld [vmem:[%s684] sm:$0x1]
    %686 = vst [vmem:[#allocation2 + $0x34] sm:$0x1] %v685
    %s687 = sld [smem:[#allocation4 + $0x35]]
    %s688 = scalar_lea.vmem [#allocation8], %s687
    %v689 = vld [vmem:[%s688] sm:$0x1]
    %690 = vst [vmem:[#allocation2 + $0x35] sm:$0x1] %v689
    %s691 = sld [smem:[#allocation4 + $0x36]]
    %s692 = scalar_lea.vmem [#allocation8], %s691
    %v693 = vld [vmem:[%s692] sm:$0x1]
    %694 = vst [vmem:[#allocation2 + $0x36] sm:$0x1] %v693
    %s695 = sld [smem:[#allocation4 + $0x37]]
    %s696 = scalar_lea.vmem [#allocation8], %s695
    %v697 = vld [vmem:[%s696] sm:$0x1]
    %698 = vst [vmem:[#allocation2 + $0x37] sm:$0x1] %v697
    %s699 = sld [smem:[#allocation4 + $0x38]]
    %s700 = scalar_lea.vmem [#allocation8], %s699
    %v701 = vld [vmem:[%s700] sm:$0x1]
    %702 = vst [vmem:[#allocation2 + $0x38] sm:$0x1] %v701
    %s703 = sld [smem:[#allocation4 + $0x39]]
    %s704 = scalar_lea.vmem [#allocation8], %s703
    %v705 = vld [vmem:[%s704] sm:$0x1]
    %706 = vst [vmem:[#allocation2 + $0x39] sm:$0x1] %v705
    %s707 = sld [smem:[#allocation4 + $0x3a]]
    %s708 = scalar_lea.vmem [#allocation8], %s707
    %v709 = vld [vmem:[%s708] sm:$0x1]
    %710 = vst [vmem:[#allocation2 + $0x3a] sm:$0x1] %v709
    %s711 = sld [smem:[#allocation4 + $0x3b]]
    %s712 = scalar_lea.vmem [#allocation8], %s711
    %v713 = vld [vmem:[%s712] sm:$0x1]
    %714 = vst [vmem:[#allocation2 + $0x3b] sm:$0x1] %v713
    %s715 = sld [smem:[#allocation4 + $0x3c]]
    %s716 = scalar_lea.vmem [#allocation8], %s715
    %v717 = vld [vmem:[%s716] sm:$0x1]
    %718 = vst [vmem:[#allocation2 + $0x3c] sm:$0x1] %v717
    %s719 = sld [smem:[#allocation4 + $0x3d]]
    %s720 = scalar_lea.vmem [#allocation8], %s719
    %v721 = vld [vmem:[%s720] sm:$0x1]
    %722 = vst [vmem:[#allocation2 + $0x3d] sm:$0x1] %v721
    %s723 = sld [smem:[#allocation4 + $0x3e]]
    %s724 = scalar_lea.vmem [#allocation8], %s723
    %v725 = vld [vmem:[%s724] sm:$0x1]
    %726 = vst [vmem:[#allocation2 + $0x3e] sm:$0x1] %v725
    %s727 = sld [smem:[#allocation4 + $0x3f]]
    %s728 = scalar_lea.vmem [#allocation8], %s727
    %v729 = vld [vmem:[%s728] sm:$0x1]
    %730 = vst [vmem:[#allocation2 + $0x3f] sm:$0x1] %v729
    %v731 = vld [vmem:[#allocation2] sm:$0xff]
    %v732 = vld [vmem:[#allocation2 + $0x8] sm:$0xff]
    %v733 = vld [vmem:[#allocation2 + $0x10] sm:$0xff]
    %v734 = vld [vmem:[#allocation2 + $0x18] sm:$0xff]
    %v735 = vld [vmem:[#allocation2 + $0x20] sm:$0xff]
    %v736 = vld [vmem:[#allocation2 + $0x28] sm:$0xff]
    %v737 = vld [vmem:[#allocation2 + $0x30] sm:$0xff]
    %v738 = vld [vmem:[#allocation2 + $0x38] sm:$0xff]
    %v739 = vtanh.pop %v731
    %v740 = vtanh.pop %v732
    %v741 = vtanh.pop %v733
    %v742 = vtanh.pop %v734
    %v743 = vtanh.pop %v735
    %v744 = vtanh.pop %v736
    %v745 = vtanh.pop %v737
    %v746 = vtanh.pop %v738
    %v747 = vld [vmem:[#allocation10] sm:$0xff]
    %v748 = vld [vmem:[#allocation10 + $0x8] sm:$0xff]
    %v749 = vld [vmem:[#allocation10 + $0x10] sm:$0xff]
    %v750 = vld [vmem:[#allocation10 + $0x18] sm:$0xff]
    %v751 = vld [vmem:[#allocation10 + $0x20] sm:$0xff]
    %v752 = vld [vmem:[#allocation10 + $0x28] sm:$0xff]
    %v753 = vld [vmem:[#allocation10 + $0x30] sm:$0xff]
    %v754 = vld [vmem:[#allocation10 + $0x38] sm:$0xff]
    %v755 = vld [vmem:[#allocation10 + $0x40] sm:$0xff]
    %v756 = vld [vmem:[#allocation10 + $0x48] sm:$0xff]
    %v757 = vld [vmem:[#allocation10 + $0x50] sm:$0xff]
    %v758 = vld [vmem:[#allocation10 + $0x58] sm:$0xff]
    %v759 = vld [vmem:[#allocation10 + $0x60] sm:$0xff]
    %v760 = vld [vmem:[#allocation10 + $0x68] sm:$0xff]
    %v761 = vld [vmem:[#allocation10 + $0x70] sm:$0xff]
    %v762 = vld [vmem:[#allocation10 + $0x78] sm:$0xff]
    %v763 = vld [vmem:[#allocation10 + $0x80] sm:$0xff]
    %v764 = vld [vmem:[#allocation10 + $0x88] sm:$0xff]
    %v765 = vld [vmem:[#allocation10 + $0x90] sm:$0xff]
    %v766 = vld [vmem:[#allocation10 + $0x98] sm:$0xff]
    %v767 = vld [vmem:[#allocation10 + $0xa0] sm:$0xff]
    %v768 = vld [vmem:[#allocation10 + $0xa8] sm:$0xff]
    %v769 = vld [vmem:[#allocation10 + $0xb0] sm:$0xff]
    %v770 = vld [vmem:[#allocation10 + $0xb8] sm:$0xff]
    %v771 = vld [vmem:[#allocation10 + $0xc0] sm:$0xff]
    %v772 = vld [vmem:[#allocation10 + $0xc8] sm:$0xff]
    %v773 = vld [vmem:[#allocation10 + $0xd0] sm:$0xff]
    %v774 = vld [vmem:[#allocation10 + $0xd8] sm:$0xff]
    %v775 = vld [vmem:[#allocation10 + $0xe0] sm:$0xff]
    %v776 = vld [vmem:[#allocation10 + $0xe8] sm:$0xff]
    %v777 = vld [vmem:[#allocation10 + $0xf0] sm:$0xff]
    %v778 = vld [vmem:[#allocation10 + $0xf8] sm:$0xff]
    %v779 = vpack.c.bf16 %v740, %v739
    %v780 = vpack.c.bf16 %v742, %v741
    %v781 = vpack.c.bf16 %v744, %v743
    %v782 = vpack.c.bf16 %v746, %v745
    %v783 = vld [vmem:[%s7] sm:$0xff]
    %v784 = vld [vmem:[%s7 + $0x8] sm:$0xff]
    %v785 = vld [vmem:[%s7 + $0x10] sm:$0xff]
    %v786 = vld [vmem:[%s7 + $0x18] sm:$0xff]
    %v787 = vld [vmem:[%s7 + $0x20] sm:$0xff]
    %v788 = vld [vmem:[%s7 + $0x28] sm:$0xff]
    %v789 = vld [vmem:[%s7 + $0x30] sm:$0xff]
    %v790 = vld [vmem:[%s7 + $0x38] sm:$0xff]
    %v791 = vld [vmem:[%s7 + $0x40] sm:$0xff]
    %v792 = vld [vmem:[%s7 + $0x48] sm:$0xff]
    %v793 = vld [vmem:[%s7 + $0x50] sm:$0xff]
    %v794 = vld [vmem:[%s7 + $0x58] sm:$0xff]
    %v795 = vld [vmem:[%s7 + $0x60] sm:$0xff]
    %v796 = vld [vmem:[%s7 + $0x68] sm:$0xff]
    %v797 = vld [vmem:[%s7 + $0x70] sm:$0xff]
    %v798 = vld [vmem:[%s7 + $0x78] sm:$0xff]
    %v799 = vld [vmem:[%s7 + $0x80] sm:$0xff]
    %v800 = vld [vmem:[%s7 + $0x88] sm:$0xff]
    %v801 = vld [vmem:[%s7 + $0x90] sm:$0xff]
    %v802 = vld [vmem:[%s7 + $0x98] sm:$0xff]
    %v803 = vld [vmem:[%s7 + $0xa0] sm:$0xff]
    %v804 = vld [vmem:[%s7 + $0xa8] sm:$0xff]
    %v805 = vld [vmem:[%s7 + $0xb0] sm:$0xff]
    %v806 = vld [vmem:[%s7 + $0xb8] sm:$0xff]
    %v807 = vld [vmem:[%s7 + $0xc0] sm:$0xff]
    %v808 = vld [vmem:[%s7 + $0xc8] sm:$0xff]
    %v809 = vld [vmem:[%s7 + $0xd0] sm:$0xff]
    %v810 = vld [vmem:[%s7 + $0xd8] sm:$0xff]
    %v811 = vld [vmem:[%s7 + $0xe0] sm:$0xff]
    %v812 = vld [vmem:[%s7 + $0xe8] sm:$0xff]
    %v813 = vld [vmem:[%s7 + $0xf0] sm:$0xff]
    %v814 = vld [vmem:[%s7 + $0xf8] sm:$0xff]
    %v815 = vld [vmem:[%s9] sm:$0xf]
    %v817 = vlaneseq
    %v818 = vshrl.u32 %v817, 7
    %v819 = vsub.s32 0, %v818
    %v820 = vrot.slane %v815, %v819
    %v821 = vlaneseq
    %v822 = vshrl.u32 %v821, 7
    %v823 = vsub.s32 1, %v822
    %v824 = vrot.slane %v815, %v823
    %v825 = vlaneseq
    %v826 = vshrl.u32 %v825, 7
    %v827 = vsub.s32 2, %v826
    %v828 = vrot.slane %v815, %v827
    %v829 = vlaneseq
    %v830 = vshrl.u32 %v829, 7
    %v831 = vsub.s32 3, %v830
    %v832 = vrot.slane %v815, %v831
    %v869 = vunpack.c.l.b16 %v783
    %v870 = vunpack.c.h.b16 %v783
    %v871 = vunpack.c.l.b16 %v784
    %v872 = vunpack.c.h.b16 %v784
    %v873 = vunpack.c.l.b16 %v785
    %v874 = vunpack.c.h.b16 %v785
    %v875 = vunpack.c.l.b16 %v786
    %v876 = vunpack.c.h.b16 %v786
    %v877 = vunpack.c.l.b16 %v787
    %v878 = vunpack.c.h.b16 %v787
    %v879 = vunpack.c.l.b16 %v788
    %v880 = vunpack.c.h.b16 %v788
    %v881 = vunpack.c.l.b16 %v789
    %v882 = vunpack.c.h.b16 %v789
    %v883 = vunpack.c.l.b16 %v790
    %v884 = vunpack.c.h.b16 %v790
    %v885 = vunpack.c.l.b16 %v791
    %v886 = vunpack.c.h.b16 %v791
    %v887 = vunpack.c.l.b16 %v792
    %v888 = vunpack.c.h.b16 %v792
    %v889 = vunpack.c.l.b16 %v793
    %v890 = vunpack.c.h.b16 %v793
    %v891 = vunpack.c.l.b16 %v794
    %v892 = vunpack.c.h.b16 %v794
    %v893 = vunpack.c.l.b16 %v795
    %v894 = vunpack.c.h.b16 %v795
    %v895 = vunpack.c.l.b16 %v796
    %v896 = vunpack.c.h.b16 %v796
    %v897 = vunpack.c.l.b16 %v797
    %v898 = vunpack.c.h.b16 %v797
    %v899 = vunpack.c.l.b16 %v798
    %v900 = vunpack.c.h.b16 %v798
    %v901 = vunpack.c.l.b16 %v799
    %v902 = vunpack.c.h.b16 %v799
    %v903 = vunpack.c.l.b16 %v800
    %v904 = vunpack.c.h.b16 %v800
    %v905 = vunpack.c.l.b16 %v801
    %v906 = vunpack.c.h.b16 %v801
    %v907 = vunpack.c.l.b16 %v802
    %v908 = vunpack.c.h.b16 %v802
    %v909 = vunpack.c.l.b16 %v803
    %v910 = vunpack.c.h.b16 %v803
    %v911 = vunpack.c.l.b16 %v804
    %v912 = vunpack.c.h.b16 %v804
    %v913 = vunpack.c.l.b16 %v805
    %v914 = vunpack.c.h.b16 %v805
    %v915 = vunpack.c.l.b16 %v806
    %v916 = vunpack.c.h.b16 %v806
    %v917 = vunpack.c.l.b16 %v807
    %v918 = vunpack.c.h.b16 %v807
    %v919 = vunpack.c.l.b16 %v808
    %v920 = vunpack.c.h.b16 %v808
    %v921 = vunpack.c.l.b16 %v809
    %v922 = vunpack.c.h.b16 %v809
    %v923 = vunpack.c.l.b16 %v810
    %v924 = vunpack.c.h.b16 %v810
    %v925 = vunpack.c.l.b16 %v811
    %v926 = vunpack.c.h.b16 %v811
    %v927 = vunpack.c.l.b16 %v812
    %v928 = vunpack.c.h.b16 %v812
    %v929 = vunpack.c.l.b16 %v813
    %v930 = vunpack.c.h.b16 %v813
    %v931 = vunpack.c.l.b16 %v814
    %v932 = vunpack.c.h.b16 %v814
    %v933 = vpack.c.b16 %v873, %v869
    %v934 = vpack.c.b16 %v874, %v870
    %v935 = vpack.c.b16 %v875, %v871
    %v936 = vpack.c.b16 %v876, %v872
    %v937 = vpack.c.b16 %v881, %v877
    %v938 = vpack.c.b16 %v882, %v878
    %v939 = vpack.c.b16 %v883, %v879
    %v940 = vpack.c.b16 %v884, %v880
    %v941 = vpack.c.b16 %v889, %v885
    %v942 = vpack.c.b16 %v890, %v886
    %v943 = vpack.c.b16 %v891, %v887
    %v944 = vpack.c.b16 %v892, %v888
    %v945 = vpack.c.b16 %v897, %v893
    %v946 = vpack.c.b16 %v898, %v894
    %v947 = vpack.c.b16 %v899, %v895
    %v948 = vpack.c.b16 %v900, %v896
    %v949 = vpack.c.b16 %v905, %v901
    %v950 = vpack.c.b16 %v906, %v902
    %v951 = vpack.c.b16 %v907, %v903
    %v952 = vpack.c.b16 %v908, %v904
    %v953 = vpack.c.b16 %v913, %v909
    %v954 = vpack.c.b16 %v914, %v910
    %v955 = vpack.c.b16 %v915, %v911
    %v956 = vpack.c.b16 %v916, %v912
    %v957 = vpack.c.b16 %v921, %v917
    %v958 = vpack.c.b16 %v922, %v918
    %v959 = vpack.c.b16 %v923, %v919
    %v960 = vpack.c.b16 %v924, %v920
    %v961 = vpack.c.b16 %v929, %v925
    %v962 = vpack.c.b16 %v930, %v926
    %v963 = vpack.c.b16 %v931, %v927
    %v964 = vpack.c.b16 %v932, %v928
    %997 = vmatprep.subr.bf16.mxu0 %v962
    %998 = vmatpush1.bf16.msra.mxu0 %v961
    %999 = vmatprep.subr.bf16.mxu0 %v958
    %1000 = vmatpush1.bf16.msra.mxu0 %v957
    %1001 = vmatprep.subr.bf16.mxu0 %v954
    %1002 = vmatpush1.bf16.msra.mxu0 %v953
    %1003 = vmatprep.subr.bf16.mxu0 %v950
    %1004 = vmatpush1.bf16.msra.mxu0 %v949
    %1005 = vmatprep.subr.bf16.mxu0 %v946
    %1006 = vmatpush1.bf16.msra.mxu0 %v945
    %1007 = vmatprep.subr.bf16.mxu0 %v942
    %1008 = vmatpush1.bf16.msra.mxu0 %v941
    %1009 = vmatprep.subr.bf16.mxu0 %v938
    %1010 = vmatpush1.bf16.msra.mxu0 %v937
    %1011 = vmatprep.subr.bf16.mxu0 %v934
    %1012 = vmatpush1.bf16.msra.mxu0 %v933
    %1013 = vmatprep.subr.bf16.mxu0 0
    %1014 = vmatpush2.bf16.msra.mxu0 0
    %1015 = vmatprep.subr.bf16.mxu0 0
    %1016 = vmatpush2.bf16.msra.mxu0 0
    %1017 = vmatprep.subr.bf16.mxu0 0
    %1018 = vmatpush2.bf16.msra.mxu0 0
    %1019 = vmatprep.subr.bf16.mxu0 0
    %1020 = vmatpush2.bf16.msra.mxu0 0
    %1021 = vmatprep.subr.bf16.mxu0 0
    %1022 = vmatpush2.bf16.msra.mxu0 0
    %1023 = vmatprep.subr.bf16.mxu0 0
    %1024 = vmatpush2.bf16.msra.mxu0 0
    %1025 = vmatprep.subr.bf16.mxu0 0
    %1026 = vmatpush2.bf16.msra.mxu0 0
    %1027 = vmatprep.subr.bf16.mxu0 0
    %1028 = vmatpush2.bf16.msra.mxu0 0
    %1029 = vmatprep.mubr.bf16.mxu0 0
    %1030 = vmatmul.mubr.bf16.gmra.mxu0 %v779
    %v1031 = vpop.f32.mrf.mxu0
    %v1032 = vadd.f32 %v820, %v1031
    %v1033 = vpop.f32.mrf.mxu0
    %v1034 = vadd.f32 %v824, %v1033
    %v1035 = vpop.f32.mrf.mxu0
    %v1036 = vadd.f32 %v820, %v1035
    %v1037 = vpop.f32.mrf.mxu0
    %v1038 = vadd.f32 %v824, %v1037
    %1039 = vmatprep.mubr.bf16.mxu0 0
    %1040 = vmatmul.mubr.bf16.gmra.mxu0 %v780
    %v1041 = vpop.f32.mrf.mxu0
    %v1042 = vadd.f32 %v820, %v1041
    %v1043 = vpop.f32.mrf.mxu0
    %v1044 = vadd.f32 %v824, %v1043
    %v1045 = vpop.f32.mrf.mxu0
    %v1046 = vadd.f32 %v820, %v1045
    %v1047 = vpop.f32.mrf.mxu0
    %v1048 = vadd.f32 %v824, %v1047
    %1049 = vmatprep.mubr.bf16.mxu0 0
    %1050 = vmatmul.mubr.bf16.gmra.mxu0 %v781
    %v1051 = vpop.f32.mrf.mxu0
    %v1052 = vadd.f32 %v820, %v1051
    %v1053 = vpop.f32.mrf.mxu0
    %v1054 = vadd.f32 %v824, %v1053
    %v1055 = vpop.f32.mrf.mxu0
    %v1056 = vadd.f32 %v820, %v1055
    %v1057 = vpop.f32.mrf.mxu0
    %v1058 = vadd.f32 %v824, %v1057
    %1059 = vmatprep.mubr.bf16.mxu0 0
    %1060 = vmatmul.mubr.bf16.gmra.mxu0 %v782
    %v1061 = vpop.f32.mrf.mxu0
    %v1062 = vadd.f32 %v820, %v1061
    %v1063 = vpop.f32.mrf.mxu0
    %v1064 = vadd.f32 %v824, %v1063
    %v1065 = vpop.f32.mrf.mxu0
    %v1066 = vadd.f32 %v820, %v1065
    %v1067 = vpop.f32.mrf.mxu0
    %v1068 = vadd.f32 %v824, %v1067
    %1069 = vdwg.mxu0
    %1070 = vmatprep.subr.bf16.mxu0 %v964
    %1071 = vmatpush1.bf16.msra.mxu0 %v963
    %1072 = vmatprep.subr.bf16.mxu0 %v960
    %1073 = vmatpush1.bf16.msra.mxu0 %v959
    %1074 = vmatprep.subr.bf16.mxu0 %v956
    %1075 = vmatpush1.bf16.msra.mxu0 %v955
    %1076 = vmatprep.subr.bf16.mxu0 %v952
    %1077 = vmatpush1.bf16.msra.mxu0 %v951
    %1078 = vmatprep.subr.bf16.mxu0 %v948
    %1079 = vmatpush1.bf16.msra.mxu0 %v947
    %1080 = vmatprep.subr.bf16.mxu0 %v944
    %1081 = vmatpush1.bf16.msra.mxu0 %v943
    %1082 = vmatprep.subr.bf16.mxu0 %v940
    %1083 = vmatpush1.bf16.msra.mxu0 %v939
    %1084 = vmatprep.subr.bf16.mxu0 %v936
    %1085 = vmatpush1.bf16.msra.mxu0 %v935
    %1086 = vmatprep.subr.bf16.mxu0 0
    %1087 = vmatpush2.bf16.msra.mxu0 0
    %1088 = vmatprep.subr.bf16.mxu0 0
    %1089 = vmatpush2.bf16.msra.mxu0 0
    %1090 = vmatprep.subr.bf16.mxu0 0
    %1091 = vmatpush2.bf16.msra.mxu0 0
    %1092 = vmatprep.subr.bf16.mxu0 0
    %1093 = vmatpush2.bf16.msra.mxu0 0
    %1094 = vmatprep.subr.bf16.mxu0 0
    %1095 = vmatpush2.bf16.msra.mxu0 0
    %1096 = vmatprep.subr.bf16.mxu0 0
    %1097 = vmatpush2.bf16.msra.mxu0 0
    %1098 = vmatprep.subr.bf16.mxu0 0
    %1099 = vmatpush2.bf16.msra.mxu0 0
    %1100 = vmatprep.subr.bf16.mxu0 0
    %1101 = vmatpush2.bf16.msra.mxu0 0
    %1102 = vmatprep.mubr.bf16.mxu0 0
    %1103 = vmatmul.mubr.bf16.gmra.mxu0 %v779
    %v1104 = vpop.f32.mrf.mxu0
    %v1105 = vadd.f32 %v828, %v1104
    %v1106 = vpop.f32.mrf.mxu0
    %v1107 = vadd.f32 %v832, %v1106
    %v1108 = vpop.f32.mrf.mxu0
    %v1109 = vadd.f32 %v828, %v1108
    %v1110 = vpop.f32.mrf.mxu0
    %v1111 = vadd.f32 %v832, %v1110
    %1112 = vmatprep.mubr.bf16.mxu0 0
    %1113 = vmatmul.mubr.bf16.gmra.mxu0 %v780
    %v1114 = vpop.f32.mrf.mxu0
    %v1115 = vadd.f32 %v828, %v1114
    %v1116 = vpop.f32.mrf.mxu0
    %v1117 = vadd.f32 %v832, %v1116
    %v1118 = vpop.f32.mrf.mxu0
    %v1119 = vadd.f32 %v828, %v1118
    %v1120 = vpop.f32.mrf.mxu0
    %v1121 = vadd.f32 %v832, %v1120
    %1122 = vmatprep.mubr.bf16.mxu0 0
    %1123 = vmatmul.mubr.bf16.gmra.mxu0 %v781
    %v1124 = vpop.f32.mrf.mxu0
    %v1125 = vadd.f32 %v828, %v1124
    %v1126 = vpop.f32.mrf.mxu0
    %v1127 = vadd.f32 %v832, %v1126
    %v1128 = vpop.f32.mrf.mxu0
    %v1129 = vadd.f32 %v828, %v1128
    %v1130 = vpop.f32.mrf.mxu0
    %v1131 = vadd.f32 %v832, %v1130
    %1132 = vmatprep.mubr.bf16.mxu0 0
    %1133 = vmatmul.mubr.bf16.gmra.mxu0 %v782
    %v1134 = vpop.f32.mrf.mxu0
    %v1135 = vadd.f32 %v828, %v1134
    %v1136 = vpop.f32.mrf.mxu0
    %v1137 = vadd.f32 %v832, %v1136
    %v1138 = vpop.f32.mrf.mxu0
    %v1139 = vadd.f32 %v828, %v1138
    %v1140 = vpop.f32.mrf.mxu0
    %v1141 = vadd.f32 %v832, %v1140
    %1142 = vdwg.mxu0
    %v1175 = vunpack.c.l.b16 %v747
    %v1176 = vunpack.c.h.b16 %v747
    %v1177 = vunpack.c.l.b16 %v748
    %v1178 = vunpack.c.h.b16 %v748
    %v1179 = vunpack.c.l.b16 %v749
    %v1180 = vunpack.c.h.b16 %v749
    %v1181 = vunpack.c.l.b16 %v750
    %v1182 = vunpack.c.h.b16 %v750
    %v1183 = vunpack.c.l.b16 %v751
    %v1184 = vunpack.c.h.b16 %v751
    %v1185 = vunpack.c.l.b16 %v752
    %v1186 = vunpack.c.h.b16 %v752
    %v1187 = vunpack.c.l.b16 %v753
    %v1188 = vunpack.c.h.b16 %v753
    %v1189 = vunpack.c.l.b16 %v754
    %v1190 = vunpack.c.h.b16 %v754
    %v1191 = vunpack.c.l.b16 %v755
    %v1192 = vunpack.c.h.b16 %v755
    %v1193 = vunpack.c.l.b16 %v756
    %v1194 = vunpack.c.h.b16 %v756
    %v1195 = vunpack.c.l.b16 %v757
    %v1196 = vunpack.c.h.b16 %v757
    %v1197 = vunpack.c.l.b16 %v758
    %v1198 = vunpack.c.h.b16 %v758
    %v1199 = vunpack.c.l.b16 %v759
    %v1200 = vunpack.c.h.b16 %v759
    %v1201 = vunpack.c.l.b16 %v760
    %v1202 = vunpack.c.h.b16 %v760
    %v1203 = vunpack.c.l.b16 %v761
    %v1204 = vunpack.c.h.b16 %v761
    %v1205 = vunpack.c.l.b16 %v762
    %v1206 = vunpack.c.h.b16 %v762
    %v1207 = vunpack.c.l.b16 %v763
    %v1208 = vunpack.c.h.b16 %v763
    %v1209 = vunpack.c.l.b16 %v764
    %v1210 = vunpack.c.h.b16 %v764
    %v1211 = vunpack.c.l.b16 %v765
    %v1212 = vunpack.c.h.b16 %v765
    %v1213 = vunpack.c.l.b16 %v766
    %v1214 = vunpack.c.h.b16 %v766
    %v1215 = vunpack.c.l.b16 %v767
    %v1216 = vunpack.c.h.b16 %v767
    %v1217 = vunpack.c.l.b16 %v768
    %v1218 = vunpack.c.h.b16 %v768
    %v1219 = vunpack.c.l.b16 %v769
    %v1220 = vunpack.c.h.b16 %v769
    %v1221 = vunpack.c.l.b16 %v770
    %v1222 = vunpack.c.h.b16 %v770
    %v1223 = vunpack.c.l.b16 %v771
    %v1224 = vunpack.c.h.b16 %v771
    %v1225 = vunpack.c.l.b16 %v772
    %v1226 = vunpack.c.h.b16 %v772
    %v1227 = vunpack.c.l.b16 %v773
    %v1228 = vunpack.c.h.b16 %v773
    %v1229 = vunpack.c.l.b16 %v774
    %v1230 = vunpack.c.h.b16 %v774
    %v1231 = vunpack.c.l.b16 %v775
    %v1232 = vunpack.c.h.b16 %v775
    %v1233 = vunpack.c.l.b16 %v776
    %v1234 = vunpack.c.h.b16 %v776
    %v1235 = vunpack.c.l.b16 %v777
    %v1236 = vunpack.c.h.b16 %v777
    %v1237 = vunpack.c.l.b16 %v778
    %v1238 = vunpack.c.h.b16 %v778
    %v1239 = vpack.c.b16 %v1179, %v1175
    %v1240 = vpack.c.b16 %v1180, %v1176
    %v1241 = vpack.c.b16 %v1181, %v1177
    %v1242 = vpack.c.b16 %v1182, %v1178
    %v1243 = vpack.c.b16 %v1187, %v1183
    %v1244 = vpack.c.b16 %v1188, %v1184
    %v1245 = vpack.c.b16 %v1189, %v1185
    %v1246 = vpack.c.b16 %v1190, %v1186
    %v1247 = vpack.c.b16 %v1195, %v1191
    %v1248 = vpack.c.b16 %v1196, %v1192
    %v1249 = vpack.c.b16 %v1197, %v1193
    %v1250 = vpack.c.b16 %v1198, %v1194
    %v1251 = vpack.c.b16 %v1203, %v1199
    %v1252 = vpack.c.b16 %v1204, %v1200
    %v1253 = vpack.c.b16 %v1205, %v1201
    %v1254 = vpack.c.b16 %v1206, %v1202
    %v1255 = vpack.c.b16 %v1211, %v1207
    %v1256 = vpack.c.b16 %v1212, %v1208
    %v1257 = vpack.c.b16 %v1213, %v1209
    %v1258 = vpack.c.b16 %v1214, %v1210
    %v1259 = vpack.c.b16 %v1219, %v1215
    %v1260 = vpack.c.b16 %v1220, %v1216
    %v1261 = vpack.c.b16 %v1221, %v1217
    %v1262 = vpack.c.b16 %v1222, %v1218
    %v1263 = vpack.c.b16 %v1227, %v1223
    %v1264 = vpack.c.b16 %v1228, %v1224
    %v1265 = vpack.c.b16 %v1229, %v1225
    %v1266 = vpack.c.b16 %v1230, %v1226
    %v1267 = vpack.c.b16 %v1235, %v1231
    %v1268 = vpack.c.b16 %v1236, %v1232
    %v1269 = vpack.c.b16 %v1237, %v1233
    %v1270 = vpack.c.b16 %v1238, %v1234
    %1303 = vmatprep.subr.bf16.mxu0 %v1268
    %1304 = vmatpush1.bf16.msra.mxu0 %v1267
    %1305 = vmatprep.subr.bf16.mxu0 %v1264
    %1306 = vmatpush1.bf16.msra.mxu0 %v1263
    %1307 = vmatprep.subr.bf16.mxu0 %v1260
    %1308 = vmatpush1.bf16.msra.mxu0 %v1259
    %1309 = vmatprep.subr.bf16.mxu0 %v1256
    %1310 = vmatpush1.bf16.msra.mxu0 %v1255
    %1311 = vmatprep.subr.bf16.mxu0 %v1252
    %1312 = vmatpush1.bf16.msra.mxu0 %v1251
    %1313 = vmatprep.subr.bf16.mxu0 %v1248
    %1314 = vmatpush1.bf16.msra.mxu0 %v1247
    %1315 = vmatprep.subr.bf16.mxu0 %v1244
    %1316 = vmatpush1.bf16.msra.mxu0 %v1243
    %1317 = vmatprep.subr.bf16.mxu0 %v1240
    %1318 = vmatpush1.bf16.msra.mxu0 %v1239
    %1319 = vmatprep.subr.bf16.mxu0 0
    %1320 = vmatpush2.bf16.msra.mxu0 0
    %1321 = vmatprep.subr.bf16.mxu0 0
    %1322 = vmatpush2.bf16.msra.mxu0 0
    %1323 = vmatprep.subr.bf16.mxu0 0
    %1324 = vmatpush2.bf16.msra.mxu0 0
    %1325 = vmatprep.subr.bf16.mxu0 0
    %1326 = vmatpush2.bf16.msra.mxu0 0
    %1327 = vmatprep.subr.bf16.mxu0 0
    %1328 = vmatpush2.bf16.msra.mxu0 0
    %1329 = vmatprep.subr.bf16.mxu0 0
    %1330 = vmatpush2.bf16.msra.mxu0 0
    %1331 = vmatprep.subr.bf16.mxu0 0
    %1332 = vmatpush2.bf16.msra.mxu0 0
    %1333 = vmatprep.subr.bf16.mxu0 0
    %1334 = vmatpush2.bf16.msra.mxu0 0
    %1335 = vmatprep.mubr.bf16.mxu0 0
    %1336 = vmatmul.mubr.bf16.gmra.mxu0 0
    %v1337 = vpop.f32.mrf.mxu0
    %v1338 = vadd.f32 0.0, %v1337
    %v1339 = vpop.f32.mrf.mxu0
    %v1340 = vadd.f32 0.0, %v1339
    %v1341 = vpop.f32.mrf.mxu0
    %v1342 = vpop.f32.mrf.mxu0
    %1343 = vdwg.mxu0
    %1344 = vmatprep.subr.bf16.mxu0 %v1270
    %1345 = vmatpush1.bf16.msra.mxu0 %v1269
    %1346 = vmatprep.subr.bf16.mxu0 %v1266
    %1347 = vmatpush1.bf16.msra.mxu0 %v1265
    %1348 = vmatprep.subr.bf16.mxu0 %v1262
    %1349 = vmatpush1.bf16.msra.mxu0 %v1261
    %1350 = vmatprep.subr.bf16.mxu0 %v1258
    %1351 = vmatpush1.bf16.msra.mxu0 %v1257
    %1352 = vmatprep.subr.bf16.mxu0 %v1254
    %1353 = vmatpush1.bf16.msra.mxu0 %v1253
    %1354 = vmatprep.subr.bf16.mxu0 %v1250
    %1355 = vmatpush1.bf16.msra.mxu0 %v1249
    %1356 = vmatprep.subr.bf16.mxu0 %v1246
    %1357 = vmatpush1.bf16.msra.mxu0 %v1245
    %1358 = vmatprep.subr.bf16.mxu0 %v1242
    %1359 = vmatpush1.bf16.msra.mxu0 %v1241
    %1360 = vmatprep.subr.bf16.mxu0 0
    %1361 = vmatpush2.bf16.msra.mxu0 0
    %1362 = vmatprep.subr.bf16.mxu0 0
    %1363 = vmatpush2.bf16.msra.mxu0 0
    %1364 = vmatprep.subr.bf16.mxu0 0
    %1365 = vmatpush2.bf16.msra.mxu0 0
    %1366 = vmatprep.subr.bf16.mxu0 0
    %1367 = vmatpush2.bf16.msra.mxu0 0
    %1368 = vmatprep.subr.bf16.mxu0 0
    %1369 = vmatpush2.bf16.msra.mxu0 0
    %1370 = vmatprep.subr.bf16.mxu0 0
    %1371 = vmatpush2.bf16.msra.mxu0 0
    %1372 = vmatprep.subr.bf16.mxu0 0
    %1373 = vmatpush2.bf16.msra.mxu0 0
    %1374 = vmatprep.subr.bf16.mxu0 0
    %1375 = vmatpush2.bf16.msra.mxu0 0
    %1376 = vmatprep.mubr.bf16.mxu0 0
    %1377 = vmatmul.mubr.bf16.gmra.mxu0 0
    %v1378 = vpop.f32.mrf.mxu0
    %v1379 = vadd.f32 0.0, %v1378
    %v1380 = vpop.f32.mrf.mxu0
    %v1381 = vadd.f32 0.0, %v1380
    %v1382 = vpop.f32.mrf.mxu0
    %v1383 = vpop.f32.mrf.mxu0
    %1384 = vdwg.mxu0
    %v1385 = vadd.f32 %v1032, %v1338
    %v1386 = vadd.f32 %v1034, %v1340
    %v1387 = vadd.f32 %v1105, %v1379
    %v1388 = vadd.f32 %v1107, %v1381
    %v1389 = vxor.u32 %v1385, 2147483648
    %v1390 = vmul.f32 %v1389, 1.442695
    %v1391 = vpow.pop %v1390
    %v1392 = vadd.f32 %v1391, 1.0
    %v1393 = vrcp.pop %v1392
    %v1394 = vmul.f32 1.0, %v1393
    %v1395 = vxor.u32 %v1386, 2147483648
    %v1396 = vmul.f32 %v1395, 1.442695
    %v1397 = vpow.pop %v1396
    %v1398 = vadd.f32 %v1397, 1.0
    %v1399 = vrcp.pop %v1398
    %v1400 = vmul.f32 1.0, %v1399
    %v1401 = vtanh.pop %v1387
    %v1402 = vxor.u32 %v1388, 2147483648
    %v1403 = vmul.f32 %v1402, 1.442695
    %v1404 = vpow.pop %v1403
    %v1405 = vadd.f32 %v1404, 1.0
    %v1406 = vrcp.pop %v1405
    %v1407 = vmul.f32 1.0, %v1406
    %v1408 = vmul.f32 %v1400, 0.0
    %v1409 = vmul.f32 %v1394, %v1401
    %v1410 = vadd.f32 %v1408, %v1409
    %v1411 = vtanh.pop %v1410
    %v1412 = vmul.f32 %v1407, %v1411
    %1413 = vst [vmem:[#allocation3] sm:$0xff] %v1412
    %v1414 = vpack.c.bf16 %v1412, %v1412
    %1415 = vmatprep.subr.bf16.mxu0 %v1268
    %1416 = vmatpush1.bf16.msra.mxu0 %v1267
    %1417 = vmatprep.subr.bf16.mxu0 %v1264
    %1418 = vmatpush1.bf16.msra.mxu0 %v1263
    %1419 = vmatprep.subr.bf16.mxu0 %v1260
    %1420 = vmatpush1.bf16.msra.mxu0 %v1259
    %1421 = vmatprep.subr.bf16.mxu0 %v1256
    %1422 = vmatpush1.bf16.msra.mxu0 %v1255
    %1423 = vmatprep.subr.bf16.mxu0 %v1252
    %1424 = vmatpush1.bf16.msra.mxu0 %v1251
    %1425 = vmatprep.subr.bf16.mxu0 %v1248
    %1426 = vmatpush1.bf16.msra.mxu0 %v1247
    %1427 = vmatprep.subr.bf16.mxu0 %v1244
    %1428 = vmatpush1.bf16.msra.mxu0 %v1243
    %1429 = vmatprep.subr.bf16.mxu0 %v1240
    %1430 = vmatpush1.bf16.msra.mxu0 %v1239
    %1431 = vmatprep.subr.bf16.mxu0 0
    %1432 = vmatpush2.bf16.msra.mxu0 0
    %1433 = vmatprep.subr.bf16.mxu0 0
    %1434 = vmatpush2.bf16.msra.mxu0 0
    %1435 = vmatprep.subr.bf16.mxu0 0
    %1436 = vmatpush2.bf16.msra.mxu0 0
    %1437 = vmatprep.subr.bf16.mxu0 0
    %1438 = vmatpush2.bf16.msra.mxu0 0
    %1439 = vmatprep.subr.bf16.mxu0 0
    %1440 = vmatpush2.bf16.msra.mxu0 0
    %1441 = vmatprep.subr.bf16.mxu0 0
    %1442 = vmatpush2.bf16.msra.mxu0 0
    %1443 = vmatprep.subr.bf16.mxu0 0
    %1444 = vmatpush2.bf16.msra.mxu0 0
    %1445 = vmatprep.subr.bf16.mxu0 0
    %1446 = vmatpush2.bf16.msra.mxu0 0
    %1447 = vmatprep.mubr.bf16.mxu0 0
    %1448 = vmatmul.mubr.bf16.gmra.mxu0 %v1414
    %v1449 = vpop.f32.mrf.mxu0
    %v1450 = vadd.f32 0.0, %v1449
    %v1451 = vpop.f32.mrf.mxu0
    %v1452 = vadd.f32 0.0, %v1451
    %v1453 = vpop.f32.mrf.mxu0
    %v1454 = vpop.f32.mrf.mxu0
    %1455 = vdwg.mxu0
    %1456 = vmatprep.subr.bf16.mxu0 %v1270
    %1457 = vmatpush1.bf16.msra.mxu0 %v1269
    %1458 = vmatprep.subr.bf16.mxu0 %v1266
    %1459 = vmatpush1.bf16.msra.mxu0 %v1265
    %1460 = vmatprep.subr.bf16.mxu0 %v1262
    %1461 = vmatpush1.bf16.msra.mxu0 %v1261
    %1462 = vmatprep.subr.bf16.mxu0 %v1258
    %1463 = vmatpush1.bf16.msra.mxu0 %v1257
    %1464 = vmatprep.subr.bf16.mxu0 %v1254
    %1465 = vmatpush1.bf16.msra.mxu0 %v1253
    %1466 = vmatprep.subr.bf16.mxu0 %v1250
    %1467 = vmatpush1.bf16.msra.mxu0 %v1249
    %1468 = vmatprep.subr.bf16.mxu0 %v1246
    %1469 = vmatpush1.bf16.msra.mxu0 %v1245
    %1470 = vmatprep.subr.bf16.mxu0 %v1242
    %1471 = vmatpush1.bf16.msra.mxu0 %v1241
    %1472 = vmatprep.subr.bf16.mxu0 0
    %1473 = vmatpush2.bf16.msra.mxu0 0
    %1474 = vmatprep.subr.bf16.mxu0 0
    %1475 = vmatpush2.bf16.msra.mxu0 0
    %1476 = vmatprep.subr.bf16.mxu0 0
    %1477 = vmatpush2.bf16.msra.mxu0 0
    %1478 = vmatprep.subr.bf16.mxu0 0
    %1479 = vmatpush2.bf16.msra.mxu0 0
    %1480 = vmatprep.subr.bf16.mxu0 0
    %1481 = vmatpush2.bf16.msra.mxu0 0
    %1482 = vmatprep.subr.bf16.mxu0 0
    %1483 = vmatpush2.bf16.msra.mxu0 0
    %1484 = vmatprep.subr.bf16.mxu0 0
    %1485 = vmatpush2.bf16.msra.mxu0 0
    %1486 = vmatprep.subr.bf16.mxu0 0
    %1487 = vmatpush2.bf16.msra.mxu0 0
    %1488 = vmatprep.mubr.bf16.mxu0 0
    %1489 = vmatmul.mubr.bf16.gmra.mxu0 %v1414
    %v1490 = vpop.f32.mrf.mxu0
    %v1491 = vadd.f32 0.0, %v1490
    %v1492 = vpop.f32.mrf.mxu0
    %v1493 = vadd.f32 0.0, %v1492
    %v1494 = vpop.f32.mrf.mxu0
    %v1495 = vpop.f32.mrf.mxu0
    %1496 = vdwg.mxu0
    %v1497 = vadd.f32 %v1036, %v1450
    %v1498 = vadd.f32 %v1038, %v1452
    %v1499 = vadd.f32 %v1109, %v1491
    %v1500 = vadd.f32 %v1111, %v1493
    %v1501 = vxor.u32 %v1497, 2147483648
    %v1502 = vmul.f32 %v1501, 1.442695
    %v1503 = vpow.pop %v1502
    %v1504 = vadd.f32 %v1503, 1.0
    %v1505 = vrcp.pop %v1504
    %v1506 = vmul.f32 1.0, %v1505
    %v1507 = vxor.u32 %v1498, 2147483648
    %v1508 = vmul.f32 %v1507, 1.442695
    %v1509 = vpow.pop %v1508
    %v1510 = vadd.f32 %v1509, 1.0
    %v1511 = vrcp.pop %v1510
    %v1512 = vmul.f32 1.0, %v1511
    %v1513 = vtanh.pop %v1499
    %v1514 = vxor.u32 %v1500, 2147483648
    %v1515 = vmul.f32 %v1514, 1.442695
    %v1516 = vpow.pop %v1515
    %v1517 = vadd.f32 %v1516, 1.0
    %v1518 = vrcp.pop %v1517
    %v1519 = vmul.f32 1.0, %v1518
    %v1520 = vmul.f32 %v1512, %v1410
    %v1521 = vmul.f32 %v1506, %v1513
    %v1522 = vadd.f32 %v1520, %v1521
    %v1523 = vtanh.pop %v1522
    %v1524 = vmul.f32 %v1519, %v1523
    %s1525 = scalar_lea.vmem [#allocation3], 8
    %1526 = vst [vmem:[%s1525] sm:$0xff] %v1524
    %v1527 = vpack.c.bf16 %v1524, %v1524
    %1528 = vmatprep.subr.bf16.mxu0 %v1268
    %1529 = vmatpush1.bf16.msra.mxu0 %v1267
    %1530 = vmatprep.subr.bf16.mxu0 %v1264
    %1531 = vmatpush1.bf16.msra.mxu0 %v1263
    %1532 = vmatprep.subr.bf16.mxu0 %v1260
    %1533 = vmatpush1.bf16.msra.mxu0 %v1259
    %1534 = vmatprep.subr.bf16.mxu0 %v1256
    %1535 = vmatpush1.bf16.msra.mxu0 %v1255
    %1536 = vmatprep.subr.bf16.mxu0 %v1252
    %1537 = vmatpush1.bf16.msra.mxu0 %v1251
    %1538 = vmatprep.subr.bf16.mxu0 %v1248
    %1539 = vmatpush1.bf16.msra.mxu0 %v1247
    %1540 = vmatprep.subr.bf16.mxu0 %v1244
    %1541 = vmatpush1.bf16.msra.mxu0 %v1243
    %1542 = vmatprep.subr.bf16.mxu0 %v1240
    %1543 = vmatpush1.bf16.msra.mxu0 %v1239
    %1544 = vmatprep.subr.bf16.mxu0 0
    %1545 = vmatpush2.bf16.msra.mxu0 0
    %1546 = vmatprep.subr.bf16.mxu0 0
    %1547 = vmatpush2.bf16.msra.mxu0 0
    %1548 = vmatprep.subr.bf16.mxu0 0
    %1549 = vmatpush2.bf16.msra.mxu0 0
    %1550 = vmatprep.subr.bf16.mxu0 0
    %1551 = vmatpush2.bf16.msra.mxu0 0
    %1552 = vmatprep.subr.bf16.mxu0 0
    %1553 = vmatpush2.bf16.msra.mxu0 0
    %1554 = vmatprep.subr.bf16.mxu0 0
    %1555 = vmatpush2.bf16.msra.mxu0 0
    %1556 = vmatprep.subr.bf16.mxu0 0
    %1557 = vmatpush2.bf16.msra.mxu0 0
    %1558 = vmatprep.subr.bf16.mxu0 0
    %1559 = vmatpush2.bf16.msra.mxu0 0
    %1560 = vmatprep.mubr.bf16.mxu0 0
    %1561 = vmatmul.mubr.bf16.gmra.mxu0 %v1527
    %v1562 = vpop.f32.mrf.mxu0
    %v1563 = vadd.f32 0.0, %v1562
    %v1564 = vpop.f32.mrf.mxu0
    %v1565 = vadd.f32 0.0, %v1564
    %v1566 = vpop.f32.mrf.mxu0
    %v1567 = vpop.f32.mrf.mxu0
    %1568 = vdwg.mxu0
    %1569 = vmatprep.subr.bf16.mxu0 %v1270
    %1570 = vmatpush1.bf16.msra.mxu0 %v1269
    %1571 = vmatprep.subr.bf16.mxu0 %v1266
    %1572 = vmatpush1.bf16.msra.mxu0 %v1265
    %1573 = vmatprep.subr.bf16.mxu0 %v1262
    %1574 = vmatpush1.bf16.msra.mxu0 %v1261
    %1575 = vmatprep.subr.bf16.mxu0 %v1258
    %1576 = vmatpush1.bf16.msra.mxu0 %v1257
    %1577 = vmatprep.subr.bf16.mxu0 %v1254
    %1578 = vmatpush1.bf16.msra.mxu0 %v1253
    %1579 = vmatprep.subr.bf16.mxu0 %v1250
    %1580 = vmatpush1.bf16.msra.mxu0 %v1249
    %1581 = vmatprep.subr.bf16.mxu0 %v1246
    %1582 = vmatpush1.bf16.msra.mxu0 %v1245
    %1583 = vmatprep.subr.bf16.mxu0 %v1242
    %1584 = vmatpush1.bf16.msra.mxu0 %v1241
    %1585 = vmatprep.subr.bf16.mxu0 0
    %1586 = vmatpush2.bf16.msra.mxu0 0
    %1587 = vmatprep.subr.bf16.mxu0 0
    %1588 = vmatpush2.bf16.msra.mxu0 0
    %1589 = vmatprep.subr.bf16.mxu0 0
    %1590 = vmatpush2.bf16.msra.mxu0 0
    %1591 = vmatprep.subr.bf16.mxu0 0
    %1592 = vmatpush2.bf16.msra.mxu0 0
    %1593 = vmatprep.subr.bf16.mxu0 0
    %1594 = vmatpush2.bf16.msra.mxu0 0
    %1595 = vmatprep.subr.bf16.mxu0 0
    %1596 = vmatpush2.bf16.msra.mxu0 0
    %1597 = vmatprep.subr.bf16.mxu0 0
    %1598 = vmatpush2.bf16.msra.mxu0 0
    %1599 = vmatprep.subr.bf16.mxu0 0
    %1600 = vmatpush2.bf16.msra.mxu0 0
    %1601 = vmatprep.mubr.bf16.mxu0 0
    %1602 = vmatmul.mubr.bf16.gmra.mxu0 %v1527
    %v1603 = vpop.f32.mrf.mxu0
    %v1604 = vadd.f32 0.0, %v1603
    %v1605 = vpop.f32.mrf.mxu0
    %v1606 = vadd.f32 0.0, %v1605
    %v1607 = vpop.f32.mrf.mxu0
    %v1608 = vpop.f32.mrf.mxu0
    %1609 = vdwg.mxu0
    %v1610 = vadd.f32 %v1042, %v1563
    %v1611 = vadd.f32 %v1044, %v1565
    %v1612 = vadd.f32 %v1115, %v1604
    %v1613 = vadd.f32 %v1117, %v1606
    %v1614 = vxor.u32 %v1610, 2147483648
    %v1615 = vmul.f32 %v1614, 1.442695
    %v1616 = vpow.pop %v1615
    %v1617 = vadd.f32 %v1616, 1.0
    %v1618 = vrcp.pop %v1617
    %v1619 = vmul.f32 1.0, %v1618
    %v1620 = vxor.u32 %v1611, 2147483648
    %v1621 = vmul.f32 %v1620, 1.442695
    %v1622 = vpow.pop %v1621
    %v1623 = vadd.f32 %v1622, 1.0
    %v1624 = vrcp.pop %v1623
    %v1625 = vmul.f32 1.0, %v1624
    %v1626 = vtanh.pop %v1612
    %v1627 = vxor.u32 %v1613, 2147483648
    %v1628 = vmul.f32 %v1627, 1.442695
    %v1629 = vpow.pop %v1628
    %v1630 = vadd.f32 %v1629, 1.0
    %v1631 = vrcp.pop %v1630
    %v1632 = vmul.f32 1.0, %v1631
    %v1633 = vmul.f32 %v1625, %v1522
    %v1634 = vmul.f32 %v1619, %v1626
    %v1635 = vadd.f32 %v1633, %v1634
    %v1636 = vtanh.pop %v1635
    %v1637 = vmul.f32 %v1632, %v1636
    %s1638 = scalar_lea.vmem [#allocation3], 16
    %1639 = vst [vmem:[%s1638] sm:$0xff] %v1637
    %v1640 = vpack.c.bf16 %v1637, %v1637
    %1641 = vmatprep.subr.bf16.mxu0 %v1268
    %1642 = vmatpush1.bf16.msra.mxu0 %v1267
    %1643 = vmatprep.subr.bf16.mxu0 %v1264
    %1644 = vmatpush1.bf16.msra.mxu0 %v1263
    %1645 = vmatprep.subr.bf16.mxu0 %v1260
    %1646 = vmatpush1.bf16.msra.mxu0 %v1259
    %1647 = vmatprep.subr.bf16.mxu0 %v1256
    %1648 = vmatpush1.bf16.msra.mxu0 %v1255
    %1649 = vmatprep.subr.bf16.mxu0 %v1252
    %1650 = vmatpush1.bf16.msra.mxu0 %v1251
    %1651 = vmatprep.subr.bf16.mxu0 %v1248
    %1652 = vmatpush1.bf16.msra.mxu0 %v1247
    %1653 = vmatprep.subr.bf16.mxu0 %v1244
    %1654 = vmatpush1.bf16.msra.mxu0 %v1243
    %1655 = vmatprep.subr.bf16.mxu0 %v1240
    %1656 = vmatpush1.bf16.msra.mxu0 %v1239
    %1657 = vmatprep.subr.bf16.mxu0 0
    %1658 = vmatpush2.bf16.msra.mxu0 0
    %1659 = vmatprep.subr.bf16.mxu0 0
    %1660 = vmatpush2.bf16.msra.mxu0 0
    %1661 = vmatprep.subr.bf16.mxu0 0
    %1662 = vmatpush2.bf16.msra.mxu0 0
    %1663 = vmatprep.subr.bf16.mxu0 0
    %1664 = vmatpush2.bf16.msra.mxu0 0
    %1665 = vmatprep.subr.bf16.mxu0 0
    %1666 = vmatpush2.bf16.msra.mxu0 0
    %1667 = vmatprep.subr.bf16.mxu0 0
    %1668 = vmatpush2.bf16.msra.mxu0 0
    %1669 = vmatprep.subr.bf16.mxu0 0
    %1670 = vmatpush2.bf16.msra.mxu0 0
    %1671 = vmatprep.subr.bf16.mxu0 0
    %1672 = vmatpush2.bf16.msra.mxu0 0
    %1673 = vmatprep.mubr.bf16.mxu0 0
    %1674 = vmatmul.mubr.bf16.gmra.mxu0 %v1640
    %v1675 = vpop.f32.mrf.mxu0
    %v1676 = vadd.f32 0.0, %v1675
    %v1677 = vpop.f32.mrf.mxu0
    %v1678 = vadd.f32 0.0, %v1677
    %v1679 = vpop.f32.mrf.mxu0
    %v1680 = vpop.f32.mrf.mxu0
    %1681 = vdwg.mxu0
    %1682 = vmatprep.subr.bf16.mxu0 %v1270
    %1683 = vmatpush1.bf16.msra.mxu0 %v1269
    %1684 = vmatprep.subr.bf16.mxu0 %v1266
    %1685 = vmatpush1.bf16.msra.mxu0 %v1265
    %1686 = vmatprep.subr.bf16.mxu0 %v1262
    %1687 = vmatpush1.bf16.msra.mxu0 %v1261
    %1688 = vmatprep.subr.bf16.mxu0 %v1258
    %1689 = vmatpush1.bf16.msra.mxu0 %v1257
    %1690 = vmatprep.subr.bf16.mxu0 %v1254
    %1691 = vmatpush1.bf16.msra.mxu0 %v1253
    %1692 = vmatprep.subr.bf16.mxu0 %v1250
    %1693 = vmatpush1.bf16.msra.mxu0 %v1249
    %1694 = vmatprep.subr.bf16.mxu0 %v1246
    %1695 = vmatpush1.bf16.msra.mxu0 %v1245
    %1696 = vmatprep.subr.bf16.mxu0 %v1242
    %1697 = vmatpush1.bf16.msra.mxu0 %v1241
    %1698 = vmatprep.subr.bf16.mxu0 0
    %1699 = vmatpush2.bf16.msra.mxu0 0
    %1700 = vmatprep.subr.bf16.mxu0 0
    %1701 = vmatpush2.bf16.msra.mxu0 0
    %1702 = vmatprep.subr.bf16.mxu0 0
    %1703 = vmatpush2.bf16.msra.mxu0 0
    %1704 = vmatprep.subr.bf16.mxu0 0
    %1705 = vmatpush2.bf16.msra.mxu0 0
    %1706 = vmatprep.subr.bf16.mxu0 0
    %1707 = vmatpush2.bf16.msra.mxu0 0
    %1708 = vmatprep.subr.bf16.mxu0 0
    %1709 = vmatpush2.bf16.msra.mxu0 0
    %1710 = vmatprep.subr.bf16.mxu0 0
    %1711 = vmatpush2.bf16.msra.mxu0 0
    %1712 = vmatprep.subr.bf16.mxu0 0
    %1713 = vmatpush2.bf16.msra.mxu0 0
    %1714 = vmatprep.mubr.bf16.mxu0 0
    %1715 = vmatmul.mubr.bf16.gmra.mxu0 %v1640
    %v1716 = vpop.f32.mrf.mxu0
    %v1717 = vadd.f32 0.0, %v1716
    %v1718 = vpop.f32.mrf.mxu0
    %v1719 = vadd.f32 0.0, %v1718
    %v1720 = vpop.f32.mrf.mxu0
    %v1721 = vpop.f32.mrf.mxu0
    %1722 = vdwg.mxu0
    %v1723 = vadd.f32 %v1046, %v1676
    %v1724 = vadd.f32 %v1048, %v1678
    %v1725 = vadd.f32 %v1119, %v1717
    %v1726 = vadd.f32 %v1121, %v1719
    %v1727 = vxor.u32 %v1723, 2147483648
    %v1728 = vmul.f32 %v1727, 1.442695
    %v1729 = vpow.pop %v1728
    %v1730 = vadd.f32 %v1729, 1.0
    %v1731 = vrcp.pop %v1730
    %v1732 = vmul.f32 1.0, %v1731
    %v1733 = vxor.u32 %v1724, 2147483648
    %v1734 = vmul.f32 %v1733, 1.442695
    %v1735 = vpow.pop %v1734
    %v1736 = vadd.f32 %v1735, 1.0
    %v1737 = vrcp.pop %v1736
    %v1738 = vmul.f32 1.0, %v1737
    %v1739 = vtanh.pop %v1725
    %v1740 = vxor.u32 %v1726, 2147483648
    %v1741 = vmul.f32 %v1740, 1.442695
    %v1742 = vpow.pop %v1741
    %v1743 = vadd.f32 %v1742, 1.0
    %v1744 = vrcp.pop %v1743
    %v1745 = vmul.f32 1.0, %v1744
    %v1746 = vmul.f32 %v1738, %v1635
    %v1747 = vmul.f32 %v1732, %v1739
    %v1748 = vadd.f32 %v1746, %v1747
    %v1749 = vtanh.pop %v1748
    %v1750 = vmul.f32 %v1745, %v1749
    %s1751 = scalar_lea.vmem [#allocation3], 24
    %1752 = vst [vmem:[%s1751] sm:$0xff] %v1750
    %v1753 = vpack.c.bf16 %v1750, %v1750
    %1754 = vmatprep.subr.bf16.mxu0 %v1268
    %1755 = vmatpush1.bf16.msra.mxu0 %v1267
    %1756 = vmatprep.subr.bf16.mxu0 %v1264
    %1757 = vmatpush1.bf16.msra.mxu0 %v1263
    %1758 = vmatprep.subr.bf16.mxu0 %v1260
    %1759 = vmatpush1.bf16.msra.mxu0 %v1259
    %1760 = vmatprep.subr.bf16.mxu0 %v1256
    %1761 = vmatpush1.bf16.msra.mxu0 %v1255
    %1762 = vmatprep.subr.bf16.mxu0 %v1252
    %1763 = vmatpush1.bf16.msra.mxu0 %v1251
    %1764 = vmatprep.subr.bf16.mxu0 %v1248
    %1765 = vmatpush1.bf16.msra.mxu0 %v1247
    %1766 = vmatprep.subr.bf16.mxu0 %v1244
    %1767 = vmatpush1.bf16.msra.mxu0 %v1243
    %1768 = vmatprep.subr.bf16.mxu0 %v1240
    %1769 = vmatpush1.bf16.msra.mxu0 %v1239
    %1770 = vmatprep.subr.bf16.mxu0 0
    %1771 = vmatpush2.bf16.msra.mxu0 0
    %1772 = vmatprep.subr.bf16.mxu0 0
    %1773 = vmatpush2.bf16.msra.mxu0 0
    %1774 = vmatprep.subr.bf16.mxu0 0
    %1775 = vmatpush2.bf16.msra.mxu0 0
    %1776 = vmatprep.subr.bf16.mxu0 0
    %1777 = vmatpush2.bf16.msra.mxu0 0
    %1778 = vmatprep.subr.bf16.mxu0 0
    %1779 = vmatpush2.bf16.msra.mxu0 0
    %1780 = vmatprep.subr.bf16.mxu0 0
    %1781 = vmatpush2.bf16.msra.mxu0 0
    %1782 = vmatprep.subr.bf16.mxu0 0
    %1783 = vmatpush2.bf16.msra.mxu0 0
    %1784 = vmatprep.subr.bf16.mxu0 0
    %1785 = vmatpush2.bf16.msra.mxu0 0
    %1786 = vmatprep.mubr.bf16.mxu0 0
    %1787 = vmatmul.mubr.bf16.gmra.mxu0 %v1753
    %v1788 = vpop.f32.mrf.mxu0
    %v1789 = vadd.f32 0.0, %v1788
    %v1790 = vpop.f32.mrf.mxu0
    %v1791 = vadd.f32 0.0, %v1790
    %v1792 = vpop.f32.mrf.mxu0
    %v1793 = vpop.f32.mrf.mxu0
    %1794 = vdwg.mxu0
    %1795 = vmatprep.subr.bf16.mxu0 %v1270
    %1796 = vmatpush1.bf16.msra.mxu0 %v1269
    %1797 = vmatprep.subr.bf16.mxu0 %v1266
    %1798 = vmatpush1.bf16.msra.mxu0 %v1265
    %1799 = vmatprep.subr.bf16.mxu0 %v1262
    %1800 = vmatpush1.bf16.msra.mxu0 %v1261
    %1801 = vmatprep.subr.bf16.mxu0 %v1258
    %1802 = vmatpush1.bf16.msra.mxu0 %v1257
    %1803 = vmatprep.subr.bf16.mxu0 %v1254
    %1804 = vmatpush1.bf16.msra.mxu0 %v1253
    %1805 = vmatprep.subr.bf16.mxu0 %v1250
    %1806 = vmatpush1.bf16.msra.mxu0 %v1249
    %1807 = vmatprep.subr.bf16.mxu0 %v1246
    %1808 = vmatpush1.bf16.msra.mxu0 %v1245
    %1809 = vmatprep.subr.bf16.mxu0 %v1242
    %1810 = vmatpush1.bf16.msra.mxu0 %v1241
    %1811 = vmatprep.subr.bf16.mxu0 0
    %1812 = vmatpush2.bf16.msra.mxu0 0
    %1813 = vmatprep.subr.bf16.mxu0 0
    %1814 = vmatpush2.bf16.msra.mxu0 0
    %1815 = vmatprep.subr.bf16.mxu0 0
    %1816 = vmatpush2.bf16.msra.mxu0 0
    %1817 = vmatprep.subr.bf16.mxu0 0
    %1818 = vmatpush2.bf16.msra.mxu0 0
    %1819 = vmatprep.subr.bf16.mxu0 0
    %1820 = vmatpush2.bf16.msra.mxu0 0
    %1821 = vmatprep.subr.bf16.mxu0 0
    %1822 = vmatpush2.bf16.msra.mxu0 0
    %1823 = vmatprep.subr.bf16.mxu0 0
    %1824 = vmatpush2.bf16.msra.mxu0 0
    %1825 = vmatprep.subr.bf16.mxu0 0
    %1826 = vmatpush2.bf16.msra.mxu0 0
    %1827 = vmatprep.mubr.bf16.mxu0 0
    %1828 = vmatmul.mubr.bf16.gmra.mxu0 %v1753
    %v1829 = vpop.f32.mrf.mxu0
    %v1830 = vadd.f32 0.0, %v1829
    %v1831 = vpop.f32.mrf.mxu0
    %v1832 = vadd.f32 0.0, %v1831
    %v1833 = vpop.f32.mrf.mxu0
    %v1834 = vpop.f32.mrf.mxu0
    %1835 = vdwg.mxu0
    %v1836 = vadd.f32 %v1052, %v1789
    %v1837 = vadd.f32 %v1054, %v1791
    %v1838 = vadd.f32 %v1125, %v1830
    %v1839 = vadd.f32 %v1127, %v1832
    %v1840 = vxor.u32 %v1836, 2147483648
    %v1841 = vmul.f32 %v1840, 1.442695
    %v1842 = vpow.pop %v1841
    %v1843 = vadd.f32 %v1842, 1.0
    %v1844 = vrcp.pop %v1843
    %v1845 = vmul.f32 1.0, %v1844
    %v1846 = vxor.u32 %v1837, 2147483648
    %v1847 = vmul.f32 %v1846, 1.442695
    %v1848 = vpow.pop %v1847
    %v1849 = vadd.f32 %v1848, 1.0
    %v1850 = vrcp.pop %v1849
    %v1851 = vmul.f32 1.0, %v1850
    %v1852 = vtanh.pop %v1838
    %v1853 = vxor.u32 %v1839, 2147483648
    %v1854 = vmul.f32 %v1853, 1.442695
    %v1855 = vpow.pop %v1854
    %v1856 = vadd.f32 %v1855, 1.0
    %v1857 = vrcp.pop %v1856
    %v1858 = vmul.f32 1.0, %v1857
    %v1859 = vmul.f32 %v1851, %v1748
    %v1860 = vmul.f32 %v1845, %v1852
    %v1861 = vadd.f32 %v1859, %v1860
    %v1862 = vtanh.pop %v1861
    %v1863 = vmul.f32 %v1858, %v1862
    %s1864 = scalar_lea.vmem [#allocation3], 32
    %1865 = vst [vmem:[%s1864] sm:$0xff] %v1863
    %v1866 = vpack.c.bf16 %v1863, %v1863
    %1867 = vmatprep.subr.bf16.mxu0 %v1268
    %1868 = vmatpush1.bf16.msra.mxu0 %v1267
    %1869 = vmatprep.subr.bf16.mxu0 %v1264
    %1870 = vmatpush1.bf16.msra.mxu0 %v1263
    %1871 = vmatprep.subr.bf16.mxu0 %v1260
    %1872 = vmatpush1.bf16.msra.mxu0 %v1259
    %1873 = vmatprep.subr.bf16.mxu0 %v1256
    %1874 = vmatpush1.bf16.msra.mxu0 %v1255
    %1875 = vmatprep.subr.bf16.mxu0 %v1252
    %1876 = vmatpush1.bf16.msra.mxu0 %v1251
    %1877 = vmatprep.subr.bf16.mxu0 %v1248
    %1878 = vmatpush1.bf16.msra.mxu0 %v1247
    %1879 = vmatprep.subr.bf16.mxu0 %v1244
    %1880 = vmatpush1.bf16.msra.mxu0 %v1243
    %1881 = vmatprep.subr.bf16.mxu0 %v1240
    %1882 = vmatpush1.bf16.msra.mxu0 %v1239
    %1883 = vmatprep.subr.bf16.mxu0 0
    %1884 = vmatpush2.bf16.msra.mxu0 0
    %1885 = vmatprep.subr.bf16.mxu0 0
    %1886 = vmatpush2.bf16.msra.mxu0 0
    %1887 = vmatprep.subr.bf16.mxu0 0
    %1888 = vmatpush2.bf16.msra.mxu0 0
    %1889 = vmatprep.subr.bf16.mxu0 0
    %1890 = vmatpush2.bf16.msra.mxu0 0
    %1891 = vmatprep.subr.bf16.mxu0 0
    %1892 = vmatpush2.bf16.msra.mxu0 0
    %1893 = vmatprep.subr.bf16.mxu0 0
    %1894 = vmatpush2.bf16.msra.mxu0 0
    %1895 = vmatprep.subr.bf16.mxu0 0
    %1896 = vmatpush2.bf16.msra.mxu0 0
    %1897 = vmatprep.subr.bf16.mxu0 0
    %1898 = vmatpush2.bf16.msra.mxu0 0
    %1899 = vmatprep.mubr.bf16.mxu0 0
    %1900 = vmatmul.mubr.bf16.gmra.mxu0 %v1866
    %v1901 = vpop.f32.mrf.mxu0
    %v1902 = vadd.f32 0.0, %v1901
    %v1903 = vpop.f32.mrf.mxu0
    %v1904 = vadd.f32 0.0, %v1903
    %v1905 = vpop.f32.mrf.mxu0
    %v1906 = vpop.f32.mrf.mxu0
    %1907 = vdwg.mxu0
    %1908 = vmatprep.subr.bf16.mxu0 %v1270
    %1909 = vmatpush1.bf16.msra.mxu0 %v1269
    %1910 = vmatprep.subr.bf16.mxu0 %v1266
    %1911 = vmatpush1.bf16.msra.mxu0 %v1265
    %1912 = vmatprep.subr.bf16.mxu0 %v1262
    %1913 = vmatpush1.bf16.msra.mxu0 %v1261
    %1914 = vmatprep.subr.bf16.mxu0 %v1258
    %1915 = vmatpush1.bf16.msra.mxu0 %v1257
    %1916 = vmatprep.subr.bf16.mxu0 %v1254
    %1917 = vmatpush1.bf16.msra.mxu0 %v1253
    %1918 = vmatprep.subr.bf16.mxu0 %v1250
    %1919 = vmatpush1.bf16.msra.mxu0 %v1249
    %1920 = vmatprep.subr.bf16.mxu0 %v1246
    %1921 = vmatpush1.bf16.msra.mxu0 %v1245
    %1922 = vmatprep.subr.bf16.mxu0 %v1242
    %1923 = vmatpush1.bf16.msra.mxu0 %v1241
    %1924 = vmatprep.subr.bf16.mxu0 0
    %1925 = vmatpush2.bf16.msra.mxu0 0
    %1926 = vmatprep.subr.bf16.mxu0 0
    %1927 = vmatpush2.bf16.msra.mxu0 0
    %1928 = vmatprep.subr.bf16.mxu0 0
    %1929 = vmatpush2.bf16.msra.mxu0 0
    %1930 = vmatprep.subr.bf16.mxu0 0
    %1931 = vmatpush2.bf16.msra.mxu0 0
    %1932 = vmatprep.subr.bf16.mxu0 0
    %1933 = vmatpush2.bf16.msra.mxu0 0
    %1934 = vmatprep.subr.bf16.mxu0 0
    %1935 = vmatpush2.bf16.msra.mxu0 0
    %1936 = vmatprep.subr.bf16.mxu0 0
    %1937 = vmatpush2.bf16.msra.mxu0 0
    %1938 = vmatprep.subr.bf16.mxu0 0
    %1939 = vmatpush2.bf16.msra.mxu0 0
    %1940 = vmatprep.mubr.bf16.mxu0 0
    %1941 = vmatmul.mubr.bf16.gmra.mxu0 %v1866
    %v1942 = vpop.f32.mrf.mxu0
    %v1943 = vadd.f32 0.0, %v1942
    %v1944 = vpop.f32.mrf.mxu0
    %v1945 = vadd.f32 0.0, %v1944
    %v1946 = vpop.f32.mrf.mxu0
    %v1947 = vpop.f32.mrf.mxu0
    %1948 = vdwg.mxu0
    %v1949 = vadd.f32 %v1056, %v1902
    %v1950 = vadd.f32 %v1058, %v1904
    %v1951 = vadd.f32 %v1129, %v1943
    %v1952 = vadd.f32 %v1131, %v1945
    %v1953 = vxor.u32 %v1949, 2147483648
    %v1954 = vmul.f32 %v1953, 1.442695
    %v1955 = vpow.pop %v1954
    %v1956 = vadd.f32 %v1955, 1.0
    %v1957 = vrcp.pop %v1956
    %v1958 = vmul.f32 1.0, %v1957
    %v1959 = vxor.u32 %v1950, 2147483648
    %v1960 = vmul.f32 %v1959, 1.442695
    %v1961 = vpow.pop %v1960
    %v1962 = vadd.f32 %v1961, 1.0
    %v1963 = vrcp.pop %v1962
    %v1964 = vmul.f32 1.0, %v1963
    %v1965 = vtanh.pop %v1951
    %v1966 = vxor.u32 %v1952, 2147483648
    %v1967 = vmul.f32 %v1966, 1.442695
    %v1968 = vpow.pop %v1967
    %v1969 = vadd.f32 %v1968, 1.0
    %v1970 = vrcp.pop %v1969
    %v1971 = vmul.f32 1.0, %v1970
    %v1972 = vmul.f32 %v1964, %v1861
    %v1973 = vmul.f32 %v1958, %v1965
    %v1974 = vadd.f32 %v1972, %v1973
    %v1975 = vtanh.pop %v1974
    %v1976 = vmul.f32 %v1971, %v1975
    %s1977 = scalar_lea.vmem [#allocation3], 40
    %1978 = vst [vmem:[%s1977] sm:$0xff] %v1976
    %v1979 = vpack.c.bf16 %v1976, %v1976
    %1980 = vmatprep.subr.bf16.mxu0 %v1268
    %1981 = vmatpush1.bf16.msra.mxu0 %v1267
    %1982 = vmatprep.subr.bf16.mxu0 %v1264
    %1983 = vmatpush1.bf16.msra.mxu0 %v1263
    %1984 = vmatprep.subr.bf16.mxu0 %v1260
    %1985 = vmatpush1.bf16.msra.mxu0 %v1259
    %1986 = vmatprep.subr.bf16.mxu0 %v1256
    %1987 = vmatpush1.bf16.msra.mxu0 %v1255
    %1988 = vmatprep.subr.bf16.mxu0 %v1252
    %1989 = vmatpush1.bf16.msra.mxu0 %v1251
    %1990 = vmatprep.subr.bf16.mxu0 %v1248
    %1991 = vmatpush1.bf16.msra.mxu0 %v1247
    %1992 = vmatprep.subr.bf16.mxu0 %v1244
    %1993 = vmatpush1.bf16.msra.mxu0 %v1243
    %1994 = vmatprep.subr.bf16.mxu0 %v1240
    %1995 = vmatpush1.bf16.msra.mxu0 %v1239
    %1996 = vmatprep.subr.bf16.mxu0 0
    %1997 = vmatpush2.bf16.msra.mxu0 0
    %1998 = vmatprep.subr.bf16.mxu0 0
    %1999 = vmatpush2.bf16.msra.mxu0 0
    %2000 = vmatprep.subr.bf16.mxu0 0
    %2001 = vmatpush2.bf16.msra.mxu0 0
    %2002 = vmatprep.subr.bf16.mxu0 0
    %2003 = vmatpush2.bf16.msra.mxu0 0
    %2004 = vmatprep.subr.bf16.mxu0 0
    %2005 = vmatpush2.bf16.msra.mxu0 0
    %2006 = vmatprep.subr.bf16.mxu0 0
    %2007 = vmatpush2.bf16.msra.mxu0 0
    %2008 = vmatprep.subr.bf16.mxu0 0
    %2009 = vmatpush2.bf16.msra.mxu0 0
    %2010 = vmatprep.subr.bf16.mxu0 0
    %2011 = vmatpush2.bf16.msra.mxu0 0
    %2012 = vmatprep.mubr.bf16.mxu0 0
    %2013 = vmatmul.mubr.bf16.gmra.mxu0 %v1979
    %v2014 = vpop.f32.mrf.mxu0
    %v2015 = vadd.f32 0.0, %v2014
    %v2016 = vpop.f32.mrf.mxu0
    %v2017 = vadd.f32 0.0, %v2016
    %v2018 = vpop.f32.mrf.mxu0
    %v2019 = vpop.f32.mrf.mxu0
    %2020 = vdwg.mxu0
    %2021 = vmatprep.subr.bf16.mxu0 %v1270
    %2022 = vmatpush1.bf16.msra.mxu0 %v1269
    %2023 = vmatprep.subr.bf16.mxu0 %v1266
    %2024 = vmatpush1.bf16.msra.mxu0 %v1265
    %2025 = vmatprep.subr.bf16.mxu0 %v1262
    %2026 = vmatpush1.bf16.msra.mxu0 %v1261
    %2027 = vmatprep.subr.bf16.mxu0 %v1258
    %2028 = vmatpush1.bf16.msra.mxu0 %v1257
    %2029 = vmatprep.subr.bf16.mxu0 %v1254
    %2030 = vmatpush1.bf16.msra.mxu0 %v1253
    %2031 = vmatprep.subr.bf16.mxu0 %v1250
    %2032 = vmatpush1.bf16.msra.mxu0 %v1249
    %2033 = vmatprep.subr.bf16.mxu0 %v1246
    %2034 = vmatpush1.bf16.msra.mxu0 %v1245
    %2035 = vmatprep.subr.bf16.mxu0 %v1242
    %2036 = vmatpush1.bf16.msra.mxu0 %v1241
    %2037 = vmatprep.subr.bf16.mxu0 0
    %2038 = vmatpush2.bf16.msra.mxu0 0
    %2039 = vmatprep.subr.bf16.mxu0 0
    %2040 = vmatpush2.bf16.msra.mxu0 0
    %2041 = vmatprep.subr.bf16.mxu0 0
    %2042 = vmatpush2.bf16.msra.mxu0 0
    %2043 = vmatprep.subr.bf16.mxu0 0
    %2044 = vmatpush2.bf16.msra.mxu0 0
    %2045 = vmatprep.subr.bf16.mxu0 0
    %2046 = vmatpush2.bf16.msra.mxu0 0
    %2047 = vmatprep.subr.bf16.mxu0 0
    %2048 = vmatpush2.bf16.msra.mxu0 0
    %2049 = vmatprep.subr.bf16.mxu0 0
    %2050 = vmatpush2.bf16.msra.mxu0 0
    %2051 = vmatprep.subr.bf16.mxu0 0
    %2052 = vmatpush2.bf16.msra.mxu0 0
    %2053 = vmatprep.mubr.bf16.mxu0 0
    %2054 = vmatmul.mubr.bf16.gmra.mxu0 %v1979
    %v2055 = vpop.f32.mrf.mxu0
    %v2056 = vadd.f32 0.0, %v2055
    %v2057 = vpop.f32.mrf.mxu0
    %v2058 = vadd.f32 0.0, %v2057
    %v2059 = vpop.f32.mrf.mxu0
    %v2060 = vpop.f32.mrf.mxu0
    %2061 = vdwg.mxu0
    %v2062 = vadd.f32 %v1062, %v2015
    %v2063 = vadd.f32 %v1064, %v2017
    %v2064 = vadd.f32 %v1135, %v2056
    %v2065 = vadd.f32 %v1137, %v2058
    %v2066 = vxor.u32 %v2062, 2147483648
    %v2067 = vmul.f32 %v2066, 1.442695
    %v2068 = vpow.pop %v2067
    %v2069 = vadd.f32 %v2068, 1.0
    %v2070 = vrcp.pop %v2069
    %v2071 = vmul.f32 1.0, %v2070
    %v2072 = vxor.u32 %v2063, 2147483648
    %v2073 = vmul.f32 %v2072, 1.442695
    %v2074 = vpow.pop %v2073
    %v2075 = vadd.f32 %v2074, 1.0
    %v2076 = vrcp.pop %v2075
    %v2077 = vmul.f32 1.0, %v2076
    %v2078 = vtanh.pop %v2064
    %v2079 = vxor.u32 %v2065, 2147483648
    %v2080 = vmul.f32 %v2079, 1.442695
    %v2081 = vpow.pop %v2080
    %v2082 = vadd.f32 %v2081, 1.0
    %v2083 = vrcp.pop %v2082
    %v2084 = vmul.f32 1.0, %v2083
    %v2085 = vmul.f32 %v2077, %v1974
    %v2086 = vmul.f32 %v2071, %v2078
    %v2087 = vadd.f32 %v2085, %v2086
    %v2088 = vtanh.pop %v2087
    %v2089 = vmul.f32 %v2084, %v2088
    %s2090 = scalar_lea.vmem [#allocation3], 48
    %2091 = vst [vmem:[%s2090] sm:$0xff] %v2089
    %v2092 = vpack.c.bf16 %v2089, %v2089
    %2093 = vmatprep.subr.bf16.mxu0 %v1268
    %2094 = vmatpush1.bf16.msra.mxu0 %v1267
    %2095 = vmatprep.subr.bf16.mxu0 %v1264
    %2096 = vmatpush1.bf16.msra.mxu0 %v1263
    %2097 = vmatprep.subr.bf16.mxu0 %v1260
    %2098 = vmatpush1.bf16.msra.mxu0 %v1259
    %2099 = vmatprep.subr.bf16.mxu0 %v1256
    %2100 = vmatpush1.bf16.msra.mxu0 %v1255
    %2101 = vmatprep.subr.bf16.mxu0 %v1252
    %2102 = vmatpush1.bf16.msra.mxu0 %v1251
    %2103 = vmatprep.subr.bf16.mxu0 %v1248
    %2104 = vmatpush1.bf16.msra.mxu0 %v1247
    %2105 = vmatprep.subr.bf16.mxu0 %v1244
    %2106 = vmatpush1.bf16.msra.mxu0 %v1243
    %2107 = vmatprep.subr.bf16.mxu0 %v1240
    %2108 = vmatpush1.bf16.msra.mxu0 %v1239
    %2109 = vmatprep.subr.bf16.mxu0 0
    %2110 = vmatpush2.bf16.msra.mxu0 0
    %2111 = vmatprep.subr.bf16.mxu0 0
    %2112 = vmatpush2.bf16.msra.mxu0 0
    %2113 = vmatprep.subr.bf16.mxu0 0
    %2114 = vmatpush2.bf16.msra.mxu0 0
    %2115 = vmatprep.subr.bf16.mxu0 0
    %2116 = vmatpush2.bf16.msra.mxu0 0
    %2117 = vmatprep.subr.bf16.mxu0 0
    %2118 = vmatpush2.bf16.msra.mxu0 0
    %2119 = vmatprep.subr.bf16.mxu0 0
    %2120 = vmatpush2.bf16.msra.mxu0 0
    %2121 = vmatprep.subr.bf16.mxu0 0
    %2122 = vmatpush2.bf16.msra.mxu0 0
    %2123 = vmatprep.subr.bf16.mxu0 0
    %2124 = vmatpush2.bf16.msra.mxu0 0
    %2125 = vmatprep.mubr.bf16.mxu0 0
    %2126 = vmatmul.mubr.bf16.gmra.mxu0 %v2092
    %v2127 = vpop.f32.mrf.mxu0
    %v2128 = vadd.f32 0.0, %v2127
    %v2129 = vpop.f32.mrf.mxu0
    %v2130 = vadd.f32 0.0, %v2129
    %v2131 = vpop.f32.mrf.mxu0
    %v2132 = vpop.f32.mrf.mxu0
    %2133 = vdwg.mxu0
    %2134 = vmatprep.subr.bf16.mxu0 %v1270
    %2135 = vmatpush1.bf16.msra.mxu0 %v1269
    %2136 = vmatprep.subr.bf16.mxu0 %v1266
    %2137 = vmatpush1.bf16.msra.mxu0 %v1265
    %2138 = vmatprep.subr.bf16.mxu0 %v1262
    %2139 = vmatpush1.bf16.msra.mxu0 %v1261
    %2140 = vmatprep.subr.bf16.mxu0 %v1258
    %2141 = vmatpush1.bf16.msra.mxu0 %v1257
    %2142 = vmatprep.subr.bf16.mxu0 %v1254
    %2143 = vmatpush1.bf16.msra.mxu0 %v1253
    %2144 = vmatprep.subr.bf16.mxu0 %v1250
    %2145 = vmatpush1.bf16.msra.mxu0 %v1249
    %2146 = vmatprep.subr.bf16.mxu0 %v1246
    %2147 = vmatpush1.bf16.msra.mxu0 %v1245
    %2148 = vmatprep.subr.bf16.mxu0 %v1242
    %2149 = vmatpush1.bf16.msra.mxu0 %v1241
    %2150 = vmatprep.subr.bf16.mxu0 0
    %2151 = vmatpush2.bf16.msra.mxu0 0
    %2152 = vmatprep.subr.bf16.mxu0 0
    %2153 = vmatpush2.bf16.msra.mxu0 0
    %2154 = vmatprep.subr.bf16.mxu0 0
    %2155 = vmatpush2.bf16.msra.mxu0 0
    %2156 = vmatprep.subr.bf16.mxu0 0
    %2157 = vmatpush2.bf16.msra.mxu0 0
    %2158 = vmatprep.subr.bf16.mxu0 0
    %2159 = vmatpush2.bf16.msra.mxu0 0
    %2160 = vmatprep.subr.bf16.mxu0 0
    %2161 = vmatpush2.bf16.msra.mxu0 0
    %2162 = vmatprep.subr.bf16.mxu0 0
    %2163 = vmatpush2.bf16.msra.mxu0 0
    %2164 = vmatprep.subr.bf16.mxu0 0
    %2165 = vmatpush2.bf16.msra.mxu0 0
    %2166 = vmatprep.mubr.bf16.mxu0 0
    %2167 = vmatmul.mubr.bf16.gmra.mxu0 %v2092
    %v2168 = vpop.f32.mrf.mxu0
    %v2169 = vadd.f32 0.0, %v2168
    %v2170 = vpop.f32.mrf.mxu0
    %v2171 = vadd.f32 0.0, %v2170
    %v2172 = vpop.f32.mrf.mxu0
    %v2173 = vpop.f32.mrf.mxu0
    %2174 = vdwg.mxu0
    %v2175 = vadd.f32 %v1066, %v2128
    %v2176 = vadd.f32 %v1068, %v2130
    %v2177 = vadd.f32 %v1139, %v2169
    %v2178 = vadd.f32 %v1141, %v2171
    %v2179 = vxor.u32 %v2175, 2147483648
    %v2180 = vmul.f32 %v2179, 1.442695
    %v2181 = vpow.pop %v2180
    %v2182 = vadd.f32 %v2181, 1.0
    %v2183 = vrcp.pop %v2182
    %v2184 = vmul.f32 1.0, %v2183
    %v2185 = vxor.u32 %v2176, 2147483648
    %v2186 = vmul.f32 %v2185, 1.442695
    %v2187 = vpow.pop %v2186
    %v2188 = vadd.f32 %v2187, 1.0
    %v2189 = vrcp.pop %v2188
    %v2190 = vmul.f32 1.0, %v2189
    %v2191 = vtanh.pop %v2177
    %v2192 = vxor.u32 %v2178, 2147483648
    %v2193 = vmul.f32 %v2192, 1.442695
    %v2194 = vpow.pop %v2193
    %v2195 = vadd.f32 %v2194, 1.0
    %v2196 = vrcp.pop %v2195
    %v2197 = vmul.f32 1.0, %v2196
    %v2198 = vmul.f32 %v2190, %v2087
    %v2199 = vmul.f32 %v2184, %v2191
    %v2200 = vadd.f32 %v2198, %v2199
    %v2201 = vtanh.pop %v2200
    %v2202 = vmul.f32 %v2197, %v2201
    %s2203 = scalar_lea.vmem [#allocation3], 56
    %2204 = vst [vmem:[%s2203] sm:$0xff] %v2202
    %v2205 = vld [vmem:[#allocation3] sm:$0xff]
    %v2206 = vld [vmem:[#allocation3 + $0x8] sm:$0xff]
    %v2207 = vld [vmem:[#allocation3 + $0x10] sm:$0xff]
    %v2208 = vld [vmem:[#allocation3 + $0x18] sm:$0xff]
    %v2209 = vld [vmem:[#allocation3 + $0x20] sm:$0xff]
    %v2210 = vld [vmem:[#allocation3 + $0x28] sm:$0xff]
    %v2211 = vld [vmem:[#allocation3 + $0x30] sm:$0xff]
    %v2212 = vld [vmem:[#allocation3 + $0x38] sm:$0xff]
    %v2213 = vld [vmem:[#allocation13] sm:$0xff]
    %v2214 = vld [vmem:[#allocation13 + $0x8] sm:$0xff]
    %v2215 = vld [vmem:[#allocation13 + $0x10] sm:$0xff]
    %v2216 = vld [vmem:[#allocation13 + $0x18] sm:$0xff]
    %v2217 = vld [vmem:[#allocation13 + $0x20] sm:$0xff]
    %v2218 = vld [vmem:[#allocation13 + $0x28] sm:$0xff]
    %v2219 = vld [vmem:[#allocation13 + $0x30] sm:$0xff]
    %v2220 = vld [vmem:[#allocation13 + $0x38] sm:$0xff]
    %v2221 = vld [vmem:[#allocation13 + $0x40] sm:$0xff]
    %v2222 = vld [vmem:[#allocation13 + $0x48] sm:$0xff]
    %v2223 = vld [vmem:[#allocation13 + $0x50] sm:$0xff]
    %v2224 = vld [vmem:[#allocation13 + $0x58] sm:$0xff]
    %v2225 = vld [vmem:[#allocation13 + $0x60] sm:$0xff]
    %v2226 = vld [vmem:[#allocation13 + $0x68] sm:$0xff]
    %v2227 = vld [vmem:[#allocation13 + $0x70] sm:$0xff]
    %v2228 = vld [vmem:[#allocation13 + $0x78] sm:$0xff]
    %v2229 = vld [vmem:[#allocation13 + $0x80] sm:$0xff]
    %v2230 = vld [vmem:[#allocation13 + $0x88] sm:$0xff]
    %v2231 = vld [vmem:[#allocation13 + $0x90] sm:$0xff]
    %v2232 = vld [vmem:[#allocation13 + $0x98] sm:$0xff]
    %v2233 = vld [vmem:[#allocation13 + $0xa0] sm:$0xff]
    %v2234 = vld [vmem:[#allocation13 + $0xa8] sm:$0xff]
    %v2235 = vld [vmem:[#allocation13 + $0xb0] sm:$0xff]
    %v2236 = vld [vmem:[#allocation13 + $0xb8] sm:$0xff]
    %v2237 = vld [vmem:[#allocation13 + $0xc0] sm:$0xff]
    %v2238 = vld [vmem:[#allocation13 + $0xc8] sm:$0xff]
    %v2239 = vld [vmem:[#allocation13 + $0xd0] sm:$0xff]
    %v2240 = vld [vmem:[#allocation13 + $0xd8] sm:$0xff]
    %v2241 = vld [vmem:[#allocation13 + $0xe0] sm:$0xff]
    %v2242 = vld [vmem:[#allocation13 + $0xe8] sm:$0xff]
    %v2243 = vld [vmem:[#allocation13 + $0xf0] sm:$0xff]
    %v2244 = vld [vmem:[#allocation13 + $0xf8] sm:$0xff]
    %v2245 = vpack.c.bf16 %v2206, %v2205
    %v2246 = vpack.c.bf16 %v2208, %v2207
    %v2247 = vpack.c.bf16 %v2210, %v2209
    %v2248 = vpack.c.bf16 %v2212, %v2211
    %v2249 = vld [vmem:[#allocation11] sm:$0xff]
    %v2250 = vld [vmem:[#allocation11 + $0x8] sm:$0xff]
    %v2251 = vld [vmem:[#allocation11 + $0x10] sm:$0xff]
    %v2252 = vld [vmem:[#allocation11 + $0x18] sm:$0xff]
    %v2253 = vld [vmem:[#allocation11 + $0x20] sm:$0xff]
    %v2254 = vld [vmem:[#allocation11 + $0x28] sm:$0xff]
    %v2255 = vld [vmem:[#allocation11 + $0x30] sm:$0xff]
    %v2256 = vld [vmem:[#allocation11 + $0x38] sm:$0xff]
    %v2257 = vld [vmem:[#allocation11 + $0x40] sm:$0xff]
    %v2258 = vld [vmem:[#allocation11 + $0x48] sm:$0xff]
    %v2259 = vld [vmem:[#allocation11 + $0x50] sm:$0xff]
    %v2260 = vld [vmem:[#allocation11 + $0x58] sm:$0xff]
    %v2261 = vld [vmem:[#allocation11 + $0x60] sm:$0xff]
    %v2262 = vld [vmem:[#allocation11 + $0x68] sm:$0xff]
    %v2263 = vld [vmem:[#allocation11 + $0x70] sm:$0xff]
    %v2264 = vld [vmem:[#allocation11 + $0x78] sm:$0xff]
    %v2265 = vld [vmem:[#allocation11 + $0x80] sm:$0xff]
    %v2266 = vld [vmem:[#allocation11 + $0x88] sm:$0xff]
    %v2267 = vld [vmem:[#allocation11 + $0x90] sm:$0xff]
    %v2268 = vld [vmem:[#allocation11 + $0x98] sm:$0xff]
    %v2269 = vld [vmem:[#allocation11 + $0xa0] sm:$0xff]
    %v2270 = vld [vmem:[#allocation11 + $0xa8] sm:$0xff]
    %v2271 = vld [vmem:[#allocation11 + $0xb0] sm:$0xff]
    %v2272 = vld [vmem:[#allocation11 + $0xb8] sm:$0xff]
    %v2273 = vld [vmem:[#allocation11 + $0xc0] sm:$0xff]
    %v2274 = vld [vmem:[#allocation11 + $0xc8] sm:$0xff]
    %v2275 = vld [vmem:[#allocation11 + $0xd0] sm:$0xff]
    %v2276 = vld [vmem:[#allocation11 + $0xd8] sm:$0xff]
    %v2277 = vld [vmem:[#allocation11 + $0xe0] sm:$0xff]
    %v2278 = vld [vmem:[#allocation11 + $0xe8] sm:$0xff]
    %v2279 = vld [vmem:[#allocation11 + $0xf0] sm:$0xff]
    %v2280 = vld [vmem:[#allocation11 + $0xf8] sm:$0xff]
    %v2281 = vld [vmem:[%s12] sm:$0xf]
    %v2283 = vlaneseq
    %v2284 = vshrl.u32 %v2283, 7
    %v2285 = vsub.s32 0, %v2284
    %v2286 = vrot.slane %v2281, %v2285
    %v2287 = vlaneseq
    %v2288 = vshrl.u32 %v2287, 7
    %v2289 = vsub.s32 1, %v2288
    %v2290 = vrot.slane %v2281, %v2289
    %v2291 = vlaneseq
    %v2292 = vshrl.u32 %v2291, 7
    %v2293 = vsub.s32 2, %v2292
    %v2294 = vrot.slane %v2281, %v2293
    %v2295 = vlaneseq
    %v2296 = vshrl.u32 %v2295, 7
    %v2297 = vsub.s32 3, %v2296
    %v2298 = vrot.slane %v2281, %v2297
    %v2335 = vunpack.c.l.b16 %v2249
    %v2336 = vunpack.c.h.b16 %v2249
    %v2337 = vunpack.c.l.b16 %v2250
    %v2338 = vunpack.c.h.b16 %v2250
    %v2339 = vunpack.c.l.b16 %v2251
    %v2340 = vunpack.c.h.b16 %v2251
    %v2341 = vunpack.c.l.b16 %v2252
    %v2342 = vunpack.c.h.b16 %v2252
    %v2343 = vunpack.c.l.b16 %v2253
    %v2344 = vunpack.c.h.b16 %v2253
    %v2345 = vunpack.c.l.b16 %v2254
    %v2346 = vunpack.c.h.b16 %v2254
    %v2347 = vunpack.c.l.b16 %v2255
    %v2348 = vunpack.c.h.b16 %v2255
    %v2349 = vunpack.c.l.b16 %v2256
    %v2350 = vunpack.c.h.b16 %v2256
    %v2351 = vunpack.c.l.b16 %v2257
    %v2352 = vunpack.c.h.b16 %v2257
    %v2353 = vunpack.c.l.b16 %v2258
    %v2354 = vunpack.c.h.b16 %v2258
    %v2355 = vunpack.c.l.b16 %v2259
    %v2356 = vunpack.c.h.b16 %v2259
    %v2357 = vunpack.c.l.b16 %v2260
    %v2358 = vunpack.c.h.b16 %v2260
    %v2359 = vunpack.c.l.b16 %v2261
    %v2360 = vunpack.c.h.b16 %v2261
    %v2361 = vunpack.c.l.b16 %v2262
    %v2362 = vunpack.c.h.b16 %v2262
    %v2363 = vunpack.c.l.b16 %v2263
    %v2364 = vunpack.c.h.b16 %v2263
    %v2365 = vunpack.c.l.b16 %v2264
    %v2366 = vunpack.c.h.b16 %v2264
    %v2367 = vunpack.c.l.b16 %v2265
    %v2368 = vunpack.c.h.b16 %v2265
    %v2369 = vunpack.c.l.b16 %v2266
    %v2370 = vunpack.c.h.b16 %v2266
    %v2371 = vunpack.c.l.b16 %v2267
    %v2372 = vunpack.c.h.b16 %v2267
    %v2373 = vunpack.c.l.b16 %v2268
    %v2374 = vunpack.c.h.b16 %v2268
    %v2375 = vunpack.c.l.b16 %v2269
    %v2376 = vunpack.c.h.b16 %v2269
    %v2377 = vunpack.c.l.b16 %v2270
    %v2378 = vunpack.c.h.b16 %v2270
    %v2379 = vunpack.c.l.b16 %v2271
    %v2380 = vunpack.c.h.b16 %v2271
    %v2381 = vunpack.c.l.b16 %v2272
    %v2382 = vunpack.c.h.b16 %v2272
    %v2383 = vunpack.c.l.b16 %v2273
    %v2384 = vunpack.c.h.b16 %v2273
    %v2385 = vunpack.c.l.b16 %v2274
    %v2386 = vunpack.c.h.b16 %v2274
    %v2387 = vunpack.c.l.b16 %v2275
    %v2388 = vunpack.c.h.b16 %v2275
    %v2389 = vunpack.c.l.b16 %v2276
    %v2390 = vunpack.c.h.b16 %v2276
    %v2391 = vunpack.c.l.b16 %v2277
    %v2392 = vunpack.c.h.b16 %v2277
    %v2393 = vunpack.c.l.b16 %v2278
    %v2394 = vunpack.c.h.b16 %v2278
    %v2395 = vunpack.c.l.b16 %v2279
    %v2396 = vunpack.c.h.b16 %v2279
    %v2397 = vunpack.c.l.b16 %v2280
    %v2398 = vunpack.c.h.b16 %v2280
    %v2399 = vpack.c.b16 %v2339, %v2335
    %v2400 = vpack.c.b16 %v2340, %v2336
    %v2401 = vpack.c.b16 %v2341, %v2337
    %v2402 = vpack.c.b16 %v2342, %v2338
    %v2403 = vpack.c.b16 %v2347, %v2343
    %v2404 = vpack.c.b16 %v2348, %v2344
    %v2405 = vpack.c.b16 %v2349, %v2345
    %v2406 = vpack.c.b16 %v2350, %v2346
    %v2407 = vpack.c.b16 %v2355, %v2351
    %v2408 = vpack.c.b16 %v2356, %v2352
    %v2409 = vpack.c.b16 %v2357, %v2353
    %v2410 = vpack.c.b16 %v2358, %v2354
    %v2411 = vpack.c.b16 %v2363, %v2359
    %v2412 = vpack.c.b16 %v2364, %v2360
    %v2413 = vpack.c.b16 %v2365, %v2361
    %v2414 = vpack.c.b16 %v2366, %v2362
    %v2415 = vpack.c.b16 %v2371, %v2367
    %v2416 = vpack.c.b16 %v2372, %v2368
    %v2417 = vpack.c.b16 %v2373, %v2369
    %v2418 = vpack.c.b16 %v2374, %v2370
    %v2419 = vpack.c.b16 %v2379, %v2375
    %v2420 = vpack.c.b16 %v2380, %v2376
    %v2421 = vpack.c.b16 %v2381, %v2377
    %v2422 = vpack.c.b16 %v2382, %v2378
    %v2423 = vpack.c.b16 %v2387, %v2383
    %v2424 = vpack.c.b16 %v2388, %v2384
    %v2425 = vpack.c.b16 %v2389, %v2385
    %v2426 = vpack.c.b16 %v2390, %v2386
    %v2427 = vpack.c.b16 %v2395, %v2391
    %v2428 = vpack.c.b16 %v2396, %v2392
    %v2429 = vpack.c.b16 %v2397, %v2393
    %v2430 = vpack.c.b16 %v2398, %v2394
    %2463 = vmatprep.subr.bf16.mxu0 %v2428
    %2464 = vmatpush1.bf16.msra.mxu0 %v2427
    %2465 = vmatprep.subr.bf16.mxu0 %v2424
    %2466 = vmatpush1.bf16.msra.mxu0 %v2423
    %2467 = vmatprep.subr.bf16.mxu0 %v2420
    %2468 = vmatpush1.bf16.msra.mxu0 %v2419
    %2469 = vmatprep.subr.bf16.mxu0 %v2416
    %2470 = vmatpush1.bf16.msra.mxu0 %v2415
    %2471 = vmatprep.subr.bf16.mxu0 %v2412
    %2472 = vmatpush1.bf16.msra.mxu0 %v2411
    %2473 = vmatprep.subr.bf16.mxu0 %v2408
    %2474 = vmatpush1.bf16.msra.mxu0 %v2407
    %2475 = vmatprep.subr.bf16.mxu0 %v2404
    %2476 = vmatpush1.bf16.msra.mxu0 %v2403
    %2477 = vmatprep.subr.bf16.mxu0 %v2400
    %2478 = vmatpush1.bf16.msra.mxu0 %v2399
    %2479 = vmatprep.subr.bf16.mxu0 0
    %2480 = vmatpush2.bf16.msra.mxu0 0
    %2481 = vmatprep.subr.bf16.mxu0 0
    %2482 = vmatpush2.bf16.msra.mxu0 0
    %2483 = vmatprep.subr.bf16.mxu0 0
    %2484 = vmatpush2.bf16.msra.mxu0 0
    %2485 = vmatprep.subr.bf16.mxu0 0
    %2486 = vmatpush2.bf16.msra.mxu0 0
    %2487 = vmatprep.subr.bf16.mxu0 0
    %2488 = vmatpush2.bf16.msra.mxu0 0
    %2489 = vmatprep.subr.bf16.mxu0 0
    %2490 = vmatpush2.bf16.msra.mxu0 0
    %2491 = vmatprep.subr.bf16.mxu0 0
    %2492 = vmatpush2.bf16.msra.mxu0 0
    %2493 = vmatprep.subr.bf16.mxu0 0
    %2494 = vmatpush2.bf16.msra.mxu0 0
    %2495 = vmatprep.mubr.bf16.mxu0 0
    %2496 = vmatmul.mubr.bf16.gmra.mxu0 %v2245
    %v2497 = vpop.f32.mrf.mxu0
    %v2498 = vadd.f32 %v2286, %v2497
    %v2499 = vpop.f32.mrf.mxu0
    %v2500 = vadd.f32 %v2290, %v2499
    %v2501 = vpop.f32.mrf.mxu0
    %v2502 = vadd.f32 %v2286, %v2501
    %v2503 = vpop.f32.mrf.mxu0
    %v2504 = vadd.f32 %v2290, %v2503
    %2505 = vmatprep.mubr.bf16.mxu0 0
    %2506 = vmatmul.mubr.bf16.gmra.mxu0 %v2246
    %v2507 = vpop.f32.mrf.mxu0
    %v2508 = vadd.f32 %v2286, %v2507
    %v2509 = vpop.f32.mrf.mxu0
    %v2510 = vadd.f32 %v2290, %v2509
    %v2511 = vpop.f32.mrf.mxu0
    %v2512 = vadd.f32 %v2286, %v2511
    %v2513 = vpop.f32.mrf.mxu0
    %v2514 = vadd.f32 %v2290, %v2513
    %2515 = vmatprep.mubr.bf16.mxu0 0
    %2516 = vmatmul.mubr.bf16.gmra.mxu0 %v2247
    %v2517 = vpop.f32.mrf.mxu0
    %v2518 = vadd.f32 %v2286, %v2517
    %v2519 = vpop.f32.mrf.mxu0
    %v2520 = vadd.f32 %v2290, %v2519
    %v2521 = vpop.f32.mrf.mxu0
    %v2522 = vadd.f32 %v2286, %v2521
    %v2523 = vpop.f32.mrf.mxu0
    %v2524 = vadd.f32 %v2290, %v2523
    %2525 = vmatprep.mubr.bf16.mxu0 0
    %2526 = vmatmul.mubr.bf16.gmra.mxu0 %v2248
    %v2527 = vpop.f32.mrf.mxu0
    %v2528 = vadd.f32 %v2286, %v2527
    %v2529 = vpop.f32.mrf.mxu0
    %v2530 = vadd.f32 %v2290, %v2529
    %v2531 = vpop.f32.mrf.mxu0
    %v2532 = vadd.f32 %v2286, %v2531
    %v2533 = vpop.f32.mrf.mxu0
    %v2534 = vadd.f32 %v2290, %v2533
    %2535 = vdwg.mxu0
    %2536 = vmatprep.subr.bf16.mxu0 %v2430
    %2537 = vmatpush1.bf16.msra.mxu0 %v2429
    %2538 = vmatprep.subr.bf16.mxu0 %v2426
    %2539 = vmatpush1.bf16.msra.mxu0 %v2425
    %2540 = vmatprep.subr.bf16.mxu0 %v2422
    %2541 = vmatpush1.bf16.msra.mxu0 %v2421
    %2542 = vmatprep.subr.bf16.mxu0 %v2418
    %2543 = vmatpush1.bf16.msra.mxu0 %v2417
    %2544 = vmatprep.subr.bf16.mxu0 %v2414
    %2545 = vmatpush1.bf16.msra.mxu0 %v2413
    %2546 = vmatprep.subr.bf16.mxu0 %v2410
    %2547 = vmatpush1.bf16.msra.mxu0 %v2409
    %2548 = vmatprep.subr.bf16.mxu0 %v2406
    %2549 = vmatpush1.bf16.msra.mxu0 %v2405
    %2550 = vmatprep.subr.bf16.mxu0 %v2402
    %2551 = vmatpush1.bf16.msra.mxu0 %v2401
    %2552 = vmatprep.subr.bf16.mxu0 0
    %2553 = vmatpush2.bf16.msra.mxu0 0
    %2554 = vmatprep.subr.bf16.mxu0 0
    %2555 = vmatpush2.bf16.msra.mxu0 0
    %2556 = vmatprep.subr.bf16.mxu0 0
    %2557 = vmatpush2.bf16.msra.mxu0 0
    %2558 = vmatprep.subr.bf16.mxu0 0
    %2559 = vmatpush2.bf16.msra.mxu0 0
    %2560 = vmatprep.subr.bf16.mxu0 0
    %2561 = vmatpush2.bf16.msra.mxu0 0
    %2562 = vmatprep.subr.bf16.mxu0 0
    %2563 = vmatpush2.bf16.msra.mxu0 0
    %2564 = vmatprep.subr.bf16.mxu0 0
    %2565 = vmatpush2.bf16.msra.mxu0 0
    %2566 = vmatprep.subr.bf16.mxu0 0
    %2567 = vmatpush2.bf16.msra.mxu0 0
    %2568 = vmatprep.mubr.bf16.mxu0 0
    %2569 = vmatmul.mubr.bf16.gmra.mxu0 %v2245
    %v2570 = vpop.f32.mrf.mxu0
    %v2571 = vadd.f32 %v2294, %v2570
    %v2572 = vpop.f32.mrf.mxu0
    %v2573 = vadd.f32 %v2298, %v2572
    %v2574 = vpop.f32.mrf.mxu0
    %v2575 = vadd.f32 %v2294, %v2574
    %v2576 = vpop.f32.mrf.mxu0
    %v2577 = vadd.f32 %v2298, %v2576
    %2578 = vmatprep.mubr.bf16.mxu0 0
    %2579 = vmatmul.mubr.bf16.gmra.mxu0 %v2246
    %v2580 = vpop.f32.mrf.mxu0
    %v2581 = vadd.f32 %v2294, %v2580
    %v2582 = vpop.f32.mrf.mxu0
    %v2583 = vadd.f32 %v2298, %v2582
    %v2584 = vpop.f32.mrf.mxu0
    %v2585 = vadd.f32 %v2294, %v2584
    %v2586 = vpop.f32.mrf.mxu0
    %v2587 = vadd.f32 %v2298, %v2586
    %2588 = vmatprep.mubr.bf16.mxu0 0
    %2589 = vmatmul.mubr.bf16.gmra.mxu0 %v2247
    %v2590 = vpop.f32.mrf.mxu0
    %v2591 = vadd.f32 %v2294, %v2590
    %v2592 = vpop.f32.mrf.mxu0
    %v2593 = vadd.f32 %v2298, %v2592
    %v2594 = vpop.f32.mrf.mxu0
    %v2595 = vadd.f32 %v2294, %v2594
    %v2596 = vpop.f32.mrf.mxu0
    %v2597 = vadd.f32 %v2298, %v2596
    %2598 = vmatprep.mubr.bf16.mxu0 0
    %2599 = vmatmul.mubr.bf16.gmra.mxu0 %v2248
    %v2600 = vpop.f32.mrf.mxu0
    %v2601 = vadd.f32 %v2294, %v2600
    %v2602 = vpop.f32.mrf.mxu0
    %v2603 = vadd.f32 %v2298, %v2602
    %v2604 = vpop.f32.mrf.mxu0
    %v2605 = vadd.f32 %v2294, %v2604
    %v2606 = vpop.f32.mrf.mxu0
    %v2607 = vadd.f32 %v2298, %v2606
    %2608 = vdwg.mxu0
    %v2641 = vunpack.c.l.b16 %v2213
    %v2642 = vunpack.c.h.b16 %v2213
    %v2643 = vunpack.c.l.b16 %v2214
    %v2644 = vunpack.c.h.b16 %v2214
    %v2645 = vunpack.c.l.b16 %v2215
    %v2646 = vunpack.c.h.b16 %v2215
    %v2647 = vunpack.c.l.b16 %v2216
    %v2648 = vunpack.c.h.b16 %v2216
    %v2649 = vunpack.c.l.b16 %v2217
    %v2650 = vunpack.c.h.b16 %v2217
    %v2651 = vunpack.c.l.b16 %v2218
    %v2652 = vunpack.c.h.b16 %v2218
    %v2653 = vunpack.c.l.b16 %v2219
    %v2654 = vunpack.c.h.b16 %v2219
    %v2655 = vunpack.c.l.b16 %v2220
    %v2656 = vunpack.c.h.b16 %v2220
    %v2657 = vunpack.c.l.b16 %v2221
    %v2658 = vunpack.c.h.b16 %v2221
    %v2659 = vunpack.c.l.b16 %v2222
    %v2660 = vunpack.c.h.b16 %v2222
    %v2661 = vunpack.c.l.b16 %v2223
    %v2662 = vunpack.c.h.b16 %v2223
    %v2663 = vunpack.c.l.b16 %v2224
    %v2664 = vunpack.c.h.b16 %v2224
    %v2665 = vunpack.c.l.b16 %v2225
    %v2666 = vunpack.c.h.b16 %v2225
    %v2667 = vunpack.c.l.b16 %v2226
    %v2668 = vunpack.c.h.b16 %v2226
    %v2669 = vunpack.c.l.b16 %v2227
    %v2670 = vunpack.c.h.b16 %v2227
    %v2671 = vunpack.c.l.b16 %v2228
    %v2672 = vunpack.c.h.b16 %v2228
    %v2673 = vunpack.c.l.b16 %v2229
    %v2674 = vunpack.c.h.b16 %v2229
    %v2675 = vunpack.c.l.b16 %v2230
    %v2676 = vunpack.c.h.b16 %v2230
    %v2677 = vunpack.c.l.b16 %v2231
    %v2678 = vunpack.c.h.b16 %v2231
    %v2679 = vunpack.c.l.b16 %v2232
    %v2680 = vunpack.c.h.b16 %v2232
    %v2681 = vunpack.c.l.b16 %v2233
    %v2682 = vunpack.c.h.b16 %v2233
    %v2683 = vunpack.c.l.b16 %v2234
    %v2684 = vunpack.c.h.b16 %v2234
    %v2685 = vunpack.c.l.b16 %v2235
    %v2686 = vunpack.c.h.b16 %v2235
    %v2687 = vunpack.c.l.b16 %v2236
    %v2688 = vunpack.c.h.b16 %v2236
    %v2689 = vunpack.c.l.b16 %v2237
    %v2690 = vunpack.c.h.b16 %v2237
    %v2691 = vunpack.c.l.b16 %v2238
    %v2692 = vunpack.c.h.b16 %v2238
    %v2693 = vunpack.c.l.b16 %v2239
    %v2694 = vunpack.c.h.b16 %v2239
    %v2695 = vunpack.c.l.b16 %v2240
    %v2696 = vunpack.c.h.b16 %v2240
    %v2697 = vunpack.c.l.b16 %v2241
    %v2698 = vunpack.c.h.b16 %v2241
    %v2699 = vunpack.c.l.b16 %v2242
    %v2700 = vunpack.c.h.b16 %v2242
    %v2701 = vunpack.c.l.b16 %v2243
    %v2702 = vunpack.c.h.b16 %v2243
    %v2703 = vunpack.c.l.b16 %v2244
    %v2704 = vunpack.c.h.b16 %v2244
    %v2705 = vpack.c.b16 %v2645, %v2641
    %v2706 = vpack.c.b16 %v2646, %v2642
    %v2707 = vpack.c.b16 %v2647, %v2643
    %v2708 = vpack.c.b16 %v2648, %v2644
    %v2709 = vpack.c.b16 %v2653, %v2649
    %v2710 = vpack.c.b16 %v2654, %v2650
    %v2711 = vpack.c.b16 %v2655, %v2651
    %v2712 = vpack.c.b16 %v2656, %v2652
    %v2713 = vpack.c.b16 %v2661, %v2657
    %v2714 = vpack.c.b16 %v2662, %v2658
    %v2715 = vpack.c.b16 %v2663, %v2659
    %v2716 = vpack.c.b16 %v2664, %v2660
    %v2717 = vpack.c.b16 %v2669, %v2665
    %v2718 = vpack.c.b16 %v2670, %v2666
    %v2719 = vpack.c.b16 %v2671, %v2667
    %v2720 = vpack.c.b16 %v2672, %v2668
    %v2721 = vpack.c.b16 %v2677, %v2673
    %v2722 = vpack.c.b16 %v2678, %v2674
    %v2723 = vpack.c.b16 %v2679, %v2675
    %v2724 = vpack.c.b16 %v2680, %v2676
    %v2725 = vpack.c.b16 %v2685, %v2681
    %v2726 = vpack.c.b16 %v2686, %v2682
    %v2727 = vpack.c.b16 %v2687, %v2683
    %v2728 = vpack.c.b16 %v2688, %v2684
    %v2729 = vpack.c.b16 %v2693, %v2689
    %v2730 = vpack.c.b16 %v2694, %v2690
    %v2731 = vpack.c.b16 %v2695, %v2691
    %v2732 = vpack.c.b16 %v2696, %v2692
    %v2733 = vpack.c.b16 %v2701, %v2697
    %v2734 = vpack.c.b16 %v2702, %v2698
    %v2735 = vpack.c.b16 %v2703, %v2699
    %v2736 = vpack.c.b16 %v2704, %v2700
    %2769 = vmatprep.subr.bf16.mxu0 %v2734
    %2770 = vmatpush1.bf16.msra.mxu0 %v2733
    %2771 = vmatprep.subr.bf16.mxu0 %v2730
    %2772 = vmatpush1.bf16.msra.mxu0 %v2729
    %2773 = vmatprep.subr.bf16.mxu0 %v2726
    %2774 = vmatpush1.bf16.msra.mxu0 %v2725
    %2775 = vmatprep.subr.bf16.mxu0 %v2722
    %2776 = vmatpush1.bf16.msra.mxu0 %v2721
    %2777 = vmatprep.subr.bf16.mxu0 %v2718
    %2778 = vmatpush1.bf16.msra.mxu0 %v2717
    %2779 = vmatprep.subr.bf16.mxu0 %v2714
    %2780 = vmatpush1.bf16.msra.mxu0 %v2713
    %2781 = vmatprep.subr.bf16.mxu0 %v2710
    %2782 = vmatpush1.bf16.msra.mxu0 %v2709
    %2783 = vmatprep.subr.bf16.mxu0 %v2706
    %2784 = vmatpush1.bf16.msra.mxu0 %v2705
    %2785 = vmatprep.subr.bf16.mxu0 0
    %2786 = vmatpush2.bf16.msra.mxu0 0
    %2787 = vmatprep.subr.bf16.mxu0 0
    %2788 = vmatpush2.bf16.msra.mxu0 0
    %2789 = vmatprep.subr.bf16.mxu0 0
    %2790 = vmatpush2.bf16.msra.mxu0 0
    %2791 = vmatprep.subr.bf16.mxu0 0
    %2792 = vmatpush2.bf16.msra.mxu0 0
    %2793 = vmatprep.subr.bf16.mxu0 0
    %2794 = vmatpush2.bf16.msra.mxu0 0
    %2795 = vmatprep.subr.bf16.mxu0 0
    %2796 = vmatpush2.bf16.msra.mxu0 0
    %2797 = vmatprep.subr.bf16.mxu0 0
    %2798 = vmatpush2.bf16.msra.mxu0 0
    %2799 = vmatprep.subr.bf16.mxu0 0
    %2800 = vmatpush2.bf16.msra.mxu0 0
    %2801 = vmatprep.mubr.bf16.mxu0 0
    %2802 = vmatmul.mubr.bf16.gmra.mxu0 0
    %v2803 = vpop.f32.mrf.mxu0
    %v2804 = vadd.f32 0.0, %v2803
    %v2805 = vpop.f32.mrf.mxu0
    %v2806 = vadd.f32 0.0, %v2805
    %v2807 = vpop.f32.mrf.mxu0
    %v2808 = vpop.f32.mrf.mxu0
    %2809 = vdwg.mxu0
    %2810 = vmatprep.subr.bf16.mxu0 %v2736
    %2811 = vmatpush1.bf16.msra.mxu0 %v2735
    %2812 = vmatprep.subr.bf16.mxu0 %v2732
    %2813 = vmatpush1.bf16.msra.mxu0 %v2731
    %2814 = vmatprep.subr.bf16.mxu0 %v2728
    %2815 = vmatpush1.bf16.msra.mxu0 %v2727
    %2816 = vmatprep.subr.bf16.mxu0 %v2724
    %2817 = vmatpush1.bf16.msra.mxu0 %v2723
    %2818 = vmatprep.subr.bf16.mxu0 %v2720
    %2819 = vmatpush1.bf16.msra.mxu0 %v2719
    %2820 = vmatprep.subr.bf16.mxu0 %v2716
    %2821 = vmatpush1.bf16.msra.mxu0 %v2715
    %2822 = vmatprep.subr.bf16.mxu0 %v2712
    %2823 = vmatpush1.bf16.msra.mxu0 %v2711
    %2824 = vmatprep.subr.bf16.mxu0 %v2708
    %2825 = vmatpush1.bf16.msra.mxu0 %v2707
    %2826 = vmatprep.subr.bf16.mxu0 0
    %2827 = vmatpush2.bf16.msra.mxu0 0
    %2828 = vmatprep.subr.bf16.mxu0 0
    %2829 = vmatpush2.bf16.msra.mxu0 0
    %2830 = vmatprep.subr.bf16.mxu0 0
    %2831 = vmatpush2.bf16.msra.mxu0 0
    %2832 = vmatprep.subr.bf16.mxu0 0
    %2833 = vmatpush2.bf16.msra.mxu0 0
    %2834 = vmatprep.subr.bf16.mxu0 0
    %2835 = vmatpush2.bf16.msra.mxu0 0
    %2836 = vmatprep.subr.bf16.mxu0 0
    %2837 = vmatpush2.bf16.msra.mxu0 0
    %2838 = vmatprep.subr.bf16.mxu0 0
    %2839 = vmatpush2.bf16.msra.mxu0 0
    %2840 = vmatprep.subr.bf16.mxu0 0
    %2841 = vmatpush2.bf16.msra.mxu0 0
    %2842 = vmatprep.mubr.bf16.mxu0 0
    %2843 = vmatmul.mubr.bf16.gmra.mxu0 0
    %v2844 = vpop.f32.mrf.mxu0
    %v2845 = vadd.f32 0.0, %v2844
    %v2846 = vpop.f32.mrf.mxu0
    %v2847 = vadd.f32 0.0, %v2846
    %v2848 = vpop.f32.mrf.mxu0
    %v2849 = vpop.f32.mrf.mxu0
    %2850 = vdwg.mxu0
    %v2851 = vadd.f32 %v2498, %v2804
    %v2852 = vadd.f32 %v2500, %v2806
    %v2853 = vadd.f32 %v2571, %v2845
    %v2854 = vadd.f32 %v2573, %v2847
    %v2855 = vxor.u32 %v2851, 2147483648
    %v2856 = vmul.f32 %v2855, 1.442695
    %v2857 = vpow.pop %v2856
    %v2858 = vadd.f32 %v2857, 1.0
    %v2859 = vrcp.pop %v2858
    %v2860 = vmul.f32 1.0, %v2859
    %v2861 = vxor.u32 %v2852, 2147483648
    %v2862 = vmul.f32 %v2861, 1.442695
    %v2863 = vpow.pop %v2862
    %v2864 = vadd.f32 %v2863, 1.0
    %v2865 = vrcp.pop %v2864
    %v2866 = vmul.f32 1.0, %v2865
    %v2867 = vtanh.pop %v2853
    %v2868 = vxor.u32 %v2854, 2147483648
    %v2869 = vmul.f32 %v2868, 1.442695
    %v2870 = vpow.pop %v2869
    %v2871 = vadd.f32 %v2870, 1.0
    %v2872 = vrcp.pop %v2871
    %v2873 = vmul.f32 1.0, %v2872
    %v2874 = vmul.f32 %v2866, 0.0
    %v2875 = vmul.f32 %v2860, %v2867
    %v2876 = vadd.f32 %v2874, %v2875
    %v2877 = vtanh.pop %v2876
    %v2878 = vmul.f32 %v2873, %v2877
    %v2879 = vpack.c.bf16 %v2878, %v2878
    %2880 = vmatprep.subr.bf16.mxu0 %v2734
    %2881 = vmatpush1.bf16.msra.mxu0 %v2733
    %2882 = vmatprep.subr.bf16.mxu0 %v2730
    %2883 = vmatpush1.bf16.msra.mxu0 %v2729
    %2884 = vmatprep.subr.bf16.mxu0 %v2726
    %2885 = vmatpush1.bf16.msra.mxu0 %v2725
    %2886 = vmatprep.subr.bf16.mxu0 %v2722
    %2887 = vmatpush1.bf16.msra.mxu0 %v2721
    %2888 = vmatprep.subr.bf16.mxu0 %v2718
    %2889 = vmatpush1.bf16.msra.mxu0 %v2717
    %2890 = vmatprep.subr.bf16.mxu0 %v2714
    %2891 = vmatpush1.bf16.msra.mxu0 %v2713
    %2892 = vmatprep.subr.bf16.mxu0 %v2710
    %2893 = vmatpush1.bf16.msra.mxu0 %v2709
    %2894 = vmatprep.subr.bf16.mxu0 %v2706
    %2895 = vmatpush1.bf16.msra.mxu0 %v2705
    %2896 = vmatprep.subr.bf16.mxu0 0
    %2897 = vmatpush2.bf16.msra.mxu0 0
    %2898 = vmatprep.subr.bf16.mxu0 0
    %2899 = vmatpush2.bf16.msra.mxu0 0
    %2900 = vmatprep.subr.bf16.mxu0 0
    %2901 = vmatpush2.bf16.msra.mxu0 0
    %2902 = vmatprep.subr.bf16.mxu0 0
    %2903 = vmatpush2.bf16.msra.mxu0 0
    %2904 = vmatprep.subr.bf16.mxu0 0
    %2905 = vmatpush2.bf16.msra.mxu0 0
    %2906 = vmatprep.subr.bf16.mxu0 0
    %2907 = vmatpush2.bf16.msra.mxu0 0
    %2908 = vmatprep.subr.bf16.mxu0 0
    %2909 = vmatpush2.bf16.msra.mxu0 0
    %2910 = vmatprep.subr.bf16.mxu0 0
    %2911 = vmatpush2.bf16.msra.mxu0 0
    %2912 = vmatprep.mubr.bf16.mxu0 0
    %2913 = vmatmul.mubr.bf16.gmra.mxu0 %v2879
    %v2914 = vpop.f32.mrf.mxu0
    %v2915 = vadd.f32 0.0, %v2914
    %v2916 = vpop.f32.mrf.mxu0
    %v2917 = vadd.f32 0.0, %v2916
    %v2918 = vpop.f32.mrf.mxu0
    %v2919 = vpop.f32.mrf.mxu0
    %2920 = vdwg.mxu0
    %2921 = vmatprep.subr.bf16.mxu0 %v2736
    %2922 = vmatpush1.bf16.msra.mxu0 %v2735
    %2923 = vmatprep.subr.bf16.mxu0 %v2732
    %2924 = vmatpush1.bf16.msra.mxu0 %v2731
    %2925 = vmatprep.subr.bf16.mxu0 %v2728
    %2926 = vmatpush1.bf16.msra.mxu0 %v2727
    %2927 = vmatprep.subr.bf16.mxu0 %v2724
    %2928 = vmatpush1.bf16.msra.mxu0 %v2723
    %2929 = vmatprep.subr.bf16.mxu0 %v2720
    %2930 = vmatpush1.bf16.msra.mxu0 %v2719
    %2931 = vmatprep.subr.bf16.mxu0 %v2716
    %2932 = vmatpush1.bf16.msra.mxu0 %v2715
    %2933 = vmatprep.subr.bf16.mxu0 %v2712
    %2934 = vmatpush1.bf16.msra.mxu0 %v2711
    %2935 = vmatprep.subr.bf16.mxu0 %v2708
    %2936 = vmatpush1.bf16.msra.mxu0 %v2707
    %2937 = vmatprep.subr.bf16.mxu0 0
    %2938 = vmatpush2.bf16.msra.mxu0 0
    %2939 = vmatprep.subr.bf16.mxu0 0
    %2940 = vmatpush2.bf16.msra.mxu0 0
    %2941 = vmatprep.subr.bf16.mxu0 0
    %2942 = vmatpush2.bf16.msra.mxu0 0
    %2943 = vmatprep.subr.bf16.mxu0 0
    %2944 = vmatpush2.bf16.msra.mxu0 0
    %2945 = vmatprep.subr.bf16.mxu0 0
    %2946 = vmatpush2.bf16.msra.mxu0 0
    %2947 = vmatprep.subr.bf16.mxu0 0
    %2948 = vmatpush2.bf16.msra.mxu0 0
    %2949 = vmatprep.subr.bf16.mxu0 0
    %2950 = vmatpush2.bf16.msra.mxu0 0
    %2951 = vmatprep.subr.bf16.mxu0 0
    %2952 = vmatpush2.bf16.msra.mxu0 0
    %2953 = vmatprep.mubr.bf16.mxu0 0
    %2954 = vmatmul.mubr.bf16.gmra.mxu0 %v2879
    %v2955 = vpop.f32.mrf.mxu0
    %v2956 = vadd.f32 0.0, %v2955
    %v2957 = vpop.f32.mrf.mxu0
    %v2958 = vadd.f32 0.0, %v2957
    %v2959 = vpop.f32.mrf.mxu0
    %v2960 = vpop.f32.mrf.mxu0
    %2961 = vdwg.mxu0
    %v2962 = vadd.f32 %v2502, %v2915
    %v2963 = vadd.f32 %v2504, %v2917
    %v2964 = vadd.f32 %v2575, %v2956
    %v2965 = vadd.f32 %v2577, %v2958
    %v2966 = vxor.u32 %v2962, 2147483648
    %v2967 = vmul.f32 %v2966, 1.442695
    %v2968 = vpow.pop %v2967
    %v2969 = vadd.f32 %v2968, 1.0
    %v2970 = vrcp.pop %v2969
    %v2971 = vmul.f32 1.0, %v2970
    %v2972 = vxor.u32 %v2963, 2147483648
    %v2973 = vmul.f32 %v2972, 1.442695
    %v2974 = vpow.pop %v2973
    %v2975 = vadd.f32 %v2974, 1.0
    %v2976 = vrcp.pop %v2975
    %v2977 = vmul.f32 1.0, %v2976
    %v2978 = vtanh.pop %v2964
    %v2979 = vxor.u32 %v2965, 2147483648
    %v2980 = vmul.f32 %v2979, 1.442695
    %v2981 = vpow.pop %v2980
    %v2982 = vadd.f32 %v2981, 1.0
    %v2983 = vrcp.pop %v2982
    %v2984 = vmul.f32 1.0, %v2983
    %v2985 = vmul.f32 %v2977, %v2876
    %v2986 = vmul.f32 %v2971, %v2978
    %v2987 = vadd.f32 %v2985, %v2986
    %v2988 = vtanh.pop %v2987
    %v2989 = vmul.f32 %v2984, %v2988
    %v2990 = vpack.c.bf16 %v2989, %v2989
    %2991 = vmatprep.subr.bf16.mxu0 %v2734
    %2992 = vmatpush1.bf16.msra.mxu0 %v2733
    %2993 = vmatprep.subr.bf16.mxu0 %v2730
    %2994 = vmatpush1.bf16.msra.mxu0 %v2729
    %2995 = vmatprep.subr.bf16.mxu0 %v2726
    %2996 = vmatpush1.bf16.msra.mxu0 %v2725
    %2997 = vmatprep.subr.bf16.mxu0 %v2722
    %2998 = vmatpush1.bf16.msra.mxu0 %v2721
    %2999 = vmatprep.subr.bf16.mxu0 %v2718
    %3000 = vmatpush1.bf16.msra.mxu0 %v2717
    %3001 = vmatprep.subr.bf16.mxu0 %v2714
    %3002 = vmatpush1.bf16.msra.mxu0 %v2713
    %3003 = vmatprep.subr.bf16.mxu0 %v2710
    %3004 = vmatpush1.bf16.msra.mxu0 %v2709
    %3005 = vmatprep.subr.bf16.mxu0 %v2706
    %3006 = vmatpush1.bf16.msra.mxu0 %v2705
    %3007 = vmatprep.subr.bf16.mxu0 0
    %3008 = vmatpush2.bf16.msra.mxu0 0
    %3009 = vmatprep.subr.bf16.mxu0 0
    %3010 = vmatpush2.bf16.msra.mxu0 0
    %3011 = vmatprep.subr.bf16.mxu0 0
    %3012 = vmatpush2.bf16.msra.mxu0 0
    %3013 = vmatprep.subr.bf16.mxu0 0
    %3014 = vmatpush2.bf16.msra.mxu0 0
    %3015 = vmatprep.subr.bf16.mxu0 0
    %3016 = vmatpush2.bf16.msra.mxu0 0
    %3017 = vmatprep.subr.bf16.mxu0 0
    %3018 = vmatpush2.bf16.msra.mxu0 0
    %3019 = vmatprep.subr.bf16.mxu0 0
    %3020 = vmatpush2.bf16.msra.mxu0 0
    %3021 = vmatprep.subr.bf16.mxu0 0
    %3022 = vmatpush2.bf16.msra.mxu0 0
    %3023 = vmatprep.mubr.bf16.mxu0 0
    %3024 = vmatmul.mubr.bf16.gmra.mxu0 %v2990
    %v3025 = vpop.f32.mrf.mxu0
    %v3026 = vadd.f32 0.0, %v3025
    %v3027 = vpop.f32.mrf.mxu0
    %v3028 = vadd.f32 0.0, %v3027
    %v3029 = vpop.f32.mrf.mxu0
    %v3030 = vpop.f32.mrf.mxu0
    %3031 = vdwg.mxu0
    %3032 = vmatprep.subr.bf16.mxu0 %v2736
    %3033 = vmatpush1.bf16.msra.mxu0 %v2735
    %3034 = vmatprep.subr.bf16.mxu0 %v2732
    %3035 = vmatpush1.bf16.msra.mxu0 %v2731
    %3036 = vmatprep.subr.bf16.mxu0 %v2728
    %3037 = vmatpush1.bf16.msra.mxu0 %v2727
    %3038 = vmatprep.subr.bf16.mxu0 %v2724
    %3039 = vmatpush1.bf16.msra.mxu0 %v2723
    %3040 = vmatprep.subr.bf16.mxu0 %v2720
    %3041 = vmatpush1.bf16.msra.mxu0 %v2719
    %3042 = vmatprep.subr.bf16.mxu0 %v2716
    %3043 = vmatpush1.bf16.msra.mxu0 %v2715
    %3044 = vmatprep.subr.bf16.mxu0 %v2712
    %3045 = vmatpush1.bf16.msra.mxu0 %v2711
    %3046 = vmatprep.subr.bf16.mxu0 %v2708
    %3047 = vmatpush1.bf16.msra.mxu0 %v2707
    %3048 = vmatprep.subr.bf16.mxu0 0
    %3049 = vmatpush2.bf16.msra.mxu0 0
    %3050 = vmatprep.subr.bf16.mxu0 0
    %3051 = vmatpush2.bf16.msra.mxu0 0
    %3052 = vmatprep.subr.bf16.mxu0 0
    %3053 = vmatpush2.bf16.msra.mxu0 0
    %3054 = vmatprep.subr.bf16.mxu0 0
    %3055 = vmatpush2.bf16.msra.mxu0 0
    %3056 = vmatprep.subr.bf16.mxu0 0
    %3057 = vmatpush2.bf16.msra.mxu0 0
    %3058 = vmatprep.subr.bf16.mxu0 0
    %3059 = vmatpush2.bf16.msra.mxu0 0
    %3060 = vmatprep.subr.bf16.mxu0 0
    %3061 = vmatpush2.bf16.msra.mxu0 0
    %3062 = vmatprep.subr.bf16.mxu0 0
    %3063 = vmatpush2.bf16.msra.mxu0 0
    %3064 = vmatprep.mubr.bf16.mxu0 0
    %3065 = vmatmul.mubr.bf16.gmra.mxu0 %v2990
    %v3066 = vpop.f32.mrf.mxu0
    %v3067 = vadd.f32 0.0, %v3066
    %v3068 = vpop.f32.mrf.mxu0
    %v3069 = vadd.f32 0.0, %v3068
    %v3070 = vpop.f32.mrf.mxu0
    %v3071 = vpop.f32.mrf.mxu0
    %3072 = vdwg.mxu0
    %v3073 = vadd.f32 %v2508, %v3026
    %v3074 = vadd.f32 %v2510, %v3028
    %v3075 = vadd.f32 %v2581, %v3067
    %v3076 = vadd.f32 %v2583, %v3069
    %v3077 = vxor.u32 %v3073, 2147483648
    %v3078 = vmul.f32 %v3077, 1.442695
    %v3079 = vpow.pop %v3078
    %v3080 = vadd.f32 %v3079, 1.0
    %v3081 = vrcp.pop %v3080
    %v3082 = vmul.f32 1.0, %v3081
    %v3083 = vxor.u32 %v3074, 2147483648
    %v3084 = vmul.f32 %v3083, 1.442695
    %v3085 = vpow.pop %v3084
    %v3086 = vadd.f32 %v3085, 1.0
    %v3087 = vrcp.pop %v3086
    %v3088 = vmul.f32 1.0, %v3087
    %v3089 = vtanh.pop %v3075
    %v3090 = vxor.u32 %v3076, 2147483648
    %v3091 = vmul.f32 %v3090, 1.442695
    %v3092 = vpow.pop %v3091
    %v3093 = vadd.f32 %v3092, 1.0
    %v3094 = vrcp.pop %v3093
    %v3095 = vmul.f32 1.0, %v3094
    %v3096 = vmul.f32 %v3088, %v2987
    %v3097 = vmul.f32 %v3082, %v3089
    %v3098 = vadd.f32 %v3096, %v3097
    %v3099 = vtanh.pop %v3098
    %v3100 = vmul.f32 %v3095, %v3099
    %v3101 = vpack.c.bf16 %v3100, %v3100
    %3102 = vmatprep.subr.bf16.mxu0 %v2734
    %3103 = vmatpush1.bf16.msra.mxu0 %v2733
    %3104 = vmatprep.subr.bf16.mxu0 %v2730
    %3105 = vmatpush1.bf16.msra.mxu0 %v2729
    %3106 = vmatprep.subr.bf16.mxu0 %v2726
    %3107 = vmatpush1.bf16.msra.mxu0 %v2725
    %3108 = vmatprep.subr.bf16.mxu0 %v2722
    %3109 = vmatpush1.bf16.msra.mxu0 %v2721
    %3110 = vmatprep.subr.bf16.mxu0 %v2718
    %3111 = vmatpush1.bf16.msra.mxu0 %v2717
    %3112 = vmatprep.subr.bf16.mxu0 %v2714
    %3113 = vmatpush1.bf16.msra.mxu0 %v2713
    %3114 = vmatprep.subr.bf16.mxu0 %v2710
    %3115 = vmatpush1.bf16.msra.mxu0 %v2709
    %3116 = vmatprep.subr.bf16.mxu0 %v2706
    %3117 = vmatpush1.bf16.msra.mxu0 %v2705
    %3118 = vmatprep.subr.bf16.mxu0 0
    %3119 = vmatpush2.bf16.msra.mxu0 0
    %3120 = vmatprep.subr.bf16.mxu0 0
    %3121 = vmatpush2.bf16.msra.mxu0 0
    %3122 = vmatprep.subr.bf16.mxu0 0
    %3123 = vmatpush2.bf16.msra.mxu0 0
    %3124 = vmatprep.subr.bf16.mxu0 0
    %3125 = vmatpush2.bf16.msra.mxu0 0
    %3126 = vmatprep.subr.bf16.mxu0 0
    %3127 = vmatpush2.bf16.msra.mxu0 0
    %3128 = vmatprep.subr.bf16.mxu0 0
    %3129 = vmatpush2.bf16.msra.mxu0 0
    %3130 = vmatprep.subr.bf16.mxu0 0
    %3131 = vmatpush2.bf16.msra.mxu0 0
    %3132 = vmatprep.subr.bf16.mxu0 0
    %3133 = vmatpush2.bf16.msra.mxu0 0
    %3134 = vmatprep.mubr.bf16.mxu0 0
    %3135 = vmatmul.mubr.bf16.gmra.mxu0 %v3101
    %v3136 = vpop.f32.mrf.mxu0
    %v3137 = vadd.f32 0.0, %v3136
    %v3138 = vpop.f32.mrf.mxu0
    %v3139 = vadd.f32 0.0, %v3138
    %v3140 = vpop.f32.mrf.mxu0
    %v3141 = vpop.f32.mrf.mxu0
    %3142 = vdwg.mxu0
    %3143 = vmatprep.subr.bf16.mxu0 %v2736
    %3144 = vmatpush1.bf16.msra.mxu0 %v2735
    %3145 = vmatprep.subr.bf16.mxu0 %v2732
    %3146 = vmatpush1.bf16.msra.mxu0 %v2731
    %3147 = vmatprep.subr.bf16.mxu0 %v2728
    %3148 = vmatpush1.bf16.msra.mxu0 %v2727
    %3149 = vmatprep.subr.bf16.mxu0 %v2724
    %3150 = vmatpush1.bf16.msra.mxu0 %v2723
    %3151 = vmatprep.subr.bf16.mxu0 %v2720
    %3152 = vmatpush1.bf16.msra.mxu0 %v2719
    %3153 = vmatprep.subr.bf16.mxu0 %v2716
    %3154 = vmatpush1.bf16.msra.mxu0 %v2715
    %3155 = vmatprep.subr.bf16.mxu0 %v2712
    %3156 = vmatpush1.bf16.msra.mxu0 %v2711
    %3157 = vmatprep.subr.bf16.mxu0 %v2708
    %3158 = vmatpush1.bf16.msra.mxu0 %v2707
    %3159 = vmatprep.subr.bf16.mxu0 0
    %3160 = vmatpush2.bf16.msra.mxu0 0
    %3161 = vmatprep.subr.bf16.mxu0 0
    %3162 = vmatpush2.bf16.msra.mxu0 0
    %3163 = vmatprep.subr.bf16.mxu0 0
    %3164 = vmatpush2.bf16.msra.mxu0 0
    %3165 = vmatprep.subr.bf16.mxu0 0
    %3166 = vmatpush2.bf16.msra.mxu0 0
    %3167 = vmatprep.subr.bf16.mxu0 0
    %3168 = vmatpush2.bf16.msra.mxu0 0
    %3169 = vmatprep.subr.bf16.mxu0 0
    %3170 = vmatpush2.bf16.msra.mxu0 0
    %3171 = vmatprep.subr.bf16.mxu0 0
    %3172 = vmatpush2.bf16.msra.mxu0 0
    %3173 = vmatprep.subr.bf16.mxu0 0
    %3174 = vmatpush2.bf16.msra.mxu0 0
    %3175 = vmatprep.mubr.bf16.mxu0 0
    %3176 = vmatmul.mubr.bf16.gmra.mxu0 %v3101
    %v3177 = vpop.f32.mrf.mxu0
    %v3178 = vadd.f32 0.0, %v3177
    %v3179 = vpop.f32.mrf.mxu0
    %v3180 = vadd.f32 0.0, %v3179
    %v3181 = vpop.f32.mrf.mxu0
    %v3182 = vpop.f32.mrf.mxu0
    %3183 = vdwg.mxu0
    %v3184 = vadd.f32 %v2512, %v3137
    %v3185 = vadd.f32 %v2514, %v3139
    %v3186 = vadd.f32 %v2585, %v3178
    %v3187 = vadd.f32 %v2587, %v3180
    %v3188 = vxor.u32 %v3184, 2147483648
    %v3189 = vmul.f32 %v3188, 1.442695
    %v3190 = vpow.pop %v3189
    %v3191 = vadd.f32 %v3190, 1.0
    %v3192 = vrcp.pop %v3191
    %v3193 = vmul.f32 1.0, %v3192
    %v3194 = vxor.u32 %v3185, 2147483648
    %v3195 = vmul.f32 %v3194, 1.442695
    %v3196 = vpow.pop %v3195
    %v3197 = vadd.f32 %v3196, 1.0
    %v3198 = vrcp.pop %v3197
    %v3199 = vmul.f32 1.0, %v3198
    %v3200 = vtanh.pop %v3186
    %v3201 = vxor.u32 %v3187, 2147483648
    %v3202 = vmul.f32 %v3201, 1.442695
    %v3203 = vpow.pop %v3202
    %v3204 = vadd.f32 %v3203, 1.0
    %v3205 = vrcp.pop %v3204
    %v3206 = vmul.f32 1.0, %v3205
    %v3207 = vmul.f32 %v3199, %v3098
    %v3208 = vmul.f32 %v3193, %v3200
    %v3209 = vadd.f32 %v3207, %v3208
    %v3210 = vtanh.pop %v3209
    %v3211 = vmul.f32 %v3206, %v3210
    %v3212 = vpack.c.bf16 %v3211, %v3211
    %3213 = vmatprep.subr.bf16.mxu0 %v2734
    %3214 = vmatpush1.bf16.msra.mxu0 %v2733
    %3215 = vmatprep.subr.bf16.mxu0 %v2730
    %3216 = vmatpush1.bf16.msra.mxu0 %v2729
    %3217 = vmatprep.subr.bf16.mxu0 %v2726
    %3218 = vmatpush1.bf16.msra.mxu0 %v2725
    %3219 = vmatprep.subr.bf16.mxu0 %v2722
    %3220 = vmatpush1.bf16.msra.mxu0 %v2721
    %3221 = vmatprep.subr.bf16.mxu0 %v2718
    %3222 = vmatpush1.bf16.msra.mxu0 %v2717
    %3223 = vmatprep.subr.bf16.mxu0 %v2714
    %3224 = vmatpush1.bf16.msra.mxu0 %v2713
    %3225 = vmatprep.subr.bf16.mxu0 %v2710
    %3226 = vmatpush1.bf16.msra.mxu0 %v2709
    %3227 = vmatprep.subr.bf16.mxu0 %v2706
    %3228 = vmatpush1.bf16.msra.mxu0 %v2705
    %3229 = vmatprep.subr.bf16.mxu0 0
    %3230 = vmatpush2.bf16.msra.mxu0 0
    %3231 = vmatprep.subr.bf16.mxu0 0
    %3232 = vmatpush2.bf16.msra.mxu0 0
    %3233 = vmatprep.subr.bf16.mxu0 0
    %3234 = vmatpush2.bf16.msra.mxu0 0
    %3235 = vmatprep.subr.bf16.mxu0 0
    %3236 = vmatpush2.bf16.msra.mxu0 0
    %3237 = vmatprep.subr.bf16.mxu0 0
    %3238 = vmatpush2.bf16.msra.mxu0 0
    %3239 = vmatprep.subr.bf16.mxu0 0
    %3240 = vmatpush2.bf16.msra.mxu0 0
    %3241 = vmatprep.subr.bf16.mxu0 0
    %3242 = vmatpush2.bf16.msra.mxu0 0
    %3243 = vmatprep.subr.bf16.mxu0 0
    %3244 = vmatpush2.bf16.msra.mxu0 0
    %3245 = vmatprep.mubr.bf16.mxu0 0
    %3246 = vmatmul.mubr.bf16.gmra.mxu0 %v3212
    %v3247 = vpop.f32.mrf.mxu0
    %v3248 = vadd.f32 0.0, %v3247
    %v3249 = vpop.f32.mrf.mxu0
    %v3250 = vadd.f32 0.0, %v3249
    %v3251 = vpop.f32.mrf.mxu0
    %v3252 = vpop.f32.mrf.mxu0
    %3253 = vdwg.mxu0
    %3254 = vmatprep.subr.bf16.mxu0 %v2736
    %3255 = vmatpush1.bf16.msra.mxu0 %v2735
    %3256 = vmatprep.subr.bf16.mxu0 %v2732
    %3257 = vmatpush1.bf16.msra.mxu0 %v2731
    %3258 = vmatprep.subr.bf16.mxu0 %v2728
    %3259 = vmatpush1.bf16.msra.mxu0 %v2727
    %3260 = vmatprep.subr.bf16.mxu0 %v2724
    %3261 = vmatpush1.bf16.msra.mxu0 %v2723
    %3262 = vmatprep.subr.bf16.mxu0 %v2720
    %3263 = vmatpush1.bf16.msra.mxu0 %v2719
    %3264 = vmatprep.subr.bf16.mxu0 %v2716
    %3265 = vmatpush1.bf16.msra.mxu0 %v2715
    %3266 = vmatprep.subr.bf16.mxu0 %v2712
    %3267 = vmatpush1.bf16.msra.mxu0 %v2711
    %3268 = vmatprep.subr.bf16.mxu0 %v2708
    %3269 = vmatpush1.bf16.msra.mxu0 %v2707
    %3270 = vmatprep.subr.bf16.mxu0 0
    %3271 = vmatpush2.bf16.msra.mxu0 0
    %3272 = vmatprep.subr.bf16.mxu0 0
    %3273 = vmatpush2.bf16.msra.mxu0 0
    %3274 = vmatprep.subr.bf16.mxu0 0
    %3275 = vmatpush2.bf16.msra.mxu0 0
    %3276 = vmatprep.subr.bf16.mxu0 0
    %3277 = vmatpush2.bf16.msra.mxu0 0
    %3278 = vmatprep.subr.bf16.mxu0 0
    %3279 = vmatpush2.bf16.msra.mxu0 0
    %3280 = vmatprep.subr.bf16.mxu0 0
    %3281 = vmatpush2.bf16.msra.mxu0 0
    %3282 = vmatprep.subr.bf16.mxu0 0
    %3283 = vmatpush2.bf16.msra.mxu0 0
    %3284 = vmatprep.subr.bf16.mxu0 0
    %3285 = vmatpush2.bf16.msra.mxu0 0
    %3286 = vmatprep.mubr.bf16.mxu0 0
    %3287 = vmatmul.mubr.bf16.gmra.mxu0 %v3212
    %v3288 = vpop.f32.mrf.mxu0
    %v3289 = vadd.f32 0.0, %v3288
    %v3290 = vpop.f32.mrf.mxu0
    %v3291 = vadd.f32 0.0, %v3290
    %v3292 = vpop.f32.mrf.mxu0
    %v3293 = vpop.f32.mrf.mxu0
    %3294 = vdwg.mxu0
    %v3295 = vadd.f32 %v2518, %v3248
    %v3296 = vadd.f32 %v2520, %v3250
    %v3297 = vadd.f32 %v2591, %v3289
    %v3298 = vadd.f32 %v2593, %v3291
    %v3299 = vxor.u32 %v3295, 2147483648
    %v3300 = vmul.f32 %v3299, 1.442695
    %v3301 = vpow.pop %v3300
    %v3302 = vadd.f32 %v3301, 1.0
    %v3303 = vrcp.pop %v3302
    %v3304 = vmul.f32 1.0, %v3303
    %v3305 = vxor.u32 %v3296, 2147483648
    %v3306 = vmul.f32 %v3305, 1.442695
    %v3307 = vpow.pop %v3306
    %v3308 = vadd.f32 %v3307, 1.0
    %v3309 = vrcp.pop %v3308
    %v3310 = vmul.f32 1.0, %v3309
    %v3311 = vtanh.pop %v3297
    %v3312 = vxor.u32 %v3298, 2147483648
    %v3313 = vmul.f32 %v3312, 1.442695
    %v3314 = vpow.pop %v3313
    %v3315 = vadd.f32 %v3314, 1.0
    %v3316 = vrcp.pop %v3315
    %v3317 = vmul.f32 1.0, %v3316
    %v3318 = vmul.f32 %v3310, %v3209
    %v3319 = vmul.f32 %v3304, %v3311
    %v3320 = vadd.f32 %v3318, %v3319
    %v3321 = vtanh.pop %v3320
    %v3322 = vmul.f32 %v3317, %v3321
    %v3323 = vpack.c.bf16 %v3322, %v3322
    %3324 = vmatprep.subr.bf16.mxu0 %v2734
    %3325 = vmatpush1.bf16.msra.mxu0 %v2733
    %3326 = vmatprep.subr.bf16.mxu0 %v2730
    %3327 = vmatpush1.bf16.msra.mxu0 %v2729
    %3328 = vmatprep.subr.bf16.mxu0 %v2726
    %3329 = vmatpush1.bf16.msra.mxu0 %v2725
    %3330 = vmatprep.subr.bf16.mxu0 %v2722
    %3331 = vmatpush1.bf16.msra.mxu0 %v2721
    %3332 = vmatprep.subr.bf16.mxu0 %v2718
    %3333 = vmatpush1.bf16.msra.mxu0 %v2717
    %3334 = vmatprep.subr.bf16.mxu0 %v2714
    %3335 = vmatpush1.bf16.msra.mxu0 %v2713
    %3336 = vmatprep.subr.bf16.mxu0 %v2710
    %3337 = vmatpush1.bf16.msra.mxu0 %v2709
    %3338 = vmatprep.subr.bf16.mxu0 %v2706
    %3339 = vmatpush1.bf16.msra.mxu0 %v2705
    %3340 = vmatprep.subr.bf16.mxu0 0
    %3341 = vmatpush2.bf16.msra.mxu0 0
    %3342 = vmatprep.subr.bf16.mxu0 0
    %3343 = vmatpush2.bf16.msra.mxu0 0
    %3344 = vmatprep.subr.bf16.mxu0 0
    %3345 = vmatpush2.bf16.msra.mxu0 0
    %3346 = vmatprep.subr.bf16.mxu0 0
    %3347 = vmatpush2.bf16.msra.mxu0 0
    %3348 = vmatprep.subr.bf16.mxu0 0
    %3349 = vmatpush2.bf16.msra.mxu0 0
    %3350 = vmatprep.subr.bf16.mxu0 0
    %3351 = vmatpush2.bf16.msra.mxu0 0
    %3352 = vmatprep.subr.bf16.mxu0 0
    %3353 = vmatpush2.bf16.msra.mxu0 0
    %3354 = vmatprep.subr.bf16.mxu0 0
    %3355 = vmatpush2.bf16.msra.mxu0 0
    %3356 = vmatprep.mubr.bf16.mxu0 0
    %3357 = vmatmul.mubr.bf16.gmra.mxu0 %v3323
    %v3358 = vpop.f32.mrf.mxu0
    %v3359 = vadd.f32 0.0, %v3358
    %v3360 = vpop.f32.mrf.mxu0
    %v3361 = vadd.f32 0.0, %v3360
    %v3362 = vpop.f32.mrf.mxu0
    %v3363 = vpop.f32.mrf.mxu0
    %3364 = vdwg.mxu0
    %3365 = vmatprep.subr.bf16.mxu0 %v2736
    %3366 = vmatpush1.bf16.msra.mxu0 %v2735
    %3367 = vmatprep.subr.bf16.mxu0 %v2732
    %3368 = vmatpush1.bf16.msra.mxu0 %v2731
    %3369 = vmatprep.subr.bf16.mxu0 %v2728
    %3370 = vmatpush1.bf16.msra.mxu0 %v2727
    %3371 = vmatprep.subr.bf16.mxu0 %v2724
    %3372 = vmatpush1.bf16.msra.mxu0 %v2723
    %3373 = vmatprep.subr.bf16.mxu0 %v2720
    %3374 = vmatpush1.bf16.msra.mxu0 %v2719
    %3375 = vmatprep.subr.bf16.mxu0 %v2716
    %3376 = vmatpush1.bf16.msra.mxu0 %v2715
    %3377 = vmatprep.subr.bf16.mxu0 %v2712
    %3378 = vmatpush1.bf16.msra.mxu0 %v2711
    %3379 = vmatprep.subr.bf16.mxu0 %v2708
    %3380 = vmatpush1.bf16.msra.mxu0 %v2707
    %3381 = vmatprep.subr.bf16.mxu0 0
    %3382 = vmatpush2.bf16.msra.mxu0 0
    %3383 = vmatprep.subr.bf16.mxu0 0
    %3384 = vmatpush2.bf16.msra.mxu0 0
    %3385 = vmatprep.subr.bf16.mxu0 0
    %3386 = vmatpush2.bf16.msra.mxu0 0
    %3387 = vmatprep.subr.bf16.mxu0 0
    %3388 = vmatpush2.bf16.msra.mxu0 0
    %3389 = vmatprep.subr.bf16.mxu0 0
    %3390 = vmatpush2.bf16.msra.mxu0 0
    %3391 = vmatprep.subr.bf16.mxu0 0
    %3392 = vmatpush2.bf16.msra.mxu0 0
    %3393 = vmatprep.subr.bf16.mxu0 0
    %3394 = vmatpush2.bf16.msra.mxu0 0
    %3395 = vmatprep.subr.bf16.mxu0 0
    %3396 = vmatpush2.bf16.msra.mxu0 0
    %3397 = vmatprep.mubr.bf16.mxu0 0
    %3398 = vmatmul.mubr.bf16.gmra.mxu0 %v3323
    %v3399 = vpop.f32.mrf.mxu0
    %v3400 = vadd.f32 0.0, %v3399
    %v3401 = vpop.f32.mrf.mxu0
    %v3402 = vadd.f32 0.0, %v3401
    %v3403 = vpop.f32.mrf.mxu0
    %v3404 = vpop.f32.mrf.mxu0
    %3405 = vdwg.mxu0
    %v3406 = vadd.f32 %v2522, %v3359
    %v3407 = vadd.f32 %v2524, %v3361
    %v3408 = vadd.f32 %v2595, %v3400
    %v3409 = vadd.f32 %v2597, %v3402
    %v3410 = vxor.u32 %v3406, 2147483648
    %v3411 = vmul.f32 %v3410, 1.442695
    %v3412 = vpow.pop %v3411
    %v3413 = vadd.f32 %v3412, 1.0
    %v3414 = vrcp.pop %v3413
    %v3415 = vmul.f32 1.0, %v3414
    %v3416 = vxor.u32 %v3407, 2147483648
    %v3417 = vmul.f32 %v3416, 1.442695
    %v3418 = vpow.pop %v3417
    %v3419 = vadd.f32 %v3418, 1.0
    %v3420 = vrcp.pop %v3419
    %v3421 = vmul.f32 1.0, %v3420
    %v3422 = vtanh.pop %v3408
    %v3423 = vxor.u32 %v3409, 2147483648
    %v3424 = vmul.f32 %v3423, 1.442695
    %v3425 = vpow.pop %v3424
    %v3426 = vadd.f32 %v3425, 1.0
    %v3427 = vrcp.pop %v3426
    %v3428 = vmul.f32 1.0, %v3427
    %v3429 = vmul.f32 %v3421, %v3320
    %v3430 = vmul.f32 %v3415, %v3422
    %v3431 = vadd.f32 %v3429, %v3430
    %v3432 = vtanh.pop %v3431
    %v3433 = vmul.f32 %v3428, %v3432
    %v3434 = vpack.c.bf16 %v3433, %v3433
    %3435 = vmatprep.subr.bf16.mxu0 %v2734
    %3436 = vmatpush1.bf16.msra.mxu0 %v2733
    %3437 = vmatprep.subr.bf16.mxu0 %v2730
    %3438 = vmatpush1.bf16.msra.mxu0 %v2729
    %3439 = vmatprep.subr.bf16.mxu0 %v2726
    %3440 = vmatpush1.bf16.msra.mxu0 %v2725
    %3441 = vmatprep.subr.bf16.mxu0 %v2722
    %3442 = vmatpush1.bf16.msra.mxu0 %v2721
    %3443 = vmatprep.subr.bf16.mxu0 %v2718
    %3444 = vmatpush1.bf16.msra.mxu0 %v2717
    %3445 = vmatprep.subr.bf16.mxu0 %v2714
    %3446 = vmatpush1.bf16.msra.mxu0 %v2713
    %3447 = vmatprep.subr.bf16.mxu0 %v2710
    %3448 = vmatpush1.bf16.msra.mxu0 %v2709
    %3449 = vmatprep.subr.bf16.mxu0 %v2706
    %3450 = vmatpush1.bf16.msra.mxu0 %v2705
    %3451 = vmatprep.subr.bf16.mxu0 0
    %3452 = vmatpush2.bf16.msra.mxu0 0
    %3453 = vmatprep.subr.bf16.mxu0 0
    %3454 = vmatpush2.bf16.msra.mxu0 0
    %3455 = vmatprep.subr.bf16.mxu0 0
    %3456 = vmatpush2.bf16.msra.mxu0 0
    %3457 = vmatprep.subr.bf16.mxu0 0
    %3458 = vmatpush2.bf16.msra.mxu0 0
    %3459 = vmatprep.subr.bf16.mxu0 0
    %3460 = vmatpush2.bf16.msra.mxu0 0
    %3461 = vmatprep.subr.bf16.mxu0 0
    %3462 = vmatpush2.bf16.msra.mxu0 0
    %3463 = vmatprep.subr.bf16.mxu0 0
    %3464 = vmatpush2.bf16.msra.mxu0 0
    %3465 = vmatprep.subr.bf16.mxu0 0
    %3466 = vmatpush2.bf16.msra.mxu0 0
    %3467 = vmatprep.mubr.bf16.mxu0 0
    %3468 = vmatmul.mubr.bf16.gmra.mxu0 %v3434
    %v3469 = vpop.f32.mrf.mxu0
    %v3470 = vadd.f32 0.0, %v3469
    %v3471 = vpop.f32.mrf.mxu0
    %v3472 = vadd.f32 0.0, %v3471
    %v3473 = vpop.f32.mrf.mxu0
    %v3474 = vpop.f32.mrf.mxu0
    %3475 = vdwg.mxu0
    %3476 = vmatprep.subr.bf16.mxu0 %v2736
    %3477 = vmatpush1.bf16.msra.mxu0 %v2735
    %3478 = vmatprep.subr.bf16.mxu0 %v2732
    %3479 = vmatpush1.bf16.msra.mxu0 %v2731
    %3480 = vmatprep.subr.bf16.mxu0 %v2728
    %3481 = vmatpush1.bf16.msra.mxu0 %v2727
    %3482 = vmatprep.subr.bf16.mxu0 %v2724
    %3483 = vmatpush1.bf16.msra.mxu0 %v2723
    %3484 = vmatprep.subr.bf16.mxu0 %v2720
    %3485 = vmatpush1.bf16.msra.mxu0 %v2719
    %3486 = vmatprep.subr.bf16.mxu0 %v2716
    %3487 = vmatpush1.bf16.msra.mxu0 %v2715
    %3488 = vmatprep.subr.bf16.mxu0 %v2712
    %3489 = vmatpush1.bf16.msra.mxu0 %v2711
    %3490 = vmatprep.subr.bf16.mxu0 %v2708
    %3491 = vmatpush1.bf16.msra.mxu0 %v2707
    %3492 = vmatprep.subr.bf16.mxu0 0
    %3493 = vmatpush2.bf16.msra.mxu0 0
    %3494 = vmatprep.subr.bf16.mxu0 0
    %3495 = vmatpush2.bf16.msra.mxu0 0
    %3496 = vmatprep.subr.bf16.mxu0 0
    %3497 = vmatpush2.bf16.msra.mxu0 0
    %3498 = vmatprep.subr.bf16.mxu0 0
    %3499 = vmatpush2.bf16.msra.mxu0 0
    %3500 = vmatprep.subr.bf16.mxu0 0
    %3501 = vmatpush2.bf16.msra.mxu0 0
    %3502 = vmatprep.subr.bf16.mxu0 0
    %3503 = vmatpush2.bf16.msra.mxu0 0
    %3504 = vmatprep.subr.bf16.mxu0 0
    %3505 = vmatpush2.bf16.msra.mxu0 0
    %3506 = vmatprep.subr.bf16.mxu0 0
    %3507 = vmatpush2.bf16.msra.mxu0 0
    %3508 = vmatprep.mubr.bf16.mxu0 0
    %3509 = vmatmul.mubr.bf16.gmra.mxu0 %v3434
    %v3510 = vpop.f32.mrf.mxu0
    %v3511 = vadd.f32 0.0, %v3510
    %v3512 = vpop.f32.mrf.mxu0
    %v3513 = vadd.f32 0.0, %v3512
    %v3514 = vpop.f32.mrf.mxu0
    %v3515 = vpop.f32.mrf.mxu0
    %3516 = vdwg.mxu0
    %v3517 = vadd.f32 %v2528, %v3470
    %v3518 = vadd.f32 %v2530, %v3472
    %v3519 = vadd.f32 %v2601, %v3511
    %v3520 = vadd.f32 %v2603, %v3513
    %v3521 = vxor.u32 %v3517, 2147483648
    %v3522 = vmul.f32 %v3521, 1.442695
    %v3523 = vpow.pop %v3522
    %v3524 = vadd.f32 %v3523, 1.0
    %v3525 = vrcp.pop %v3524
    %v3526 = vmul.f32 1.0, %v3525
    %v3527 = vxor.u32 %v3518, 2147483648
    %v3528 = vmul.f32 %v3527, 1.442695
    %v3529 = vpow.pop %v3528
    %v3530 = vadd.f32 %v3529, 1.0
    %v3531 = vrcp.pop %v3530
    %v3532 = vmul.f32 1.0, %v3531
    %v3533 = vtanh.pop %v3519
    %v3534 = vxor.u32 %v3520, 2147483648
    %v3535 = vmul.f32 %v3534, 1.442695
    %v3536 = vpow.pop %v3535
    %v3537 = vadd.f32 %v3536, 1.0
    %v3538 = vrcp.pop %v3537
    %v3539 = vmul.f32 1.0, %v3538
    %v3540 = vmul.f32 %v3532, %v3431
    %v3541 = vmul.f32 %v3526, %v3533
    %v3542 = vadd.f32 %v3540, %v3541
    %v3543 = vtanh.pop %v3542
    %v3544 = vmul.f32 %v3539, %v3543
    %v3545 = vpack.c.bf16 %v3544, %v3544
    %3546 = vmatprep.subr.bf16.mxu0 %v2734
    %3547 = vmatpush1.bf16.msra.mxu0 %v2733
    %3548 = vmatprep.subr.bf16.mxu0 %v2730
    %3549 = vmatpush1.bf16.msra.mxu0 %v2729
    %3550 = vmatprep.subr.bf16.mxu0 %v2726
    %3551 = vmatpush1.bf16.msra.mxu0 %v2725
    %3552 = vmatprep.subr.bf16.mxu0 %v2722
    %3553 = vmatpush1.bf16.msra.mxu0 %v2721
    %3554 = vmatprep.subr.bf16.mxu0 %v2718
    %3555 = vmatpush1.bf16.msra.mxu0 %v2717
    %3556 = vmatprep.subr.bf16.mxu0 %v2714
    %3557 = vmatpush1.bf16.msra.mxu0 %v2713
    %3558 = vmatprep.subr.bf16.mxu0 %v2710
    %3559 = vmatpush1.bf16.msra.mxu0 %v2709
    %3560 = vmatprep.subr.bf16.mxu0 %v2706
    %3561 = vmatpush1.bf16.msra.mxu0 %v2705
    %3562 = vmatprep.subr.bf16.mxu0 0
    %3563 = vmatpush2.bf16.msra.mxu0 0
    %3564 = vmatprep.subr.bf16.mxu0 0
    %3565 = vmatpush2.bf16.msra.mxu0 0
    %3566 = vmatprep.subr.bf16.mxu0 0
    %3567 = vmatpush2.bf16.msra.mxu0 0
    %3568 = vmatprep.subr.bf16.mxu0 0
    %3569 = vmatpush2.bf16.msra.mxu0 0
    %3570 = vmatprep.subr.bf16.mxu0 0
    %3571 = vmatpush2.bf16.msra.mxu0 0
    %3572 = vmatprep.subr.bf16.mxu0 0
    %3573 = vmatpush2.bf16.msra.mxu0 0
    %3574 = vmatprep.subr.bf16.mxu0 0
    %3575 = vmatpush2.bf16.msra.mxu0 0
    %3576 = vmatprep.subr.bf16.mxu0 0
    %3577 = vmatpush2.bf16.msra.mxu0 0
    %3578 = vmatprep.mubr.bf16.mxu0 0
    %3579 = vmatmul.mubr.bf16.gmra.mxu0 %v3545
    %v3580 = vpop.f32.mrf.mxu0
    %v3581 = vadd.f32 0.0, %v3580
    %v3582 = vpop.f32.mrf.mxu0
    %v3583 = vadd.f32 0.0, %v3582
    %v3584 = vpop.f32.mrf.mxu0
    %v3585 = vpop.f32.mrf.mxu0
    %3586 = vdwg.mxu0
    %3587 = vmatprep.subr.bf16.mxu0 %v2736
    %3588 = vmatpush1.bf16.msra.mxu0 %v2735
    %3589 = vmatprep.subr.bf16.mxu0 %v2732
    %3590 = vmatpush1.bf16.msra.mxu0 %v2731
    %3591 = vmatprep.subr.bf16.mxu0 %v2728
    %3592 = vmatpush1.bf16.msra.mxu0 %v2727
    %3593 = vmatprep.subr.bf16.mxu0 %v2724
    %3594 = vmatpush1.bf16.msra.mxu0 %v2723
    %3595 = vmatprep.subr.bf16.mxu0 %v2720
    %3596 = vmatpush1.bf16.msra.mxu0 %v2719
    %3597 = vmatprep.subr.bf16.mxu0 %v2716
    %3598 = vmatpush1.bf16.msra.mxu0 %v2715
    %3599 = vmatprep.subr.bf16.mxu0 %v2712
    %3600 = vmatpush1.bf16.msra.mxu0 %v2711
    %3601 = vmatprep.subr.bf16.mxu0 %v2708
    %3602 = vmatpush1.bf16.msra.mxu0 %v2707
    %3603 = vmatprep.subr.bf16.mxu0 0
    %3604 = vmatpush2.bf16.msra.mxu0 0
    %3605 = vmatprep.subr.bf16.mxu0 0
    %3606 = vmatpush2.bf16.msra.mxu0 0
    %3607 = vmatprep.subr.bf16.mxu0 0
    %3608 = vmatpush2.bf16.msra.mxu0 0
    %3609 = vmatprep.subr.bf16.mxu0 0
    %3610 = vmatpush2.bf16.msra.mxu0 0
    %3611 = vmatprep.subr.bf16.mxu0 0
    %3612 = vmatpush2.bf16.msra.mxu0 0
    %3613 = vmatprep.subr.bf16.mxu0 0
    %3614 = vmatpush2.bf16.msra.mxu0 0
    %3615 = vmatprep.subr.bf16.mxu0 0
    %3616 = vmatpush2.bf16.msra.mxu0 0
    %3617 = vmatprep.subr.bf16.mxu0 0
    %3618 = vmatpush2.bf16.msra.mxu0 0
    %3619 = vmatprep.mubr.bf16.mxu0 0
    %3620 = vmatmul.mubr.bf16.gmra.mxu0 %v3545
    %v3621 = vpop.f32.mrf.mxu0
    %v3622 = vadd.f32 0.0, %v3621
    %v3623 = vpop.f32.mrf.mxu0
    %v3624 = vadd.f32 0.0, %v3623
    %v3625 = vpop.f32.mrf.mxu0
    %v3626 = vpop.f32.mrf.mxu0
    %3627 = vdwg.mxu0
    %v3628 = vadd.f32 %v2532, %v3581
    %v3629 = vadd.f32 %v2534, %v3583
    %v3630 = vadd.f32 %v2605, %v3622
    %v3631 = vadd.f32 %v2607, %v3624
    %v3632 = vxor.u32 %v3628, 2147483648
    %v3633 = vmul.f32 %v3632, 1.442695
    %v3634 = vpow.pop %v3633
    %v3635 = vadd.f32 %v3634, 1.0
    %v3636 = vrcp.pop %v3635
    %v3637 = vmul.f32 1.0, %v3636
    %v3638 = vxor.u32 %v3629, 2147483648
    %v3639 = vmul.f32 %v3638, 1.442695
    %v3640 = vpow.pop %v3639
    %v3641 = vadd.f32 %v3640, 1.0
    %v3642 = vrcp.pop %v3641
    %v3643 = vmul.f32 1.0, %v3642
    %v3644 = vtanh.pop %v3630
    %v3645 = vxor.u32 %v3631, 2147483648
    %v3646 = vmul.f32 %v3645, 1.442695
    %v3647 = vpow.pop %v3646
    %v3648 = vadd.f32 %v3647, 1.0
    %v3649 = vrcp.pop %v3648
    %v3650 = vmul.f32 1.0, %v3649
    %v3651 = vmul.f32 %v3643, %v3542
    %v3652 = vmul.f32 %v3637, %v3644
    %v3653 = vadd.f32 %v3651, %v3652
    %v3654 = vtanh.pop %v3653
    %v3655 = vmul.f32 %v3650, %v3654
    %v3656 = vtanh.pop %v2202
    %v3657 = vtanh.pop %v3655
    %v3658 = vpack.c.bf16 %v3656, %v3656
    %v3659 = vpack.c.bf16 %v2201, %v2201
    %v3660 = vpack.c.bf16 %v3657, %v3657
    %v3661 = vpack.c.bf16 %v3654, %v3654
    %v3662 = vld [vmem:[#allocation14] sm:$0xf]
    %v3663 = vld [vmem:[#allocation14 + $0x4] sm:$0xf]
    %v3664 = vld [vmem:[#allocation14 + $0x8] sm:$0xf]
    %v3665 = vld [vmem:[#allocation14 + $0xc] sm:$0xf]
    %v3666 = vld [vmem:[#allocation14 + $0x10] sm:$0xf]
    %v3667 = vld [vmem:[#allocation14 + $0x14] sm:$0xf]
    %v3668 = vld [vmem:[#allocation14 + $0x18] sm:$0xf]
    %v3669 = vld [vmem:[#allocation14 + $0x1c] sm:$0xf]
    %v3670 = vld [vmem:[#allocation14 + $0x20] sm:$0xf]
    %v3671 = vld [vmem:[#allocation14 + $0x24] sm:$0xf]
    %v3672 = vld [vmem:[#allocation14 + $0x28] sm:$0xf]
    %v3673 = vld [vmem:[#allocation14 + $0x2c] sm:$0xf]
    %v3674 = vld [vmem:[#allocation14 + $0x30] sm:$0xf]
    %v3675 = vld [vmem:[#allocation14 + $0x34] sm:$0xf]
    %v3676 = vld [vmem:[#allocation14 + $0x38] sm:$0xf]
    %v3677 = vld [vmem:[#allocation14 + $0x3c] sm:$0xf]
    %v3678 = vld [vmem:[#allocation14 + $0x40] sm:$0xf]
    %v3679 = vld [vmem:[#allocation14 + $0x44] sm:$0xf]
    %v3680 = vld [vmem:[#allocation14 + $0x48] sm:$0xf]
    %v3681 = vld [vmem:[#allocation14 + $0x4c] sm:$0xf]
    %v3682 = vld [vmem:[#allocation14 + $0x50] sm:$0xf]
    %v3683 = vld [vmem:[#allocation14 + $0x54] sm:$0xf]
    %v3684 = vld [vmem:[#allocation14 + $0x58] sm:$0xf]
    %v3685 = vld [vmem:[#allocation14 + $0x5c] sm:$0xf]
    %v3686 = vld [vmem:[#allocation14 + $0x60] sm:$0xf]
    %v3687 = vld [vmem:[#allocation14 + $0x64] sm:$0xf]
    %v3688 = vld [vmem:[#allocation14 + $0x68] sm:$0xf]
    %v3689 = vld [vmem:[#allocation14 + $0x6c] sm:$0xf]
    %v3690 = vld [vmem:[#allocation14 + $0x70] sm:$0xf]
    %v3691 = vld [vmem:[#allocation14 + $0x74] sm:$0xf]
    %v3692 = vld [vmem:[#allocation14 + $0x78] sm:$0xf]
    %v3693 = vld [vmem:[#allocation14 + $0x7c] sm:$0xf]
    %v3694 = vld [vmem:[#allocation14 + $0x80] sm:$0xf]
    %v3695 = vld [vmem:[#allocation14 + $0x84] sm:$0xf]
    %v3696 = vld [vmem:[#allocation14 + $0x88] sm:$0xf]
    %v3697 = vld [vmem:[#allocation14 + $0x8c] sm:$0xf]
    %v3698 = vld [vmem:[#allocation14 + $0x90] sm:$0xf]
    %v3699 = vld [vmem:[#allocation14 + $0x94] sm:$0xf]
    %v3700 = vld [vmem:[#allocation14 + $0x98] sm:$0xf]
    %v3701 = vld [vmem:[#allocation14 + $0x9c] sm:$0xf]
    %v3702 = vld [vmem:[#allocation14 + $0xa0] sm:$0xf]
    %v3703 = vld [vmem:[#allocation14 + $0xa4] sm:$0xf]
    %v3704 = vld [vmem:[#allocation14 + $0xa8] sm:$0xf]
    %v3705 = vld [vmem:[#allocation14 + $0xac] sm:$0xf]
    %v3706 = vld [vmem:[#allocation14 + $0xb0] sm:$0xf]
    %v3707 = vld [vmem:[#allocation14 + $0xb4] sm:$0xf]
    %v3708 = vld [vmem:[#allocation14 + $0xb8] sm:$0xf]
    %v3709 = vld [vmem:[#allocation14 + $0xbc] sm:$0xf]
    %v3710 = vld [vmem:[#allocation14 + $0xc0] sm:$0xf]
    %v3711 = vld [vmem:[#allocation14 + $0xc4] sm:$0xf]
    %v3712 = vld [vmem:[#allocation14 + $0xc8] sm:$0xf]
    %v3713 = vld [vmem:[#allocation14 + $0xcc] sm:$0xf]
    %v3714 = vld [vmem:[#allocation14 + $0xd0] sm:$0xf]
    %v3715 = vld [vmem:[#allocation14 + $0xd4] sm:$0xf]
    %v3716 = vld [vmem:[#allocation14 + $0xd8] sm:$0xf]
    %v3717 = vld [vmem:[#allocation14 + $0xdc] sm:$0xf]
    %v3718 = vld [vmem:[#allocation14 + $0xe0] sm:$0xf]
    %v3719 = vld [vmem:[#allocation14 + $0xe4] sm:$0xf]
    %v3720 = vld [vmem:[#allocation14 + $0xe8] sm:$0xf]
    %v3721 = vld [vmem:[#allocation14 + $0xec] sm:$0xf]
    %v3722 = vld [vmem:[#allocation14 + $0xf0] sm:$0xf]
    %v3723 = vld [vmem:[#allocation14 + $0xf4] sm:$0xf]
    %v3724 = vld [vmem:[#allocation14 + $0xf8] sm:$0xf]
    %v3725 = vld [vmem:[#allocation14 + $0xfc] sm:$0xf]
    %v3726 = vld [vmem:[%s14] sm:$0x1]
    %v3728 = vlaneseq
    %v3729 = vshrl.u32 %v3728, 7
    %v3730 = vsub.s32 0, %v3729
    %v3731 = vrot.slane %v3726, %v3730
    %v3797 = vunpack.c.l.b16 %v3662
    %v3798 = vunpack.c.l.b16 %v3663
    %v3799 = vunpack.c.l.b16 %v3664
    %v3800 = vunpack.c.l.b16 %v3665
    %v3801 = vunpack.c.l.b16 %v3666
    %v3802 = vunpack.c.l.b16 %v3667
    %v3803 = vunpack.c.l.b16 %v3668
    %v3804 = vunpack.c.l.b16 %v3669
    %v3805 = vunpack.c.l.b16 %v3670
    %v3806 = vunpack.c.l.b16 %v3671
    %v3807 = vunpack.c.l.b16 %v3672
    %v3808 = vunpack.c.l.b16 %v3673
    %v3809 = vunpack.c.l.b16 %v3674
    %v3810 = vunpack.c.l.b16 %v3675
    %v3811 = vunpack.c.l.b16 %v3676
    %v3812 = vunpack.c.l.b16 %v3677
    %v3813 = vunpack.c.l.b16 %v3678
    %v3814 = vunpack.c.l.b16 %v3679
    %v3815 = vunpack.c.l.b16 %v3680
    %v3816 = vunpack.c.l.b16 %v3681
    %v3817 = vunpack.c.l.b16 %v3682
    %v3818 = vunpack.c.l.b16 %v3683
    %v3819 = vunpack.c.l.b16 %v3684
    %v3820 = vunpack.c.l.b16 %v3685
    %v3821 = vunpack.c.l.b16 %v3686
    %v3822 = vunpack.c.l.b16 %v3687
    %v3823 = vunpack.c.l.b16 %v3688
    %v3824 = vunpack.c.l.b16 %v3689
    %v3825 = vunpack.c.l.b16 %v3690
    %v3826 = vunpack.c.l.b16 %v3691
    %v3827 = vunpack.c.l.b16 %v3692
    %v3828 = vunpack.c.l.b16 %v3693
    %v3829 = vunpack.c.l.b16 %v3694
    %v3830 = vunpack.c.l.b16 %v3695
    %v3831 = vunpack.c.l.b16 %v3696
    %v3832 = vunpack.c.l.b16 %v3697
    %v3833 = vunpack.c.l.b16 %v3698
    %v3834 = vunpack.c.l.b16 %v3699
    %v3835 = vunpack.c.l.b16 %v3700
    %v3836 = vunpack.c.l.b16 %v3701
    %v3837 = vunpack.c.l.b16 %v3702
    %v3838 = vunpack.c.l.b16 %v3703
    %v3839 = vunpack.c.l.b16 %v3704
    %v3840 = vunpack.c.l.b16 %v3705
    %v3841 = vunpack.c.l.b16 %v3706
    %v3842 = vunpack.c.l.b16 %v3707
    %v3843 = vunpack.c.l.b16 %v3708
    %v3844 = vunpack.c.l.b16 %v3709
    %v3845 = vunpack.c.l.b16 %v3710
    %v3846 = vunpack.c.l.b16 %v3711
    %v3847 = vunpack.c.l.b16 %v3712
    %v3848 = vunpack.c.l.b16 %v3713
    %v3849 = vunpack.c.l.b16 %v3714
    %v3850 = vunpack.c.l.b16 %v3715
    %v3851 = vunpack.c.l.b16 %v3716
    %v3852 = vunpack.c.l.b16 %v3717
    %v3853 = vunpack.c.l.b16 %v3718
    %v3854 = vunpack.c.l.b16 %v3719
    %v3855 = vunpack.c.l.b16 %v3720
    %v3856 = vunpack.c.l.b16 %v3721
    %v3857 = vunpack.c.l.b16 %v3722
    %v3858 = vunpack.c.l.b16 %v3723
    %v3859 = vunpack.c.l.b16 %v3724
    %v3860 = vunpack.c.l.b16 %v3725
    %v3861 = vpack.c.b16 %v3798, %v3797
    %v3862 = vpack.c.b16 %v3800, %v3799
    %v3863 = vpack.c.b16 %v3802, %v3801
    %v3864 = vpack.c.b16 %v3804, %v3803
    %v3865 = vpack.c.b16 %v3806, %v3805
    %v3866 = vpack.c.b16 %v3808, %v3807
    %v3867 = vpack.c.b16 %v3810, %v3809
    %v3868 = vpack.c.b16 %v3812, %v3811
    %v3869 = vpack.c.b16 %v3814, %v3813
    %v3870 = vpack.c.b16 %v3816, %v3815
    %v3871 = vpack.c.b16 %v3818, %v3817
    %v3872 = vpack.c.b16 %v3820, %v3819
    %v3873 = vpack.c.b16 %v3822, %v3821
    %v3874 = vpack.c.b16 %v3824, %v3823
    %v3875 = vpack.c.b16 %v3826, %v3825
    %v3876 = vpack.c.b16 %v3828, %v3827
    %v3877 = vpack.c.b16 %v3830, %v3829
    %v3878 = vpack.c.b16 %v3832, %v3831
    %v3879 = vpack.c.b16 %v3834, %v3833
    %v3880 = vpack.c.b16 %v3836, %v3835
    %v3881 = vpack.c.b16 %v3838, %v3837
    %v3882 = vpack.c.b16 %v3840, %v3839
    %v3883 = vpack.c.b16 %v3842, %v3841
    %v3884 = vpack.c.b16 %v3844, %v3843
    %v3885 = vpack.c.b16 %v3846, %v3845
    %v3886 = vpack.c.b16 %v3848, %v3847
    %v3887 = vpack.c.b16 %v3850, %v3849
    %v3888 = vpack.c.b16 %v3852, %v3851
    %v3889 = vpack.c.b16 %v3854, %v3853
    %v3890 = vpack.c.b16 %v3856, %v3855
    %v3891 = vpack.c.b16 %v3858, %v3857
    %v3892 = vpack.c.b16 %v3860, %v3859
    %3925 = vmatprep.subr.bf16.mxu0 0
    %3926 = vmatpush1.bf16.msra.mxu0 %v3868
    %3927 = vmatprep.subr.bf16.mxu0 0
    %3928 = vmatpush1.bf16.msra.mxu0 %v3867
    %3929 = vmatprep.subr.bf16.mxu0 0
    %3930 = vmatpush1.bf16.msra.mxu0 %v3866
    %3931 = vmatprep.subr.bf16.mxu0 0
    %3932 = vmatpush1.bf16.msra.mxu0 %v3865
    %3933 = vmatprep.subr.bf16.mxu0 0
    %3934 = vmatpush1.bf16.msra.mxu0 %v3864
    %3935 = vmatprep.subr.bf16.mxu0 0
    %3936 = vmatpush1.bf16.msra.mxu0 %v3863
    %3937 = vmatprep.subr.bf16.mxu0 0
    %3938 = vmatpush1.bf16.msra.mxu0 %v3862
    %3939 = vmatprep.subr.bf16.mxu0 0
    %3940 = vmatpush1.bf16.msra.mxu0 %v3861
    %3941 = vmatprep.subr.bf16.mxu0 0
    %3942 = vmatpush2.bf16.msra.mxu0 %v3876
    %3943 = vmatprep.subr.bf16.mxu0 0
    %3944 = vmatpush2.bf16.msra.mxu0 %v3875
    %3945 = vmatprep.subr.bf16.mxu0 0
    %3946 = vmatpush2.bf16.msra.mxu0 %v3874
    %3947 = vmatprep.subr.bf16.mxu0 0
    %3948 = vmatpush2.bf16.msra.mxu0 %v3873
    %3949 = vmatprep.subr.bf16.mxu0 0
    %3950 = vmatpush2.bf16.msra.mxu0 %v3872
    %3951 = vmatprep.subr.bf16.mxu0 0
    %3952 = vmatpush2.bf16.msra.mxu0 %v3871
    %3953 = vmatprep.subr.bf16.mxu0 0
    %3954 = vmatpush2.bf16.msra.mxu0 %v3870
    %3955 = vmatprep.subr.bf16.mxu0 0
    %3956 = vmatpush2.bf16.msra.mxu0 %v3869
    %3957 = vmatprep.mubr.bf16.mxu0 %v3659
    %3958 = vmatmul.mubr.bf16.gmra.mxu0 %v3658
    %v3959 = vpop.f32.mrf.mxu0
    %v3960 = vadd.f32 %v3731, %v3959
    %v3961 = vpop.f32.mrf.mxu0
    %v3962 = vpop.f32.mrf.mxu0
    %v3963 = vpop.f32.mrf.mxu0
    %3964 = vdwg.mxu0
    %3965 = vmatprep.subr.bf16.mxu0 0
    %3966 = vmatpush1.bf16.msra.mxu0 %v3884
    %3967 = vmatprep.subr.bf16.mxu0 0
    %3968 = vmatpush1.bf16.msra.mxu0 %v3883
    %3969 = vmatprep.subr.bf16.mxu0 0
    %3970 = vmatpush1.bf16.msra.mxu0 %v3882
    %3971 = vmatprep.subr.bf16.mxu0 0
    %3972 = vmatpush1.bf16.msra.mxu0 %v3881
    %3973 = vmatprep.subr.bf16.mxu0 0
    %3974 = vmatpush1.bf16.msra.mxu0 %v3880
    %3975 = vmatprep.subr.bf16.mxu0 0
    %3976 = vmatpush1.bf16.msra.mxu0 %v3879
    %3977 = vmatprep.subr.bf16.mxu0 0
    %3978 = vmatpush1.bf16.msra.mxu0 %v3878
    %3979 = vmatprep.subr.bf16.mxu0 0
    %3980 = vmatpush1.bf16.msra.mxu0 %v3877
    %3981 = vmatprep.subr.bf16.mxu0 0
    %3982 = vmatpush2.bf16.msra.mxu0 %v3892
    %3983 = vmatprep.subr.bf16.mxu0 0
    %3984 = vmatpush2.bf16.msra.mxu0 %v3891
    %3985 = vmatprep.subr.bf16.mxu0 0
    %3986 = vmatpush2.bf16.msra.mxu0 %v3890
    %3987 = vmatprep.subr.bf16.mxu0 0
    %3988 = vmatpush2.bf16.msra.mxu0 %v3889
    %3989 = vmatprep.subr.bf16.mxu0 0
    %3990 = vmatpush2.bf16.msra.mxu0 %v3888
    %3991 = vmatprep.subr.bf16.mxu0 0
    %3992 = vmatpush2.bf16.msra.mxu0 %v3887
    %3993 = vmatprep.subr.bf16.mxu0 0
    %3994 = vmatpush2.bf16.msra.mxu0 %v3886
    %3995 = vmatprep.subr.bf16.mxu0 0
    %3996 = vmatpush2.bf16.msra.mxu0 %v3885
    %3997 = vmatprep.mubr.bf16.mxu0 %v3661
    %3998 = vmatmul.mubr.bf16.gmra.mxu0 %v3660
    %v3999 = vpop.f32.mrf.mxu0
    %v4000 = vadd.f32 %v3960, %v3999
    %v4001 = vpop.f32.mrf.mxu0
    %v4002 = vpop.f32.mrf.mxu0
    %v4003 = vpop.f32.mrf.mxu0
    %4004 = vdwg.mxu0
    %v4005 = vmul.f32 %v470, %v4000
    %v4006 = vtanh.pop %v4005
    %v4007 = vpack.c.bf16 %v4006, %v4006
    %v4008 = vld [vmem:[#allocation16] sm:$0xf]
    %v4009 = vld [vmem:[#allocation16 + $0x4] sm:$0xf]
    %v4010 = vld [vmem:[#allocation16 + $0x8] sm:$0xf]
    %v4011 = vld [vmem:[#allocation16 + $0xc] sm:$0xf]
    %v4012 = vld [vmem:[#allocation16 + $0x10] sm:$0xf]
    %v4013 = vld [vmem:[#allocation16 + $0x14] sm:$0xf]
    %v4014 = vld [vmem:[#allocation16 + $0x18] sm:$0xf]
    %v4015 = vld [vmem:[#allocation16 + $0x1c] sm:$0xf]
    %v4016 = vld [vmem:[#allocation16 + $0x20] sm:$0xf]
    %v4017 = vld [vmem:[#allocation16 + $0x24] sm:$0xf]
    %v4018 = vld [vmem:[#allocation16 + $0x28] sm:$0xf]
    %v4019 = vld [vmem:[#allocation16 + $0x2c] sm:$0xf]
    %v4020 = vld [vmem:[#allocation16 + $0x30] sm:$0xf]
    %v4021 = vld [vmem:[#allocation16 + $0x34] sm:$0xf]
    %v4022 = vld [vmem:[#allocation16 + $0x38] sm:$0xf]
    %v4023 = vld [vmem:[#allocation16 + $0x3c] sm:$0xf]
    %v4024 = vld [vmem:[%s16] sm:$0x1]
    %v4026 = vlaneseq
    %v4027 = vshrl.u32 %v4026, 7
    %v4028 = vsub.s32 0, %v4027
    %v4029 = vrot.slane %v4024, %v4028
    %v4047 = vunpack.c.l.b16 %v4008
    %v4048 = vunpack.c.l.b16 %v4009
    %v4049 = vunpack.c.l.b16 %v4010
    %v4050 = vunpack.c.l.b16 %v4011
    %v4051 = vunpack.c.l.b16 %v4012
    %v4052 = vunpack.c.l.b16 %v4013
    %v4053 = vunpack.c.l.b16 %v4014
    %v4054 = vunpack.c.l.b16 %v4015
    %v4055 = vunpack.c.l.b16 %v4016
    %v4056 = vunpack.c.l.b16 %v4017
    %v4057 = vunpack.c.l.b16 %v4018
    %v4058 = vunpack.c.l.b16 %v4019
    %v4059 = vunpack.c.l.b16 %v4020
    %v4060 = vunpack.c.l.b16 %v4021
    %v4061 = vunpack.c.l.b16 %v4022
    %v4062 = vunpack.c.l.b16 %v4023
    %v4063 = vpack.c.b16 %v4048, %v4047
    %v4064 = vpack.c.b16 %v4050, %v4049
    %v4065 = vpack.c.b16 %v4052, %v4051
    %v4066 = vpack.c.b16 %v4054, %v4053
    %v4067 = vpack.c.b16 %v4056, %v4055
    %v4068 = vpack.c.b16 %v4058, %v4057
    %v4069 = vpack.c.b16 %v4060, %v4059
    %v4070 = vpack.c.b16 %v4062, %v4061
    %4079 = vmatprep.subr.bf16.mxu0 0
    %4080 = vmatpush1.bf16.msra.mxu0 %v4070
    %4081 = vmatprep.subr.bf16.mxu0 0
    %4082 = vmatpush1.bf16.msra.mxu0 %v4069
    %4083 = vmatprep.subr.bf16.mxu0 0
    %4084 = vmatpush1.bf16.msra.mxu0 %v4068
    %4085 = vmatprep.subr.bf16.mxu0 0
    %4086 = vmatpush1.bf16.msra.mxu0 %v4067
    %4087 = vmatprep.subr.bf16.mxu0 0
    %4088 = vmatpush1.bf16.msra.mxu0 %v4066
    %4089 = vmatprep.subr.bf16.mxu0 0
    %4090 = vmatpush1.bf16.msra.mxu0 %v4065
    %4091 = vmatprep.subr.bf16.mxu0 0
    %4092 = vmatpush1.bf16.msra.mxu0 %v4064
    %4093 = vmatprep.subr.bf16.mxu0 0
    %4094 = vmatpush1.bf16.msra.mxu0 %v4063
    %4095 = vmatprep.subr.bf16.mxu0 0
    %4096 = vmatpush2.bf16.msra.mxu0 0
    %4097 = vmatprep.subr.bf16.mxu0 0
    %4098 = vmatpush2.bf16.msra.mxu0 0
    %4099 = vmatprep.subr.bf16.mxu0 0
    %4100 = vmatpush2.bf16.msra.mxu0 0
    %4101 = vmatprep.subr.bf16.mxu0 0
    %4102 = vmatpush2.bf16.msra.mxu0 0
    %4103 = vmatprep.subr.bf16.mxu0 0
    %4104 = vmatpush2.bf16.msra.mxu0 0
    %4105 = vmatprep.subr.bf16.mxu0 0
    %4106 = vmatpush2.bf16.msra.mxu0 0
    %4107 = vmatprep.subr.bf16.mxu0 0
    %4108 = vmatpush2.bf16.msra.mxu0 0
    %4109 = vmatprep.subr.bf16.mxu0 0
    %4110 = vmatpush2.bf16.msra.mxu0 0
    %4111 = vmatprep.mubr.bf16.mxu0 0
    %4112 = vmatmul.mubr.bf16.gmra.mxu0 %v4007
    %v4113 = vpop.f32.mrf.mxu0
    %v4114 = vadd.f32 %v4029, %v4113
    %v4115 = vpop.f32.mrf.mxu0
    %v4116 = vpop.f32.mrf.mxu0
    %v4117 = vpop.f32.mrf.mxu0
    %4118 = vdwg.mxu0
    %v4119 = vtanh.pop %v4114
    %v4120 = vpack.c.bf16 %v4119, %v4119
    %v4121 = vld [vmem:[#allocation17] sm:$0xf]
    %v4122 = vld [vmem:[#allocation17 + $0x4] sm:$0xf]
    %v4123 = vld [vmem:[#allocation17 + $0x8] sm:$0xf]
    %v4124 = vld [vmem:[#allocation17 + $0xc] sm:$0xf]
    %v4125 = vld [vmem:[#allocation17 + $0x10] sm:$0xf]
    %v4126 = vld [vmem:[#allocation17 + $0x14] sm:$0xf]
    %v4127 = vld [vmem:[#allocation17 + $0x18] sm:$0xf]
    %v4128 = vld [vmem:[#allocation17 + $0x1c] sm:$0xf]
    %v4129 = vld [vmem:[#allocation17 + $0x20] sm:$0xf]
    %v4130 = vld [vmem:[#allocation17 + $0x24] sm:$0xf]
    %v4131 = vld [vmem:[#allocation17 + $0x28] sm:$0xf]
    %v4132 = vld [vmem:[#allocation17 + $0x2c] sm:$0xf]
    %v4133 = vld [vmem:[#allocation17 + $0x30] sm:$0xf]
    %v4134 = vld [vmem:[#allocation17 + $0x34] sm:$0xf]
    %v4135 = vld [vmem:[#allocation17 + $0x38] sm:$0xf]
    %v4136 = vld [vmem:[#allocation17 + $0x3c] sm:$0xf]
    %v4137 = vld [vmem:[%s18] sm:$0x1]
    %v4139 = vlaneseq
    %v4140 = vshrl.u32 %v4139, 7
    %v4141 = vsub.s32 0, %v4140
    %v4142 = vrot.slane %v4137, %v4141
    %v4160 = vunpack.c.l.b16 %v4121
    %v4161 = vunpack.c.l.b16 %v4122
    %v4162 = vunpack.c.l.b16 %v4123
    %v4163 = vunpack.c.l.b16 %v4124
    %v4164 = vunpack.c.l.b16 %v4125
    %v4165 = vunpack.c.l.b16 %v4126
    %v4166 = vunpack.c.l.b16 %v4127
    %v4167 = vunpack.c.l.b16 %v4128
    %v4168 = vunpack.c.l.b16 %v4129
    %v4169 = vunpack.c.l.b16 %v4130
    %v4170 = vunpack.c.l.b16 %v4131
    %v4171 = vunpack.c.l.b16 %v4132
    %v4172 = vunpack.c.l.b16 %v4133
    %v4173 = vunpack.c.l.b16 %v4134
    %v4174 = vunpack.c.l.b16 %v4135
    %v4175 = vunpack.c.l.b16 %v4136
    %v4176 = vpack.c.b16 %v4161, %v4160
    %v4177 = vpack.c.b16 %v4163, %v4162
    %v4178 = vpack.c.b16 %v4165, %v4164
    %v4179 = vpack.c.b16 %v4167, %v4166
    %v4180 = vpack.c.b16 %v4169, %v4168
    %v4181 = vpack.c.b16 %v4171, %v4170
    %v4182 = vpack.c.b16 %v4173, %v4172
    %v4183 = vpack.c.b16 %v4175, %v4174
    %4192 = vmatprep.subr.bf16.mxu0 0
    %4193 = vmatpush1.bf16.msra.mxu0 %v4183
    %4194 = vmatprep.subr.bf16.mxu0 0
    %4195 = vmatpush1.bf16.msra.mxu0 %v4182
    %4196 = vmatprep.subr.bf16.mxu0 0
    %4197 = vmatpush1.bf16.msra.mxu0 %v4181
    %4198 = vmatprep.subr.bf16.mxu0 0
    %4199 = vmatpush1.bf16.msra.mxu0 %v4180
    %4200 = vmatprep.subr.bf16.mxu0 0
    %4201 = vmatpush1.bf16.msra.mxu0 %v4179
    %4202 = vmatprep.subr.bf16.mxu0 0
    %4203 = vmatpush1.bf16.msra.mxu0 %v4178
    %4204 = vmatprep.subr.bf16.mxu0 0
    %4205 = vmatpush1.bf16.msra.mxu0 %v4177
    %4206 = vmatprep.subr.bf16.mxu0 0
    %4207 = vmatpush1.bf16.msra.mxu0 %v4176
    %4208 = vmatprep.subr.bf16.mxu0 0
    %4209 = vmatpush2.bf16.msra.mxu0 0
    %4210 = vmatprep.subr.bf16.mxu0 0
    %4211 = vmatpush2.bf16.msra.mxu0 0
    %4212 = vmatprep.subr.bf16.mxu0 0
    %4213 = vmatpush2.bf16.msra.mxu0 0
    %4214 = vmatprep.subr.bf16.mxu0 0
    %4215 = vmatpush2.bf16.msra.mxu0 0
    %4216 = vmatprep.subr.bf16.mxu0 0
    %4217 = vmatpush2.bf16.msra.mxu0 0
    %4218 = vmatprep.subr.bf16.mxu0 0
    %4219 = vmatpush2.bf16.msra.mxu0 0
    %4220 = vmatprep.subr.bf16.mxu0 0
    %4221 = vmatpush2.bf16.msra.mxu0 0
    %4222 = vmatprep.subr.bf16.mxu0 0
    %4223 = vmatpush2.bf16.msra.mxu0 0
    %4224 = vmatprep.mubr.bf16.mxu0 0
    %4225 = vmatmul.mubr.bf16.gmra.mxu0 %v4120
    %v4226 = vpop.f32.mrf.mxu0
    %v4227 = vadd.f32 %v4142, %v4226
    %v4228 = vpop.f32.mrf.mxu0
    %v4229 = vpop.f32.mrf.mxu0
    %v4230 = vpop.f32.mrf.mxu0
    %4231 = vdwg.mxu0
    %4232 = vst [vmem:[%s19] sm:$0xff] %v4227
    // Predicated region
    $region114: #{vqa_forward.1} parent=1 // pred_check
      _
    $region115: #{vqa_forward.1} parent=1 // pred_check_branch
      %4234 = sbr.rel (0) target = $region117
    $region116: #{vqa_forward.1} parent=1 // pred_region
      _
    $region117: #{vqa_forward.1} parent=1 // pred_fallthru
      _
    // Predicated region
    $region118: #{vqa_forward.1} parent=1 // pred_check
      _
    $region119: #{vqa_forward.1} parent=1 // pred_check_branch
      %4236 = sbr.rel (0) target = $region121
    $region120: #{vqa_forward.1} parent=1 // pred_region
      _
    $region121: #{vqa_forward.1} parent=1 // pred_fallthru
      _
    %4237 = vsyncpa [#allocation5], 1
    %4238 = vsyncpa [#allocation9], 1
    %4239 = vsyncpa [#allocation12], 1
    %4240 = vsyncpa [#allocation15], 1
    %4241 = vsyncpa [#allocation18], 1
    %4242 = vsyncpa [#allocation6], 1

</llo_original>
